<compile_context>
chip_gen: v5e
topology: v5e:2x2
jax: 0.10.0
libtpu: 0.0.40
codegen_flags: <defaults>
</compile_context>

<pallas_src>
import functools
import math

import jax
import jax.numpy as jnp
from jax.experimental import pallas as pl
from jax.experimental.pallas import tpu as pltpu


def _layernorm(x, gamma, beta, eps=1e-5):
    # PyTorch LayerNorm: biased variance, eps inside sqrt.
    mu = jnp.mean(x, axis=-1, keepdims=True)
    var = jnp.mean(jnp.square(x - mu), axis=-1, keepdims=True)
    return (x - mu) * jax.lax.rsqrt(var + eps) * gamma + beta


def temporal_scale_kernel(
    xq_ref,         # (1, tq, D) f32  -- query-tile rows of x
    xkv_ref,        # (1, S,  D) f32  -- full sequence (keys / values / residual source)
    wqkv_ref,       # (D, 3D) bf16 = in_proj_weight.T, Q columns pre-scaled by 1/sqrt(hd)
    bqkv_ref,       # (1, 3D) f32, Q part pre-scaled
    wo_t_ref,       # (D, D)  bf16 = out_proj.weight.T (single full-D out projection)
    bo_ref,         # (1, D)  f32
    g1_ref, b1_ref,  # (1, D)  norm1
    w1_ref,         # (D, 4D) bf16 = ff[0].weight.T
    bf1_ref,        # (1, 4D) f32
    w2_ref,         # (4D, D) bf16 = ff[2].weight.T
    bf2_ref,        # (1, D)  f32
    g2_ref, b2_ref,  # (1, D)  norm2
    o_ref,          # (1, tq, D) f32
    ctx_ref,        # (tq, D) f32 VMEM scratch: per-head context written in place
    *,
    num_heads,
):
    xq = xq_ref[0]                      # (tq, D) f32
    xkv = xkv_ref[0]                    # (S,  D) f32
    tq, D = xq.shape
    S = xkv.shape[0]
    H = num_heads
    hd = D // H

    # ---- projections: bf16 operands, f32 MXU accumulation; big-N matmuls kept whole ----
    # TODO(synk): key_padding_mask path not implemented (mask=None only).
    xq_bf = xq.astype(jnp.bfloat16)
    xkv_bf = xkv.astype(jnp.bfloat16)
    q = (jnp.dot(xq_bf, wqkv_ref[:, :D], preferred_element_type=jnp.float32)
         + bqkv_ref[:, :D]).astype(jnp.bfloat16)               # (tq, D), 1/sqrt(hd) folded
    kv = (jnp.dot(xkv_bf, wqkv_ref[:, D:], preferred_element_type=jnp.float32)
          + bqkv_ref[:, D:])                                    # (S, 2D) f32
    k = kv[:, :D].astype(jnp.bfloat16)
    v = kv[:, D:].astype(jnp.bfloat16)

    # ---- attention core: static head loop, 2-D matmuls, ctx stored in place ----
    # Per-head live footprint is one (tq, S) score block; nothing is carried across
    # iterations in Python values and there is no final concatenate.
    # TODO(synk): for very long S, also tile K/V (flash-style m/l/acc online softmax)
    # instead of holding the full-S keys/values per query tile.
    for h in range(H):                  # H is small and static
        sl = slice(h * hd, (h + 1) * hd)
        s = jax.lax.dot_general(
            q[:, sl], k[:, sl],
            dimension_numbers=(((1,), (1,)), ((), ())),         # q @ k^T, no transpose op
            preferred_element_type=jnp.float32)                 # (tq, S) f32
        s = s - jnp.max(s, axis=-1, keepdims=True)
        p = jnp.exp(s)
        inv = pl.reciprocal(jnp.sum(p, axis=-1, keepdims=True), approx=True)   # (tq, 1)
        ctx_ref[:, sl] = jnp.dot(p.astype(jnp.bfloat16), v[:, sl],
                                 preferred_element_type=jnp.float32) * inv

    # ---- single full-D output projection (bf16 operands, f32 acc) ----
    attn = jnp.dot(ctx_ref[...].astype(jnp.bfloat16), wo_t_ref[...],
                   preferred_element_type=jnp.float32) + bo_ref[...]

    # ---- residual + LayerNorm 1 (f32) ----
    x1 = _layernorm(xq + attn, g1_ref[...], b1_ref[...])

    # ---- feed-forward: Linear(D,4D) -> GELU(tanh approx, EUP) -> Linear(4D,D) ----
    # TODO(synk): at production D (4D-weights ~16 MiB bf16), tile the 4D dim over an
    # extra "arbitrary" grid axis to bound VMEM on v7x instead of holding w1/w2 whole.
    hdn = jnp.dot(x1.astype(jnp.bfloat16), w1_ref[...],
                  preferred_element_type=jnp.float32) + bf1_ref[...]
    c = math.sqrt(2.0 / math.pi)
    hdn = 0.5 * hdn * (1.0 + jnp.tanh(c * (hdn + 0.044715 * hdn * hdn * hdn)))

    ff = jnp.dot(hdn.astype(jnp.bfloat16), w2_ref[...],
                 preferred_element_type=jnp.float32) + bf2_ref[...]

    # ---- residual + LayerNorm 2 (f32) ----
    o_ref[0] = _layernorm(x1 + ff, g2_ref[...], b2_ref[...]).astype(o_ref.dtype)


def preprocess_params(params, num_heads):
    """One-time weight preprocessing (cached by the module, not redone per call)."""
    D = params["out_proj_weight"].shape[0]
    hd = D // num_heads
    scale = 1.0 / math.sqrt(hd)

    # Fold the 1/sqrt(hd) query scale into the Q slice of in_proj (weights + bias).
    wqkv = params["in_proj_weight"].T                       # (D, 3D)
    wqkv = wqkv.at[:, :D].multiply(scale)
    bqkv = params["in_proj_bias"].at[:D].multiply(scale)

    return (
        wqkv.astype(jnp.bfloat16),                                   # (D, 3D)
        bqkv.reshape(1, 3 * D).astype(jnp.float32),
        params["out_proj_weight"].T.astype(jnp.bfloat16),            # (D, D) pre-transposed
        params["out_proj_bias"].reshape(1, D).astype(jnp.float32),
        params["norm1_weight"].reshape(1, D).astype(jnp.float32),
        params["norm1_bias"].reshape(1, D).astype(jnp.float32),
        params["ff1_weight"].T.astype(jnp.bfloat16),                 # (D, 4D)
        params["ff1_bias"].reshape(1, 4 * D).astype(jnp.float32),
        params["ff2_weight"].T.astype(jnp.bfloat16),                 # (4D, D)
        params["ff2_bias"].reshape(1, D).astype(jnp.float32),
        params["norm2_weight"].reshape(1, D).astype(jnp.float32),
        params["norm2_bias"].reshape(1, D).astype(jnp.float32),
    )


def _vmem_limit_bytes():
    """Generation-aware VMEM budget: ~0.8x physical capacity (v5e/v6e 128 MiB, v7x 64 MiB)."""
    cap = 128 * 1024 * 1024
    try:
        info = pltpu.get_tpu_info()
        cap = int(getattr(info, "vmem_capacity_bytes", cap))
    except Exception:
        pass
    return max(32 * 1024 * 1024, min(int(0.8 * cap), 100 * 1024 * 1024))


def temporal_scale_forward(x, kernel_args, num_heads):
    """x: (B, S, D) float32. kernel_args: output of preprocess_params (cached)."""
    B, S, D = x.shape

    # Query-tile size: full S for small sequences (single tile), 256 when it divides S.
    tq = S if (S <= 512 or S % 256 != 0) else 256
    nq = S // tq

    def make_call(single_buffer_weights):
        def wspec(shape):
            if single_buffer_weights:
                # Grid-invariant weights: single pipeline buffer halves their VMEM
                # footprint (matters on v7x's 64 MiB).
                return pl.BlockSpec(shape, lambda b, qi: (0, 0),
                                    pipeline_mode=pl.Buffered(1))
            return pl.BlockSpec(shape, lambda b, qi: (0, 0))

        in_specs = [
            pl.BlockSpec((1, tq, D), lambda b, qi: (b, qi, 0)),   # query tile rows
            pl.BlockSpec((1, S, D), lambda b, qi: (b, 0, 0)),     # full sequence for K/V
        ] + [wspec(a.shape) for a in kernel_args]

        return pl.pallas_call(
            functools.partial(temporal_scale_kernel, num_heads=num_heads),
            out_shape=jax.ShapeDtypeStruct((B, S, D), jnp.float32),
            grid=(B, nq),
            in_specs=in_specs,
            out_specs=pl.BlockSpec((1, tq, D), lambda b, qi: (b, qi, 0)),
            scratch_shapes=[pltpu.VMEM((tq, D), jnp.float32)],
            compiler_params=pltpu.CompilerParams(
                # Both batch rows and query tiles are independent: "parallel" lets
                # v7x's two TensorCores split the grid even at B=1-2; harmless on
                # single-TC v5e/v6e.
                dimension_semantics=("parallel", "parallel"),
                vmem_limit_bytes=_vmem_limit_bytes(),
            ),
        )

    try:
        return make_call(True)(x, x, *kernel_args)
    except Exception:
        # Fallback if this JAX build rejects pipeline_mode=pl.Buffered(1) on BlockSpecs:
        # default double-buffering (functionally identical, costs VMEM headroom on v7x).
        return make_call(False)(x, x, *kernel_args)


def temporal_scale_reference(x, params, num_heads):
    """Pure-JAX f32 reference (exact-erf GELU, matching the PyTorch module)."""
    B, S, D = x.shape
    hd = D // num_heads
    qkv = x @ params["in_proj_weight"].T + params["in_proj_bias"]
    q, k, v = qkv[..., :D], qkv[..., D:2 * D], qkv[..., 2 * D:]

    def split(t):  # (B, S, D) -> (B, H, S, hd)
        return t.reshape(B, S, num_heads, hd).transpose(0, 2, 1, 3)

    qh, kh, vh = split(q), split(k), split(v)
    s = jnp.einsum("bhqd,bhkd->bhqk", qh, kh) / math.sqrt(hd)
    p = jax.nn.softmax(s, axis=-1)
    ctx = jnp.einsum("bhqk,bhkd->bhqd", p, vh).transpose(0, 2, 1, 3).reshape(B, S, D)
    attn_out = ctx @ params["out_proj_weight"].T + params["out_proj_bias"]

    x1 = _layernorm(x + attn_out, params["norm1_weight"], params["norm1_bias"])
    h = x1 @ params["ff1_weight"].T + params["ff1_bias"]
    h = 0.5 * h * (1.0 + jax.lax.erf(h / math.sqrt(2.0)))
    ff = h @ params["ff2_weight"].T + params["ff2_bias"]
    return _layernorm(x1 + ff, params["norm2_weight"], params["norm2_bias"])


class TemporalScale:
    """Mirrors the PyTorch module's stateful update_frequency / state_memory logic."""

    def __init__(self, dim, num_heads, update_frequency, key):
        self.dim = dim
        self.num_heads = num_heads
        self.update_frequency = update_frequency
        self.step_count = 0
        self.state_memory = None

        ks = jax.random.split(key, 8)
        std = 0.02
        self.params = {
            "in_proj_weight": std * jax.random.normal(ks[0], (3 * dim, dim), jnp.float32),
            "in_proj_bias": std * jax.random.normal(ks[1], (3 * dim,), jnp.float32),
            "out_proj_weight": std * jax.random.normal(ks[2], (dim, dim), jnp.float32),
            "out_proj_bias": std * jax.random.normal(ks[3], (dim,), jnp.float32),
            "norm1_weight": jnp.ones((dim,), jnp.float32),
            "norm1_bias": jnp.zeros((dim,), jnp.float32),
            "ff1_weight": std * jax.random.normal(ks[4], (4 * dim, dim), jnp.float32),
            "ff1_bias": std * jax.random.normal(ks[5], (4 * dim,), jnp.float32),
            "ff2_weight": std * jax.random.normal(ks[6], (dim, 4 * dim), jnp.float32),
            "ff2_bias": std * jax.random.normal(ks[7], (dim,), jnp.float32),
            "norm2_weight": jnp.ones((dim,), jnp.float32),
            "norm2_bias": jnp.zeros((dim,), jnp.float32),
        }
        # One-time preprocessing (transpose, Q-scale fold, bf16 cast) — cached.
        self.kernel_args = jax.tree_util.tree_map(
            jax.block_until_ready, preprocess_params(self.params, num_heads))

    def __call__(self, x, mask=None):
        if mask is not None:
            # TODO(synk): key_padding_mask path not implemented in the kernel.
            raise NotImplementedError("key_padding_mask is not supported by this kernel")
        self.step_count += 1
        if (
            self.update_frequency > 1
            and (self.step_count - 1) % self.update_frequency != 0
            and self.state_memory is not None
        ):
            if self.state_memory.shape[0] == x.shape[0]:
                return self.state_memory
        out = temporal_scale_forward(x, self.kernel_args, self.num_heads)
        if self.update_frequency > 1:
            self.state_memory = jax.lax.stop_gradient(out)
        return out


if __name__ == "__main__":
    B, S, D, H = 2, 8, 32, 4
    key = jax.random.PRNGKey(0)
    kx, kp = jax.random.split(key)
    x = jax.random.normal(kx, (B, S, D), jnp.float32)

    module = TemporalScale(dim=D, num_heads=H, update_frequency=2, key=kp)

    out = module(x)                      # first step -> computes and caches
    out = jax.block_until_ready(out)

    ref = temporal_scale_reference(x, module.params, H)
    assert out.shape == (B, S, D)
    assert bool(jnp.all(jnp.isfinite(out)))
    # bf16 matmul operands (f32 accumulation) + tanh-GELU vs f32 exact-erf reference.
    assert bool(jnp.allclose(out, ref, rtol=2e-2, atol=2e-2)), "mismatch vs JAX reference"

    # second step reuses cached state_memory (update_frequency=2), exercising the glue path
    out2 = jax.block_until_ready(module(x))
    assert bool(jnp.allclose(out2, out))

    print("KERNEL_OK")
</pallas_src>

<mosaic_0001>
module attributes {stable_mosaic.version = 11 : i64} {
  func.func @temporal_scale_kernel(%arg0: i32, %arg1: i32, %arg2: memref<1x8x32xf32, #tpu.memory_space<vmem>>, %arg3: memref<1x8x32xf32, #tpu.memory_space<vmem>>, %arg4: memref<32x96xbf16, #tpu.memory_space<vmem>>, %arg5: memref<1x96xf32, #tpu.memory_space<vmem>>, %arg6: memref<32x32xbf16, #tpu.memory_space<vmem>>, %arg7: memref<1x32xf32, #tpu.memory_space<vmem>>, %arg8: memref<1x32xf32, #tpu.memory_space<vmem>>, %arg9: memref<1x32xf32, #tpu.memory_space<vmem>>, %arg10: memref<32x128xbf16, #tpu.memory_space<vmem>>, %arg11: memref<1x128xf32, #tpu.memory_space<vmem>>, %arg12: memref<128x32xbf16, #tpu.memory_space<vmem>>, %arg13: memref<1x32xf32, #tpu.memory_space<vmem>>, %arg14: memref<1x32xf32, #tpu.memory_space<vmem>>, %arg15: memref<1x32xf32, #tpu.memory_space<vmem>>, %arg16: memref<1x8x32xf32, #tpu.memory_space<vmem>>, %arg17: memref<8x32xf32, #tpu.memory_space<vmem>>) attributes {dimension_semantics = [#tpu.dimension_semantics<parallel>, #tpu.dimension_semantics<parallel>], iteration_bounds = array<i64: 2, 1>, scalar_prefetch = 0 : i64, scratch_operands = 1 : i64, tpu.core_type = #tpu.core_type<tc>, window_params = [{transform_indices = @transform_0, window_bounds = array<i64: 1, 8, 32>}, {transform_indices = @transform_1, window_bounds = array<i64: 1, 8, 32>}, {pipeline_mode = #tpu.pipeline_mode<synchronous>, transform_indices = @transform_2, window_bounds = array<i64: 32, 96>}, {pipeline_mode = #tpu.pipeline_mode<synchronous>, transform_indices = @transform_3, window_bounds = array<i64: 1, 96>}, {pipeline_mode = #tpu.pipeline_mode<synchronous>, transform_indices = @transform_4, window_bounds = array<i64: 32, 32>}, {pipeline_mode = #tpu.pipeline_mode<synchronous>, transform_indices = @transform_5, window_bounds = array<i64: 1, 32>}, {pipeline_mode = #tpu.pipeline_mode<synchronous>, transform_indices = @transform_6, window_bounds = array<i64: 1, 32>}, {pipeline_mode = #tpu.pipeline_mode<synchronous>, transform_indices = @transform_7, window_bounds = array<i64: 1, 32>}, {pipeline_mode = #tpu.pipeline_mode<synchronous>, transform_indices = @transform_8, window_bounds = array<i64: 32, 128>}, {pipeline_mode = #tpu.pipeline_mode<synchronous>, transform_indices = @transform_9, window_bounds = array<i64: 1, 128>}, {pipeline_mode = #tpu.pipeline_mode<synchronous>, transform_indices = @transform_10, window_bounds = array<i64: 128, 32>}, {pipeline_mode = #tpu.pipeline_mode<synchronous>, transform_indices = @transform_11, window_bounds = array<i64: 1, 32>}, {pipeline_mode = #tpu.pipeline_mode<synchronous>, transform_indices = @transform_12, window_bounds = array<i64: 1, 32>}, {pipeline_mode = #tpu.pipeline_mode<synchronous>, transform_indices = @transform_13, window_bounds = array<i64: 1, 32>}, {transform_indices = @transform_14, window_bounds = array<i64: 1, 8, 32>}]} {
    %c0 = arith.constant 0 : index
    %c0_0 = arith.constant 0 : index
    %c0_1 = arith.constant 0 : index
    %0 = vector.load %arg2[%c0, %c0_0, %c0_1] : memref<1x8x32xf32, #tpu.memory_space<vmem>>, vector<1x8x32xf32>
    %1 = vector.shape_cast %0 : vector<1x8x32xf32> to vector<8x32xf32>
    %c0_2 = arith.constant 0 : index
    %c0_3 = arith.constant 0 : index
    %c0_4 = arith.constant 0 : index
    %2 = vector.load %arg3[%c0_2, %c0_3, %c0_4] : memref<1x8x32xf32, #tpu.memory_space<vmem>>, vector<1x8x32xf32>
    %3 = vector.shape_cast %2 : vector<1x8x32xf32> to vector<8x32xf32>
    %4 = arith.truncf %1 : vector<8x32xf32> to vector<8x32xbf16>
    %5 = arith.truncf %3 : vector<8x32xf32> to vector<8x32xbf16>
    %c0_5 = arith.constant 0 : index
    %c0_6 = arith.constant 0 : index
    %6 = vector.load %arg4[%c0_5, %c0_6] : memref<32x96xbf16, #tpu.memory_space<vmem>>, vector<32x32xbf16>
    %cst = arith.constant dense<0.000000e+00> : vector<8x32xf32>
    %7 = tpu.matmul %4, %6, %cst {dimension_numbers = #tpu.dot_dimension_numbers<[1], [0], [0], [1], [0, 0, 1, 1], [], []>} : vector<8x32xbf16>, vector<32x32xbf16>, vector<8x32xf32> -> vector<8x32xf32>
    %c0_7 = arith.constant 0 : index
    %c0_8 = arith.constant 0 : index
    %8 = vector.load %arg5[%c0_7, %c0_8] : memref<1x96xf32, #tpu.memory_space<vmem>>, vector<1x32xf32>
    %9 = vector.broadcast %8 : vector<1x32xf32> to vector<8x32xf32>
    %10 = arith.addf %7, %9 : vector<8x32xf32>
    %11 = arith.truncf %10 : vector<8x32xf32> to vector<8x32xbf16>
    %c0_9 = arith.constant 0 : index
    %c32 = arith.constant 32 : index
    %12 = vector.load %arg4[%c0_9, %c32] : memref<32x96xbf16, #tpu.memory_space<vmem>>, vector<32x64xbf16>
    %cst_10 = arith.constant dense<0.000000e+00> : vector<8x64xf32>
    %13 = tpu.matmul %5, %12, %cst_10 {dimension_numbers = #tpu.dot_dimension_numbers<[1], [0], [0], [1], [0, 0, 1, 1], [], []>} : vector<8x32xbf16>, vector<32x64xbf16>, vector<8x64xf32> -> vector<8x64xf32>
    %c0_11 = arith.constant 0 : index
    %c32_12 = arith.constant 32 : index
    %14 = vector.load %arg5[%c0_11, %c32_12] : memref<1x96xf32, #tpu.memory_space<vmem>>, vector<1x64xf32>
    %15 = vector.broadcast %14 : vector<1x64xf32> to vector<8x64xf32>
    %16 = arith.addf %13, %15 : vector<8x64xf32>
    %17 = vector.extract_strided_slice %16 {offsets = [0, 0], sizes = [8, 32], strides = [1, 1]} : vector<8x64xf32> to vector<8x32xf32>
    %18 = arith.truncf %17 : vector<8x32xf32> to vector<8x32xbf16>
    %19 = vector.extract_strided_slice %16 {offsets = [0, 32], sizes = [8, 32], strides = [1, 1]} : vector<8x64xf32> to vector<8x32xf32>
    %20 = arith.truncf %19 : vector<8x32xf32> to vector<8x32xbf16>
    %21 = vector.extract_strided_slice %11 {offsets = [0, 0], sizes = [8, 8], strides = [1, 1]} : vector<8x32xbf16> to vector<8x8xbf16>
    %22 = vector.extract_strided_slice %18 {offsets = [0, 0], sizes = [8, 8], strides = [1, 1]} : vector<8x32xbf16> to vector<8x8xbf16>
    %cst_13 = arith.constant dense<0.000000e+00> : vector<8x8xf32>
    %23 = tpu.matmul %21, %22, %cst_13 {dimension_numbers = #tpu.dot_dimension_numbers<[1], [1], [0], [0], [0, 0, 1, 0], [], []>} : vector<8x8xbf16>, vector<8x8xbf16>, vector<8x8xf32> -> vector<8x8xf32>
    %cst_14 = arith.constant dense<0xFF800000> : vector<8xf32>
    %24 = vector.multi_reduction <maximumf>, %23, %cst_14 [1] : vector<8x8xf32> to vector<8xf32>
    %25 = vector.shape_cast %24 : vector<8xf32> to vector<8x1xf32>
    %26 = vector.broadcast %25 : vector<8x1xf32> to vector<8x8xf32>
    %27 = arith.subf %23, %26 : vector<8x8xf32>
    %28 = math.exp %27 : vector<8x8xf32>
    %cst_15 = arith.constant dense<0.000000e+00> : vector<8xf32>
    %29 = vector.multi_reduction <add>, %28, %cst_15 [1] : vector<8x8xf32> to vector<8xf32>
    %30 = vector.shape_cast %29 : vector<8xf32> to vector<8x1xf32>
    %31 = tpu.reciprocal %30 {approx = true} : vector<8x1xf32> -> vector<8x1xf32>
    %32 = arith.truncf %28 : vector<8x8xf32> to vector<8x8xbf16>
    %33 = vector.extract_strided_slice %20 {offsets = [0, 0], sizes = [8, 8], strides = [1, 1]} : vector<8x32xbf16> to vector<8x8xbf16>
    %cst_16 = arith.constant dense<0.000000e+00> : vector<8x8xf32>
    %34 = tpu.matmul %32, %33, %cst_16 {dimension_numbers = #tpu.dot_dimension_numbers<[1], [0], [0], [1], [0, 0, 1, 1], [], []>} : vector<8x8xbf16>, vector<8x8xbf16>, vector<8x8xf32> -> vector<8x8xf32>
    %35 = vector.broadcast %31 : vector<8x1xf32> to vector<8x8xf32>
    %36 = arith.mulf %34, %35 : vector<8x8xf32>
    %c0_17 = arith.constant 0 : index
    %c0_18 = arith.constant 0 : index
    %37 = vector.load %arg17[%c0_17, %c0_18] : memref<8x32xf32, #tpu.memory_space<vmem>>, vector<8x8xf32>
    tpu.vector_store %arg17[%c0_17, %c0_18], %36 {strides = array<i32>} : memref<8x32xf32, #tpu.memory_space<vmem>>, vector<8x8xf32>,
    %38 = vector.extract_strided_slice %11 {offsets = [0, 8], sizes = [8, 8], strides = [1, 1]} : vector<8x32xbf16> to vector<8x8xbf16>
    %39 = vector.extract_strided_slice %18 {offsets = [0, 8], sizes = [8, 8], strides = [1, 1]} : vector<8x32xbf16> to vector<8x8xbf16>
    %cst_19 = arith.constant dense<0.000000e+00> : vector<8x8xf32>
    %40 = tpu.matmul %38, %39, %cst_19 {dimension_numbers = #tpu.dot_dimension_numbers<[1], [1], [0], [0], [0, 0, 1, 0], [], []>} : vector<8x8xbf16>, vector<8x8xbf16>, vector<8x8xf32> -> vector<8x8xf32>
    %cst_20 = arith.constant dense<0xFF800000> : vector<8xf32>
    %41 = vector.multi_reduction <maximumf>, %40, %cst_20 [1] : vector<8x8xf32> to vector<8xf32>
    %42 = vector.shape_cast %41 : vector<8xf32> to vector<8x1xf32>
    %43 = vector.broadcast %42 : vector<8x1xf32> to vector<8x8xf32>
    %44 = arith.subf %40, %43 : vector<8x8xf32>
    %45 = math.exp %44 : vector<8x8xf32>
    %cst_21 = arith.constant dense<0.000000e+00> : vector<8xf32>
    %46 = vector.multi_reduction <add>, %45, %cst_21 [1] : vector<8x8xf32> to vector<8xf32>
    %47 = vector.shape_cast %46 : vector<8xf32> to vector<8x1xf32>
    %48 = tpu.reciprocal %47 {approx = true} : vector<8x1xf32> -> vector<8x1xf32>
    %49 = arith.truncf %45 : vector<8x8xf32> to vector<8x8xbf16>
    %50 = vector.extract_strided_slice %20 {offsets = [0, 8], sizes = [8, 8], strides = [1, 1]} : vector<8x32xbf16> to vector<8x8xbf16>
    %cst_22 = arith.constant dense<0.000000e+00> : vector<8x8xf32>
    %51 = tpu.matmul %49, %50, %cst_22 {dimension_numbers = #tpu.dot_dimension_numbers<[1], [0], [0], [1], [0, 0, 1, 1], [], []>} : vector<8x8xbf16>, vector<8x8xbf16>, vector<8x8xf32> -> vector<8x8xf32>
    %52 = vector.broadcast %48 : vector<8x1xf32> to vector<8x8xf32>
    %53 = arith.mulf %51, %52 : vector<8x8xf32>
    %c0_23 = arith.constant 0 : index
    %c8 = arith.constant 8 : index
    %54 = vector.load %arg17[%c0_23, %c8] : memref<8x32xf32, #tpu.memory_space<vmem>>, vector<8x8xf32>
    tpu.vector_store %arg17[%c0_23, %c8], %53 {strides = array<i32>} : memref<8x32xf32, #tpu.memory_space<vmem>>, vector<8x8xf32>,
    %55 = vector.extract_strided_slice %11 {offsets = [0, 16], sizes = [8, 8], strides = [1, 1]} : vector<8x32xbf16> to vector<8x8xbf16>
    %56 = vector.extract_strided_slice %18 {offsets = [0, 16], sizes = [8, 8], strides = [1, 1]} : vector<8x32xbf16> to vector<8x8xbf16>
    %cst_24 = arith.constant dense<0.000000e+00> : vector<8x8xf32>
    %57 = tpu.matmul %55, %56, %cst_24 {dimension_numbers = #tpu.dot_dimension_numbers<[1], [1], [0], [0], [0, 0, 1, 0], [], []>} : vector<8x8xbf16>, vector<8x8xbf16>, vector<8x8xf32> -> vector<8x8xf32>
    %cst_25 = arith.constant dense<0xFF800000> : vector<8xf32>
    %58 = vector.multi_reduction <maximumf>, %57, %cst_25 [1] : vector<8x8xf32> to vector<8xf32>
    %59 = vector.shape_cast %58 : vector<8xf32> to vector<8x1xf32>
    %60 = vector.broadcast %59 : vector<8x1xf32> to vector<8x8xf32>
    %61 = arith.subf %57, %60 : vector<8x8xf32>
    %62 = math.exp %61 : vector<8x8xf32>
    %cst_26 = arith.constant dense<0.000000e+00> : vector<8xf32>
    %63 = vector.multi_reduction <add>, %62, %cst_26 [1] : vector<8x8xf32> to vector<8xf32>
    %64 = vector.shape_cast %63 : vector<8xf32> to vector<8x1xf32>
    %65 = tpu.reciprocal %64 {approx = true} : vector<8x1xf32> -> vector<8x1xf32>
    %66 = arith.truncf %62 : vector<8x8xf32> to vector<8x8xbf16>
    %67 = vector.extract_strided_slice %20 {offsets = [0, 16], sizes = [8, 8], strides = [1, 1]} : vector<8x32xbf16> to vector<8x8xbf16>
    %cst_27 = arith.constant dense<0.000000e+00> : vector<8x8xf32>
    %68 = tpu.matmul %66, %67, %cst_27 {dimension_numbers = #tpu.dot_dimension_numbers<[1], [0], [0], [1], [0, 0, 1, 1], [], []>} : vector<8x8xbf16>, vector<8x8xbf16>, vector<8x8xf32> -> vector<8x8xf32>
    %69 = vector.broadcast %65 : vector<8x1xf32> to vector<8x8xf32>
    %70 = arith.mulf %68, %69 : vector<8x8xf32>
    %c0_28 = arith.constant 0 : index
    %c16 = arith.constant 16 : index
    %71 = vector.load %arg17[%c0_28, %c16] : memref<8x32xf32, #tpu.memory_space<vmem>>, vector<8x8xf32>
    tpu.vector_store %arg17[%c0_28, %c16], %70 {strides = array<i32>} : memref<8x32xf32, #tpu.memory_space<vmem>>, vector<8x8xf32>,
    %72 = vector.extract_strided_slice %11 {offsets = [0, 24], sizes = [8, 8], strides = [1, 1]} : vector<8x32xbf16> to vector<8x8xbf16>
    %73 = vector.extract_strided_slice %18 {offsets = [0, 24], sizes = [8, 8], strides = [1, 1]} : vector<8x32xbf16> to vector<8x8xbf16>
    %cst_29 = arith.constant dense<0.000000e+00> : vector<8x8xf32>
    %74 = tpu.matmul %72, %73, %cst_29 {dimension_numbers = #tpu.dot_dimension_numbers<[1], [1], [0], [0], [0, 0, 1, 0], [], []>} : vector<8x8xbf16>, vector<8x8xbf16>, vector<8x8xf32> -> vector<8x8xf32>
    %cst_30 = arith.constant dense<0xFF800000> : vector<8xf32>
    %75 = vector.multi_reduction <maximumf>, %74, %cst_30 [1] : vector<8x8xf32> to vector<8xf32>
    %76 = vector.shape_cast %75 : vector<8xf32> to vector<8x1xf32>
    %77 = vector.broadcast %76 : vector<8x1xf32> to vector<8x8xf32>
    %78 = arith.subf %74, %77 : vector<8x8xf32>
    %79 = math.exp %78 : vector<8x8xf32>
    %cst_31 = arith.constant dense<0.000000e+00> : vector<8xf32>
    %80 = vector.multi_reduction <add>, %79, %cst_31 [1] : vector<8x8xf32> to vector<8xf32>
    %81 = vector.shape_cast %80 : vector<8xf32> to vector<8x1xf32>
    %82 = tpu.reciprocal %81 {approx = true} : vector<8x1xf32> -> vector<8x1xf32>
    %83 = arith.truncf %79 : vector<8x8xf32> to vector<8x8xbf16>
    %84 = vector.extract_strided_slice %20 {offsets = [0, 24], sizes = [8, 8], strides = [1, 1]} : vector<8x32xbf16> to vector<8x8xbf16>
    %cst_32 = arith.constant dense<0.000000e+00> : vector<8x8xf32>
    %85 = tpu.matmul %83, %84, %cst_32 {dimension_numbers = #tpu.dot_dimension_numbers<[1], [0], [0], [1], [0, 0, 1, 1], [], []>} : vector<8x8xbf16>, vector<8x8xbf16>, vector<8x8xf32> -> vector<8x8xf32>
    %86 = vector.broadcast %82 : vector<8x1xf32> to vector<8x8xf32>
    %87 = arith.mulf %85, %86 : vector<8x8xf32>
    %c0_33 = arith.constant 0 : index
    %c24 = arith.constant 24 : index
    %88 = vector.load %arg17[%c0_33, %c24] : memref<8x32xf32, #tpu.memory_space<vmem>>, vector<8x8xf32>
    tpu.vector_store %arg17[%c0_33, %c24], %87 {strides = array<i32>} : memref<8x32xf32, #tpu.memory_space<vmem>>, vector<8x8xf32>,
    %c0_34 = arith.constant 0 : index
    %c0_35 = arith.constant 0 : index
    %89 = vector.load %arg17[%c0_34, %c0_35] : memref<8x32xf32, #tpu.memory_space<vmem>>, vector<8x32xf32>
    %90 = arith.truncf %89 : vector<8x32xf32> to vector<8x32xbf16>
    %c0_36 = arith.constant 0 : index
    %c0_37 = arith.constant 0 : index
    %91 = vector.load %arg6[%c0_36, %c0_37] : memref<32x32xbf16, #tpu.memory_space<vmem>>, vector<32x32xbf16>
    %cst_38 = arith.constant dense<0.000000e+00> : vector<8x32xf32>
    %92 = tpu.matmul %90, %91, %cst_38 {dimension_numbers = #tpu.dot_dimension_numbers<[1], [0], [0], [1], [0, 0, 1, 1], [], []>} : vector<8x32xbf16>, vector<32x32xbf16>, vector<8x32xf32> -> vector<8x32xf32>
    %c0_39 = arith.constant 0 : index
    %c0_40 = arith.constant 0 : index
    %93 = vector.load %arg7[%c0_39, %c0_40] : memref<1x32xf32, #tpu.memory_space<vmem>>, vector<1x32xf32>
    %94 = vector.broadcast %93 : vector<1x32xf32> to vector<8x32xf32>
    %95 = arith.addf %92, %94 : vector<8x32xf32>
    %96 = arith.addf %1, %95 : vector<8x32xf32>
    %c0_41 = arith.constant 0 : index
    %c0_42 = arith.constant 0 : index
    %97 = vector.load %arg8[%c0_41, %c0_42] : memref<1x32xf32, #tpu.memory_space<vmem>>, vector<1x32xf32>
    %c0_43 = arith.constant 0 : index
    %c0_44 = arith.constant 0 : index
    %98 = vector.load %arg9[%c0_43, %c0_44] : memref<1x32xf32, #tpu.memory_space<vmem>>, vector<1x32xf32>
    %cst_45 = arith.constant dense<0.000000e+00> : vector<8xf32>
    %99 = vector.multi_reduction <add>, %96, %cst_45 [1] : vector<8x32xf32> to vector<8xf32>
    %100 = vector.shape_cast %99 : vector<8xf32> to vector<8x1xf32>
    %cst_46 = arith.constant 3.200000e+01 : f32
    %101 = vector.broadcast %cst_46 : f32 to vector<8x1xf32>
    %102 = arith.divf %100, %101 : vector<8x1xf32>
    %103 = vector.broadcast %102 : vector<8x1xf32> to vector<8x32xf32>
    %104 = arith.subf %96, %103 : vector<8x32xf32>
    %105 = arith.mulf %104, %104 : vector<8x32xf32>
    %cst_47 = arith.constant dense<0.000000e+00> : vector<8xf32>
    %106 = vector.multi_reduction <add>, %105, %cst_47 [1] : vector<8x32xf32> to vector<8xf32>
    %107 = vector.shape_cast %106 : vector<8xf32> to vector<8x1xf32>
    %cst_48 = arith.constant 3.200000e+01 : f32
    %108 = vector.broadcast %cst_48 : f32 to vector<8x1xf32>
    %109 = arith.divf %107, %108 : vector<8x1xf32>
    %110 = vector.broadcast %102 : vector<8x1xf32> to vector<8x32xf32>
    %111 = arith.subf %96, %110 : vector<8x32xf32>
    %cst_49 = arith.constant 9.99999974E-6 : f32
    %112 = vector.broadcast %cst_49 : f32 to vector<8x1xf32>
    %113 = arith.addf %109, %112 : vector<8x1xf32>
    %114 = math.rsqrt %113 : vector<8x1xf32>
    %115 = vector.broadcast %114 : vector<8x1xf32> to vector<8x32xf32>
    %116 = arith.mulf %111, %115 : vector<8x32xf32>
    %117 = vector.broadcast %97 : vector<1x32xf32> to vector<8x32xf32>
    %118 = arith.mulf %116, %117 : vector<8x32xf32>
    %119 = vector.broadcast %98 : vector<1x32xf32> to vector<8x32xf32>
    %120 = arith.addf %118, %119 : vector<8x32xf32>
    %121 = arith.truncf %120 : vector<8x32xf32> to vector<8x32xbf16>
    %c0_50 = arith.constant 0 : index
    %c0_51 = arith.constant 0 : index
    %122 = vector.load %arg10[%c0_50, %c0_51] : memref<32x128xbf16, #tpu.memory_space<vmem>>, vector<32x128xbf16>
    %cst_52 = arith.constant dense<0.000000e+00> : vector<8x128xf32>
    %123 = tpu.matmul %121, %122, %cst_52 {dimension_numbers = #tpu.dot_dimension_numbers<[1], [0], [0], [1], [0, 0, 1, 1], [], []>} : vector<8x32xbf16>, vector<32x128xbf16>, vector<8x128xf32> -> vector<8x128xf32>
    %c0_53 = arith.constant 0 : index
    %c0_54 = arith.constant 0 : index
    %124 = vector.load %arg11[%c0_53, %c0_54] : memref<1x128xf32, #tpu.memory_space<vmem>>, vector<1x128xf32>
    %125 = vector.broadcast %124 : vector<1x128xf32> to vector<8x128xf32>
    %126 = arith.addf %123, %125 : vector<8x128xf32>
    %cst_55 = arith.constant 5.000000e-01 : f32
    %127 = vector.broadcast %cst_55 : f32 to vector<8x128xf32>
    %128 = arith.mulf %127, %126 : vector<8x128xf32>
    %cst_56 = arith.constant 4.471500e-02 : f32
    %129 = vector.broadcast %cst_56 : f32 to vector<8x128xf32>
    %130 = arith.mulf %129, %126 : vector<8x128xf32>
    %131 = arith.mulf %130, %126 : vector<8x128xf32>
    %132 = arith.mulf %131, %126 : vector<8x128xf32>
    %133 = arith.addf %126, %132 : vector<8x128xf32>
    %cst_57 = arith.constant 0.797884583 : f32
    %134 = vector.broadcast %cst_57 : f32 to vector<8x128xf32>
    %135 = arith.mulf %134, %133 : vector<8x128xf32>
    %136 = math.tanh %135 : vector<8x128xf32>
    %cst_58 = arith.constant 1.000000e+00 : f32
    %137 = vector.broadcast %cst_58 : f32 to vector<8x128xf32>
    %138 = arith.addf %137, %136 : vector<8x128xf32>
    %139 = arith.mulf %128, %138 : vector<8x128xf32>
    %140 = arith.truncf %139 : vector<8x128xf32> to vector<8x128xbf16>
    %c0_59 = arith.constant 0 : index
    %c0_60 = arith.constant 0 : index
    %141 = vector.load %arg12[%c0_59, %c0_60] : memref<128x32xbf16, #tpu.memory_space<vmem>>, vector<128x32xbf16>
    %cst_61 = arith.constant dense<0.000000e+00> : vector<8x32xf32>
    %142 = tpu.matmul %140, %141, %cst_61 {dimension_numbers = #tpu.dot_dimension_numbers<[1], [0], [0], [1], [0, 0, 1, 1], [], []>} : vector<8x128xbf16>, vector<128x32xbf16>, vector<8x32xf32> -> vector<8x32xf32>
    %c0_62 = arith.constant 0 : index
    %c0_63 = arith.constant 0 : index
    %143 = vector.load %arg13[%c0_62, %c0_63] : memref<1x32xf32, #tpu.memory_space<vmem>>, vector<1x32xf32>
    %144 = vector.broadcast %143 : vector<1x32xf32> to vector<8x32xf32>
    %145 = arith.addf %142, %144 : vector<8x32xf32>
    %146 = arith.addf %120, %145 : vector<8x32xf32>
    %c0_64 = arith.constant 0 : index
    %c0_65 = arith.constant 0 : index
    %147 = vector.load %arg14[%c0_64, %c0_65] : memref<1x32xf32, #tpu.memory_space<vmem>>, vector<1x32xf32>
    %c0_66 = arith.constant 0 : index
    %c0_67 = arith.constant 0 : index
    %148 = vector.load %arg15[%c0_66, %c0_67] : memref<1x32xf32, #tpu.memory_space<vmem>>, vector<1x32xf32>
    %cst_68 = arith.constant dense<0.000000e+00> : vector<8xf32>
    %149 = vector.multi_reduction <add>, %146, %cst_68 [1] : vector<8x32xf32> to vector<8xf32>
    %150 = vector.shape_cast %149 : vector<8xf32> to vector<8x1xf32>
    %cst_69 = arith.constant 3.200000e+01 : f32
    %151 = vector.broadcast %cst_69 : f32 to vector<8x1xf32>
    %152 = arith.divf %150, %151 : vector<8x1xf32>
    %153 = vector.broadcast %152 : vector<8x1xf32> to vector<8x32xf32>
    %154 = arith.subf %146, %153 : vector<8x32xf32>
    %155 = arith.mulf %154, %154 : vector<8x32xf32>
    %cst_70 = arith.constant dense<0.000000e+00> : vector<8xf32>
    %156 = vector.multi_reduction <add>, %155, %cst_70 [1] : vector<8x32xf32> to vector<8xf32>
    %157 = vector.shape_cast %156 : vector<8xf32> to vector<8x1xf32>
    %cst_71 = arith.constant 3.200000e+01 : f32
    %158 = vector.broadcast %cst_71 : f32 to vector<8x1xf32>
    %159 = arith.divf %157, %158 : vector<8x1xf32>
    %160 = vector.broadcast %152 : vector<8x1xf32> to vector<8x32xf32>
    %161 = arith.subf %146, %160 : vector<8x32xf32>
    %cst_72 = arith.constant 9.99999974E-6 : f32
    %162 = vector.broadcast %cst_72 : f32 to vector<8x1xf32>
    %163 = arith.addf %159, %162 : vector<8x1xf32>
    %164 = math.rsqrt %163 : vector<8x1xf32>
    %165 = vector.broadcast %164 : vector<8x1xf32> to vector<8x32xf32>
    %166 = arith.mulf %161, %165 : vector<8x32xf32>
    %167 = vector.broadcast %147 : vector<1x32xf32> to vector<8x32xf32>
    %168 = arith.mulf %166, %167 : vector<8x32xf32>
    %169 = vector.broadcast %148 : vector<1x32xf32> to vector<8x32xf32>
    %170 = arith.addf %168, %169 : vector<8x32xf32>
    %c0_73 = arith.constant 0 : index
    %c0_74 = arith.constant 0 : index
    %c0_75 = arith.constant 0 : index
    %171 = vector.load %arg16[%c0_73, %c0_74, %c0_75] : memref<1x8x32xf32, #tpu.memory_space<vmem>>, vector<1x8x32xf32>
    %172 = vector.shape_cast %171 : vector<1x8x32xf32> to vector<8x32xf32>
    %173 = vector.shape_cast %170 : vector<8x32xf32> to vector<1x8x32xf32>
    tpu.vector_store %arg16[%c0_73, %c0_74, %c0_75], %173 {strides = array<i32>} : memref<1x8x32xf32, #tpu.memory_space<vmem>>, vector<1x8x32xf32>,
    return
  }
  func.func @transform_0(%arg0: i32, %arg1: i32) -> (i32, i32, i32) {
    %c0_i32 = arith.constant 0 : i32
    %c0_i32_0 = arith.constant 0 : i32
    return %arg0, %arg1, %c0_i32 : i32, i32, i32
  }
  func.func @transform_1(%arg0: i32, %arg1: i32) -> (i32, i32, i32) {
    %c0_i32 = arith.constant 0 : i32
    %c0_i32_0 = arith.constant 0 : i32
    %c0_i32_1 = arith.constant 0 : i32
    return %arg0, %c0_i32, %c0_i32_0 : i32, i32, i32
  }
  func.func @transform_2(%arg0: i32, %arg1: i32) -> (i32, i32) {
    %c0_i32 = arith.constant 0 : i32
    %c0_i32_0 = arith.constant 0 : i32
    %c0_i32_1 = arith.constant 0 : i32
    return %c0_i32, %c0_i32_0 : i32, i32
  }
  func.func @transform_3(%arg0: i32, %arg1: i32) -> (i32, i32) {
    %c0_i32 = arith.constant 0 : i32
    %c0_i32_0 = arith.constant 0 : i32
    %c0_i32_1 = arith.constant 0 : i32
    return %c0_i32, %c0_i32_0 : i32, i32
  }
  func.func @transform_4(%arg0: i32, %arg1: i32) -> (i32, i32) {
    %c0_i32 = arith.constant 0 : i32
    %c0_i32_0 = arith.constant 0 : i32
    %c0_i32_1 = arith.constant 0 : i32
    return %c0_i32, %c0_i32_0 : i32, i32
  }
  func.func @transform_5(%arg0: i32, %arg1: i32) -> (i32, i32) {
    %c0_i32 = arith.constant 0 : i32
    %c0_i32_0 = arith.constant 0 : i32
    %c0_i32_1 = arith.constant 0 : i32
    return %c0_i32, %c0_i32_0 : i32, i32
  }
  func.func @transform_6(%arg0: i32, %arg1: i32) -> (i32, i32) {
    %c0_i32 = arith.constant 0 : i32
    %c0_i32_0 = arith.constant 0 : i32
    %c0_i32_1 = arith.constant 0 : i32
    return %c0_i32, %c0_i32_0 : i32, i32
  }
  func.func @transform_7(%arg0: i32, %arg1: i32) -> (i32, i32) {
    %c0_i32 = arith.constant 0 : i32
    %c0_i32_0 = arith.constant 0 : i32
    %c0_i32_1 = arith.constant 0 : i32
    return %c0_i32, %c0_i32_0 : i32, i32
  }
  func.func @transform_8(%arg0: i32, %arg1: i32) -> (i32, i32) {
    %c0_i32 = arith.constant 0 : i32
    %c0_i32_0 = arith.constant 0 : i32
    %c0_i32_1 = arith.constant 0 : i32
    return %c0_i32, %c0_i32_0 : i32, i32
  }
  func.func @transform_9(%arg0: i32, %arg1: i32) -> (i32, i32) {
    %c0_i32 = arith.constant 0 : i32
    %c0_i32_0 = arith.constant 0 : i32
    %c0_i32_1 = arith.constant 0 : i32
    return %c0_i32, %c0_i32_0 : i32, i32
  }
  func.func @transform_10(%arg0: i32, %arg1: i32) -> (i32, i32) {
    %c0_i32 = arith.constant 0 : i32
    %c0_i32_0 = arith.constant 0 : i32
    %c0_i32_1 = arith.constant 0 : i32
    return %c0_i32, %c0_i32_0 : i32, i32
  }
  func.func @transform_11(%arg0: i32, %arg1: i32) -> (i32, i32) {
    %c0_i32 = arith.constant 0 : i32
    %c0_i32_0 = arith.constant 0 : i32
    %c0_i32_1 = arith.constant 0 : i32
    return %c0_i32, %c0_i32_0 : i32, i32
  }
  func.func @transform_12(%arg0: i32, %arg1: i32) -> (i32, i32) {
    %c0_i32 = arith.constant 0 : i32
    %c0_i32_0 = arith.constant 0 : i32
    %c0_i32_1 = arith.constant 0 : i32
    return %c0_i32, %c0_i32_0 : i32, i32
  }
  func.func @transform_13(%arg0: i32, %arg1: i32) -> (i32, i32) {
    %c0_i32 = arith.constant 0 : i32
    %c0_i32_0 = arith.constant 0 : i32
    %c0_i32_1 = arith.constant 0 : i32
    return %c0_i32, %c0_i32_0 : i32, i32
  }
  func.func @transform_14(%arg0: i32, %arg1: i32) -> (i32, i32, i32) {
    %c0_i32 = arith.constant 0 : i32
    %c0_i32_0 = arith.constant 0 : i32
    return %arg0, %arg1, %c0_i32 : i32, i32, i32
  }
}

module attributes {stable_mosaic.version = 11 : i64} {
  func.func @temporal_scale_kernel(%arg0: i32, %arg1: i32, %arg2: memref<1x8x32xf32, #tpu.memory_space<vmem>>, %arg3: memref<1x8x32xf32, #tpu.memory_space<vmem>>, %arg4: memref<32x96xbf16, #tpu.memory_space<vmem>>, %arg5: memref<1x96xf32, #tpu.memory_space<vmem>>, %arg6: memref<32x32xbf16, #tpu.memory_space<vmem>>, %arg7: memref<1x32xf32, #tpu.memory_space<vmem>>, %arg8: memref<1x32xf32, #tpu.memory_space<vmem>>, %arg9: memref<1x32xf32, #tpu.memory_space<vmem>>, %arg10: memref<32x128xbf16, #tpu.memory_space<vmem>>, %arg11: memref<1x128xf32, #tpu.memory_space<vmem>>, %arg12: memref<128x32xbf16, #tpu.memory_space<vmem>>, %arg13: memref<1x32xf32, #tpu.memory_space<vmem>>, %arg14: memref<1x32xf32, #tpu.memory_space<vmem>>, %arg15: memref<1x32xf32, #tpu.memory_space<vmem>>, %arg16: memref<1x8x32xf32, #tpu.memory_space<vmem>>, %arg17: memref<8x32xf32, #tpu.memory_space<vmem>>) attributes {dimension_semantics = [#tpu.dimension_semantics<parallel>, #tpu.dimension_semantics<parallel>], iteration_bounds = array<i64: 2, 1>, scalar_prefetch = 0 : i64, scratch_operands = 1 : i64, tpu.core_type = #tpu.core_type<tc>, window_params = [{transform_indices = @transform_0, window_bounds = array<i64: 1, 8, 32>}, {transform_indices = @transform_1, window_bounds = array<i64: 1, 8, 32>}, {pipeline_mode = #tpu.pipeline_mode<synchronous>, transform_indices = @transform_2, window_bounds = array<i64: 32, 96>}, {pipeline_mode = #tpu.pipeline_mode<synchronous>, transform_indices = @transform_3, window_bounds = array<i64: 1, 96>}, {pipeline_mode = #tpu.pipeline_mode<synchronous>, transform_indices = @transform_4, window_bounds = array<i64: 32, 32>}, {pipeline_mode = #tpu.pipeline_mode<synchronous>, transform_indices = @transform_5, window_bounds = array<i64: 1, 32>}, {pipeline_mode = #tpu.pipeline_mode<synchronous>, transform_indices = @transform_6, window_bounds = array<i64: 1, 32>}, {pipeline_mode = #tpu.pipeline_mode<synchronous>, transform_indices = @transform_7, window_bounds = array<i64: 1, 32>}, {pipeline_mode = #tpu.pipeline_mode<synchronous>, transform_indices = @transform_8, window_bounds = array<i64: 32, 128>}, {pipeline_mode = #tpu.pipeline_mode<synchronous>, transform_indices = @transform_9, window_bounds = array<i64: 1, 128>}, {pipeline_mode = #tpu.pipeline_mode<synchronous>, transform_indices = @transform_10, window_bounds = array<i64: 128, 32>}, {pipeline_mode = #tpu.pipeline_mode<synchronous>, transform_indices = @transform_11, window_bounds = array<i64: 1, 32>}, {pipeline_mode = #tpu.pipeline_mode<synchronous>, transform_indices = @transform_12, window_bounds = array<i64: 1, 32>}, {pipeline_mode = #tpu.pipeline_mode<synchronous>, transform_indices = @transform_13, window_bounds = array<i64: 1, 32>}, {transform_indices = @transform_14, window_bounds = array<i64: 1, 8, 32>}]} {
    %c0 = arith.constant 0 : index
    %c0_0 = arith.constant 0 : index
    %c0_1 = arith.constant 0 : index
    %0 = vector.load %arg2[%c0, %c0_0, %c0_1] : memref<1x8x32xf32, #tpu.memory_space<vmem>>, vector<1x8x32xf32>
    %1 = vector.shape_cast %0 : vector<1x8x32xf32> to vector<8x32xf32>
    %c0_2 = arith.constant 0 : index
    %c0_3 = arith.constant 0 : index
    %c0_4 = arith.constant 0 : index
    %2 = vector.load %arg3[%c0_2, %c0_3, %c0_4] : memref<1x8x32xf32, #tpu.memory_space<vmem>>, vector<1x8x32xf32>
    %3 = vector.shape_cast %2 : vector<1x8x32xf32> to vector<8x32xf32>
    %4 = arith.truncf %1 : vector<8x32xf32> to vector<8x32xbf16>
    %5 = arith.truncf %3 : vector<8x32xf32> to vector<8x32xbf16>
    %c0_5 = arith.constant 0 : index
    %c0_6 = arith.constant 0 : index
    %6 = vector.load %arg4[%c0_5, %c0_6] : memref<32x96xbf16, #tpu.memory_space<vmem>>, vector<32x32xbf16>
    %cst = arith.constant dense<0.000000e+00> : vector<8x32xf32>
    %7 = tpu.matmul %4, %6, %cst {dimension_numbers = #tpu.dot_dimension_numbers<[1], [0], [0], [1], [0, 0, 1, 1], [], []>} : vector<8x32xbf16>, vector<32x32xbf16>, vector<8x32xf32> -> vector<8x32xf32>
    %c0_7 = arith.constant 0 : index
    %c0_8 = arith.constant 0 : index
    %8 = vector.load %arg5[%c0_7, %c0_8] : memref<1x96xf32, #tpu.memory_space<vmem>>, vector<1x32xf32>
    %9 = vector.broadcast %8 : vector<1x32xf32> to vector<8x32xf32>
    %10 = arith.addf %7, %9 : vector<8x32xf32>
    %11 = arith.truncf %10 : vector<8x32xf32> to vector<8x32xbf16>
    %c0_9 = arith.constant 0 : index
    %c32 = arith.constant 32 : index
    %12 = vector.load %arg4[%c0_9, %c32] : memref<32x96xbf16, #tpu.memory_space<vmem>>, vector<32x64xbf16>
    %cst_10 = arith.constant dense<0.000000e+00> : vector<8x64xf32>
    %13 = tpu.matmul %5, %12, %cst_10 {dimension_numbers = #tpu.dot_dimension_numbers<[1], [0], [0], [1], [0, 0, 1, 1], [], []>} : vector<8x32xbf16>, vector<32x64xbf16>, vector<8x64xf32> -> vector<8x64xf32>
    %c0_11 = arith.constant 0 : index
    %c32_12 = arith.constant 32 : index
    %14 = vector.load %arg5[%c0_11, %c32_12] : memref<1x96xf32, #tpu.memory_space<vmem>>, vector<1x64xf32>
    %15 = vector.broadcast %14 : vector<1x64xf32> to vector<8x64xf32>
    %16 = arith.addf %13, %15 : vector<8x64xf32>
    %17 = vector.extract_strided_slice %16 {offsets = [0, 0], sizes = [8, 32], strides = [1, 1]} : vector<8x64xf32> to vector<8x32xf32>
    %18 = arith.truncf %17 : vector<8x32xf32> to vector<8x32xbf16>
    %19 = vector.extract_strided_slice %16 {offsets = [0, 32], sizes = [8, 32], strides = [1, 1]} : vector<8x64xf32> to vector<8x32xf32>
    %20 = arith.truncf %19 : vector<8x32xf32> to vector<8x32xbf16>
    %21 = vector.extract_strided_slice %11 {offsets = [0, 0], sizes = [8, 8], strides = [1, 1]} : vector<8x32xbf16> to vector<8x8xbf16>
    %22 = vector.extract_strided_slice %18 {offsets = [0, 0], sizes = [8, 8], strides = [1, 1]} : vector<8x32xbf16> to vector<8x8xbf16>
    %cst_13 = arith.constant dense<0.000000e+00> : vector<8x8xf32>
    %23 = tpu.matmul %21, %22, %cst_13 {dimension_numbers = #tpu.dot_dimension_numbers<[1], [1], [0], [0], [0, 0, 1, 0], [], []>} : vector<8x8xbf16>, vector<8x8xbf16>, vector<8x8xf32> -> vector<8x8xf32>
    %cst_14 = arith.constant dense<0xFF800000> : vector<8xf32>
    %24 = vector.multi_reduction <maximumf>, %23, %cst_14 [1] : vector<8x8xf32> to vector<8xf32>
    %25 = vector.shape_cast %24 : vector<8xf32> to vector<8x1xf32>
    %26 = vector.broadcast %25 : vector<8x1xf32> to vector<8x8xf32>
    %27 = arith.subf %23, %26 : vector<8x8xf32>
    %28 = math.exp %27 : vector<8x8xf32>
    %cst_15 = arith.constant dense<0.000000e+00> : vector<8xf32>
    %29 = vector.multi_reduction <add>, %28, %cst_15 [1] : vector<8x8xf32> to vector<8xf32>
    %30 = vector.shape_cast %29 : vector<8xf32> to vector<8x1xf32>
    %31 = tpu.reciprocal %30 {approx = true} : vector<8x1xf32> -> vector<8x1xf32>
    %32 = arith.truncf %28 : vector<8x8xf32> to vector<8x8xbf16>
    %33 = vector.extract_strided_slice %20 {offsets = [0, 0], sizes = [8, 8], strides = [1, 1]} : vector<8x32xbf16> to vector<8x8xbf16>
    %cst_16 = arith.constant dense<0.000000e+00> : vector<8x8xf32>
    %34 = tpu.matmul %32, %33, %cst_16 {dimension_numbers = #tpu.dot_dimension_numbers<[1], [0], [0], [1], [0, 0, 1, 1], [], []>} : vector<8x8xbf16>, vector<8x8xbf16>, vector<8x8xf32> -> vector<8x8xf32>
    %35 = vector.broadcast %31 : vector<8x1xf32> to vector<8x8xf32>
    %36 = arith.mulf %34, %35 : vector<8x8xf32>
    %c0_17 = arith.constant 0 : index
    %c0_18 = arith.constant 0 : index
    %37 = vector.load %arg17[%c0_17, %c0_18] : memref<8x32xf32, #tpu.memory_space<vmem>>, vector<8x8xf32>
    tpu.vector_store %arg17[%c0_17, %c0_18], %36 {strides = array<i32>} : memref<8x32xf32, #tpu.memory_space<vmem>>, vector<8x8xf32>,
    %38 = vector.extract_strided_slice %11 {offsets = [0, 8], sizes = [8, 8], strides = [1, 1]} : vector<8x32xbf16> to vector<8x8xbf16>
    %39 = vector.extract_strided_slice %18 {offsets = [0, 8], sizes = [8, 8], strides = [1, 1]} : vector<8x32xbf16> to vector<8x8xbf16>
    %cst_19 = arith.constant dense<0.000000e+00> : vector<8x8xf32>
    %40 = tpu.matmul %38, %39, %cst_19 {dimension_numbers = #tpu.dot_dimension_numbers<[1], [1], [0], [0], [0, 0, 1, 0], [], []>} : vector<8x8xbf16>, vector<8x8xbf16>, vector<8x8xf32> -> vector<8x8xf32>
    %cst_20 = arith.constant dense<0xFF800000> : vector<8xf32>
    %41 = vector.multi_reduction <maximumf>, %40, %cst_20 [1] : vector<8x8xf32> to vector<8xf32>
    %42 = vector.shape_cast %41 : vector<8xf32> to vector<8x1xf32>
    %43 = vector.broadcast %42 : vector<8x1xf32> to vector<8x8xf32>
    %44 = arith.subf %40, %43 : vector<8x8xf32>
    %45 = math.exp %44 : vector<8x8xf32>
    %cst_21 = arith.constant dense<0.000000e+00> : vector<8xf32>
    %46 = vector.multi_reduction <add>, %45, %cst_21 [1] : vector<8x8xf32> to vector<8xf32>
    %47 = vector.shape_cast %46 : vector<8xf32> to vector<8x1xf32>
    %48 = tpu.reciprocal %47 {approx = true} : vector<8x1xf32> -> vector<8x1xf32>
    %49 = arith.truncf %45 : vector<8x8xf32> to vector<8x8xbf16>
    %50 = vector.extract_strided_slice %20 {offsets = [0, 8], sizes = [8, 8], strides = [1, 1]} : vector<8x32xbf16> to vector<8x8xbf16>
    %cst_22 = arith.constant dense<0.000000e+00> : vector<8x8xf32>
    %51 = tpu.matmul %49, %50, %cst_22 {dimension_numbers = #tpu.dot_dimension_numbers<[1], [0], [0], [1], [0, 0, 1, 1], [], []>} : vector<8x8xbf16>, vector<8x8xbf16>, vector<8x8xf32> -> vector<8x8xf32>
    %52 = vector.broadcast %48 : vector<8x1xf32> to vector<8x8xf32>
    %53 = arith.mulf %51, %52 : vector<8x8xf32>
    %c0_23 = arith.constant 0 : index
    %c8 = arith.constant 8 : index
    %54 = vector.load %arg17[%c0_23, %c8] : memref<8x32xf32, #tpu.memory_space<vmem>>, vector<8x8xf32>
    tpu.vector_store %arg17[%c0_23, %c8], %53 {strides = array<i32>} : memref<8x32xf32, #tpu.memory_space<vmem>>, vector<8x8xf32>,
    %55 = vector.extract_strided_slice %11 {offsets = [0, 16], sizes = [8, 8], strides = [1, 1]} : vector<8x32xbf16> to vector<8x8xbf16>
    %56 = vector.extract_strided_slice %18 {offsets = [0, 16], sizes = [8, 8], strides = [1, 1]} : vector<8x32xbf16> to vector<8x8xbf16>
    %cst_24 = arith.constant dense<0.000000e+00> : vector<8x8xf32>
    %57 = tpu.matmul %55, %56, %cst_24 {dimension_numbers = #tpu.dot_dimension_numbers<[1], [1], [0], [0], [0, 0, 1, 0], [], []>} : vector<8x8xbf16>, vector<8x8xbf16>, vector<8x8xf32> -> vector<8x8xf32>
    %cst_25 = arith.constant dense<0xFF800000> : vector<8xf32>
    %58 = vector.multi_reduction <maximumf>, %57, %cst_25 [1] : vector<8x8xf32> to vector<8xf32>
    %59 = vector.shape_cast %58 : vector<8xf32> to vector<8x1xf32>
    %60 = vector.broadcast %59 : vector<8x1xf32> to vector<8x8xf32>
    %61 = arith.subf %57, %60 : vector<8x8xf32>
    %62 = math.exp %61 : vector<8x8xf32>
    %cst_26 = arith.constant dense<0.000000e+00> : vector<8xf32>
    %63 = vector.multi_reduction <add>, %62, %cst_26 [1] : vector<8x8xf32> to vector<8xf32>
    %64 = vector.shape_cast %63 : vector<8xf32> to vector<8x1xf32>
    %65 = tpu.reciprocal %64 {approx = true} : vector<8x1xf32> -> vector<8x1xf32>
    %66 = arith.truncf %62 : vector<8x8xf32> to vector<8x8xbf16>
    %67 = vector.extract_strided_slice %20 {offsets = [0, 16], sizes = [8, 8], strides = [1, 1]} : vector<8x32xbf16> to vector<8x8xbf16>
    %cst_27 = arith.constant dense<0.000000e+00> : vector<8x8xf32>
    %68 = tpu.matmul %66, %67, %cst_27 {dimension_numbers = #tpu.dot_dimension_numbers<[1], [0], [0], [1], [0, 0, 1, 1], [], []>} : vector<8x8xbf16>, vector<8x8xbf16>, vector<8x8xf32> -> vector<8x8xf32>
    %69 = vector.broadcast %65 : vector<8x1xf32> to vector<8x8xf32>
    %70 = arith.mulf %68, %69 : vector<8x8xf32>
    %c0_28 = arith.constant 0 : index
    %c16 = arith.constant 16 : index
    %71 = vector.load %arg17[%c0_28, %c16] : memref<8x32xf32, #tpu.memory_space<vmem>>, vector<8x8xf32>
    tpu.vector_store %arg17[%c0_28, %c16], %70 {strides = array<i32>} : memref<8x32xf32, #tpu.memory_space<vmem>>, vector<8x8xf32>,
    %72 = vector.extract_strided_slice %11 {offsets = [0, 24], sizes = [8, 8], strides = [1, 1]} : vector<8x32xbf16> to vector<8x8xbf16>
    %73 = vector.extract_strided_slice %18 {offsets = [0, 24], sizes = [8, 8], strides = [1, 1]} : vector<8x32xbf16> to vector<8x8xbf16>
    %cst_29 = arith.constant dense<0.000000e+00> : vector<8x8xf32>
    %74 = tpu.matmul %72, %73, %cst_29 {dimension_numbers = #tpu.dot_dimension_numbers<[1], [1], [0], [0], [0, 0, 1, 0], [], []>} : vector<8x8xbf16>, vector<8x8xbf16>, vector<8x8xf32> -> vector<8x8xf32>
    %cst_30 = arith.constant dense<0xFF800000> : vector<8xf32>
    %75 = vector.multi_reduction <maximumf>, %74, %cst_30 [1] : vector<8x8xf32> to vector<8xf32>
    %76 = vector.shape_cast %75 : vector<8xf32> to vector<8x1xf32>
    %77 = vector.broadcast %76 : vector<8x1xf32> to vector<8x8xf32>
    %78 = arith.subf %74, %77 : vector<8x8xf32>
    %79 = math.exp %78 : vector<8x8xf32>
    %cst_31 = arith.constant dense<0.000000e+00> : vector<8xf32>
    %80 = vector.multi_reduction <add>, %79, %cst_31 [1] : vector<8x8xf32> to vector<8xf32>
    %81 = vector.shape_cast %80 : vector<8xf32> to vector<8x1xf32>
    %82 = tpu.reciprocal %81 {approx = true} : vector<8x1xf32> -> vector<8x1xf32>
    %83 = arith.truncf %79 : vector<8x8xf32> to vector<8x8xbf16>
    %84 = vector.extract_strided_slice %20 {offsets = [0, 24], sizes = [8, 8], strides = [1, 1]} : vector<8x32xbf16> to vector<8x8xbf16>
    %cst_32 = arith.constant dense<0.000000e+00> : vector<8x8xf32>
    %85 = tpu.matmul %83, %84, %cst_32 {dimension_numbers = #tpu.dot_dimension_numbers<[1], [0], [0], [1], [0, 0, 1, 1], [], []>} : vector<8x8xbf16>, vector<8x8xbf16>, vector<8x8xf32> -> vector<8x8xf32>
    %86 = vector.broadcast %82 : vector<8x1xf32> to vector<8x8xf32>
    %87 = arith.mulf %85, %86 : vector<8x8xf32>
    %c0_33 = arith.constant 0 : index
    %c24 = arith.constant 24 : index
    %88 = vector.load %arg17[%c0_33, %c24] : memref<8x32xf32, #tpu.memory_space<vmem>>, vector<8x8xf32>
    tpu.vector_store %arg17[%c0_33, %c24], %87 {strides = array<i32>} : memref<8x32xf32, #tpu.memory_space<vmem>>, vector<8x8xf32>,
    %c0_34 = arith.constant 0 : index
    %c0_35 = arith.constant 0 : index
    %89 = vector.load %arg17[%c0_34, %c0_35] : memref<8x32xf32, #tpu.memory_space<vmem>>, vector<8x32xf32>
    %90 = arith.truncf %89 : vector<8x32xf32> to vector<8x32xbf16>
    %c0_36 = arith.constant 0 : index
    %c0_37 = arith.constant 0 : index
    %91 = vector.load %arg6[%c0_36, %c0_37] : memref<32x32xbf16, #tpu.memory_space<vmem>>, vector<32x32xbf16>
    %cst_38 = arith.constant dense<0.000000e+00> : vector<8x32xf32>
    %92 = tpu.matmul %90, %91, %cst_38 {dimension_numbers = #tpu.dot_dimension_numbers<[1], [0], [0], [1], [0, 0, 1, 1], [], []>} : vector<8x32xbf16>, vector<32x32xbf16>, vector<8x32xf32> -> vector<8x32xf32>
    %c0_39 = arith.constant 0 : index
    %c0_40 = arith.constant 0 : index
    %93 = vector.load %arg7[%c0_39, %c0_40] : memref<1x32xf32, #tpu.memory_space<vmem>>, vector<1x32xf32>
    %94 = vector.broadcast %93 : vector<1x32xf32> to vector<8x32xf32>
    %95 = arith.addf %92, %94 : vector<8x32xf32>
    %96 = arith.addf %1, %95 : vector<8x32xf32>
    %c0_41 = arith.constant 0 : index
    %c0_42 = arith.constant 0 : index
    %97 = vector.load %arg8[%c0_41, %c0_42] : memref<1x32xf32, #tpu.memory_space<vmem>>, vector<1x32xf32>
    %c0_43 = arith.constant 0 : index
    %c0_44 = arith.constant 0 : index
    %98 = vector.load %arg9[%c0_43, %c0_44] : memref<1x32xf32, #tpu.memory_space<vmem>>, vector<1x32xf32>
    %cst_45 = arith.constant dense<0.000000e+00> : vector<8xf32>
    %99 = vector.multi_reduction <add>, %96, %cst_45 [1] : vector<8x32xf32> to vector<8xf32>
    %100 = vector.shape_cast %99 : vector<8xf32> to vector<8x1xf32>
    %cst_46 = arith.constant 3.200000e+01 : f32
    %101 = vector.broadcast %cst_46 : f32 to vector<8x1xf32>
    %102 = arith.divf %100, %101 : vector<8x1xf32>
    %103 = vector.broadcast %102 : vector<8x1xf32> to vector<8x32xf32>
    %104 = arith.subf %96, %103 : vector<8x32xf32>
    %105 = arith.mulf %104, %104 : vector<8x32xf32>
    %cst_47 = arith.constant dense<0.000000e+00> : vector<8xf32>
    %106 = vector.multi_reduction <add>, %105, %cst_47 [1] : vector<8x32xf32> to vector<8xf32>
    %107 = vector.shape_cast %106 : vector<8xf32> to vector<8x1xf32>
    %cst_48 = arith.constant 3.200000e+01 : f32
    %108 = vector.broadcast %cst_48 : f32 to vector<8x1xf32>
    %109 = arith.divf %107, %108 : vector<8x1xf32>
    %110 = vector.broadcast %102 : vector<8x1xf32> to vector<8x32xf32>
    %111 = arith.subf %96, %110 : vector<8x32xf32>
    %cst_49 = arith.constant 9.99999974E-6 : f32
    %112 = vector.broadcast %cst_49 : f32 to vector<8x1xf32>
    %113 = arith.addf %109, %112 : vector<8x1xf32>
    %114 = math.rsqrt %113 : vector<8x1xf32>
    %115 = vector.broadcast %114 : vector<8x1xf32> to vector<8x32xf32>
    %116 = arith.mulf %111, %115 : vector<8x32xf32>
    %117 = vector.broadcast %97 : vector<1x32xf32> to vector<8x32xf32>
    %118 = arith.mulf %116, %117 : vector<8x32xf32>
    %119 = vector.broadcast %98 : vector<1x32xf32> to vector<8x32xf32>
    %120 = arith.addf %118, %119 : vector<8x32xf32>
    %121 = arith.truncf %120 : vector<8x32xf32> to vector<8x32xbf16>
    %c0_50 = arith.constant 0 : index
    %c0_51 = arith.constant 0 : index
    %122 = vector.load %arg10[%c0_50, %c0_51] : memref<32x128xbf16, #tpu.memory_space<vmem>>, vector<32x128xbf16>
    %cst_52 = arith.constant dense<0.000000e+00> : vector<8x128xf32>
    %123 = tpu.matmul %121, %122, %cst_52 {dimension_numbers = #tpu.dot_dimension_numbers<[1], [0], [0], [1], [0, 0, 1, 1], [], []>} : vector<8x32xbf16>, vector<32x128xbf16>, vector<8x128xf32> -> vector<8x128xf32>
    %c0_53 = arith.constant 0 : index
    %c0_54 = arith.constant 0 : index
    %124 = vector.load %arg11[%c0_53, %c0_54] : memref<1x128xf32, #tpu.memory_space<vmem>>, vector<1x128xf32>
    %125 = vector.broadcast %124 : vector<1x128xf32> to vector<8x128xf32>
    %126 = arith.addf %123, %125 : vector<8x128xf32>
    %cst_55 = arith.constant 5.000000e-01 : f32
    %127 = vector.broadcast %cst_55 : f32 to vector<8x128xf32>
    %128 = arith.mulf %127, %126 : vector<8x128xf32>
    %cst_56 = arith.constant 4.471500e-02 : f32
    %129 = vector.broadcast %cst_56 : f32 to vector<8x128xf32>
    %130 = arith.mulf %129, %126 : vector<8x128xf32>
    %131 = arith.mulf %130, %126 : vector<8x128xf32>
    %132 = arith.mulf %131, %126 : vector<8x128xf32>
    %133 = arith.addf %126, %132 : vector<8x128xf32>
    %cst_57 = arith.constant 0.797884583 : f32
    %134 = vector.broadcast %cst_57 : f32 to vector<8x128xf32>
    %135 = arith.mulf %134, %133 : vector<8x128xf32>
    %136 = math.tanh %135 : vector<8x128xf32>
    %cst_58 = arith.constant 1.000000e+00 : f32
    %137 = vector.broadcast %cst_58 : f32 to vector<8x128xf32>
    %138 = arith.addf %137, %136 : vector<8x128xf32>
    %139 = arith.mulf %128, %138 : vector<8x128xf32>
    %140 = arith.truncf %139 : vector<8x128xf32> to vector<8x128xbf16>
    %c0_59 = arith.constant 0 : index
    %c0_60 = arith.constant 0 : index
    %141 = vector.load %arg12[%c0_59, %c0_60] : memref<128x32xbf16, #tpu.memory_space<vmem>>, vector<128x32xbf16>
    %cst_61 = arith.constant dense<0.000000e+00> : vector<8x32xf32>
    %142 = tpu.matmul %140, %141, %cst_61 {dimension_numbers = #tpu.dot_dimension_numbers<[1], [0], [0], [1], [0, 0, 1, 1], [], []>} : vector<8x128xbf16>, vector<128x32xbf16>, vector<8x32xf32> -> vector<8x32xf32>
    %c0_62 = arith.constant 0 : index
    %c0_63 = arith.constant 0 : index
    %143 = vector.load %arg13[%c0_62, %c0_63] : memref<1x32xf32, #tpu.memory_space<vmem>>, vector<1x32xf32>
    %144 = vector.broadcast %143 : vector<1x32xf32> to vector<8x32xf32>
    %145 = arith.addf %142, %144 : vector<8x32xf32>
    %146 = arith.addf %120, %145 : vector<8x32xf32>
    %c0_64 = arith.constant 0 : index
    %c0_65 = arith.constant 0 : index
    %147 = vector.load %arg14[%c0_64, %c0_65] : memref<1x32xf32, #tpu.memory_space<vmem>>, vector<1x32xf32>
    %c0_66 = arith.constant 0 : index
    %c0_67 = arith.constant 0 : index
    %148 = vector.load %arg15[%c0_66, %c0_67] : memref<1x32xf32, #tpu.memory_space<vmem>>, vector<1x32xf32>
    %cst_68 = arith.constant dense<0.000000e+00> : vector<8xf32>
    %149 = vector.multi_reduction <add>, %146, %cst_68 [1] : vector<8x32xf32> to vector<8xf32>
    %150 = vector.shape_cast %149 : vector<8xf32> to vector<8x1xf32>
    %cst_69 = arith.constant 3.200000e+01 : f32
    %151 = vector.broadcast %cst_69 : f32 to vector<8x1xf32>
    %152 = arith.divf %150, %151 : vector<8x1xf32>
    %153 = vector.broadcast %152 : vector<8x1xf32> to vector<8x32xf32>
    %154 = arith.subf %146, %153 : vector<8x32xf32>
    %155 = arith.mulf %154, %154 : vector<8x32xf32>
    %cst_70 = arith.constant dense<0.000000e+00> : vector<8xf32>
    %156 = vector.multi_reduction <add>, %155, %cst_70 [1] : vector<8x32xf32> to vector<8xf32>
    %157 = vector.shape_cast %156 : vector<8xf32> to vector<8x1xf32>
    %cst_71 = arith.constant 3.200000e+01 : f32
    %158 = vector.broadcast %cst_71 : f32 to vector<8x1xf32>
    %159 = arith.divf %157, %158 : vector<8x1xf32>
    %160 = vector.broadcast %152 : vector<8x1xf32> to vector<8x32xf32>
    %161 = arith.subf %146, %160 : vector<8x32xf32>
    %cst_72 = arith.constant 9.99999974E-6 : f32
    %162 = vector.broadcast %cst_72 : f32 to vector<8x1xf32>
    %163 = arith.addf %159, %162 : vector<8x1xf32>
    %164 = math.rsqrt %163 : vector<8x1xf32>
    %165 = vector.broadcast %164 : vector<8x1xf32> to vector<8x32xf32>
    %166 = arith.mulf %161, %165 : vector<8x32xf32>
    %167 = vector.broadcast %147 : vector<1x32xf32> to vector<8x32xf32>
    %168 = arith.mulf %166, %167 : vector<8x32xf32>
    %169 = vector.broadcast %148 : vector<1x32xf32> to vector<8x32xf32>
    %170 = arith.addf %168, %169 : vector<8x32xf32>
    %c0_73 = arith.constant 0 : index
    %c0_74 = arith.constant 0 : index
    %c0_75 = arith.constant 0 : index
    %171 = vector.load %arg16[%c0_73, %c0_74, %c0_75] : memref<1x8x32xf32, #tpu.memory_space<vmem>>, vector<1x8x32xf32>
    %172 = vector.shape_cast %171 : vector<1x8x32xf32> to vector<8x32xf32>
    %173 = vector.shape_cast %170 : vector<8x32xf32> to vector<1x8x32xf32>
    tpu.vector_store %arg16[%c0_73, %c0_74, %c0_75], %173 {strides = array<i32>} : memref<1x8x32xf32, #tpu.memory_space<vmem>>, vector<1x8x32xf32>,
    return
  }
  func.func @transform_0(%arg0: i32, %arg1: i32) -> (i32, i32, i32) {
    %c0_i32 = arith.constant 0 : i32
    %c0_i32_0 = arith.constant 0 : i32
    return %arg0, %arg1, %c0_i32 : i32, i32, i32
  }
  func.func @transform_1(%arg0: i32, %arg1: i32) -> (i32, i32, i32) {
    %c0_i32 = arith.constant 0 : i32
    %c0_i32_0 = arith.constant 0 : i32
    %c0_i32_1 = arith.constant 0 : i32
    return %arg0, %c0_i32, %c0_i32_0 : i32, i32, i32
  }
  func.func @transform_2(%arg0: i32, %arg1: i32) -> (i32, i32) {
    %c0_i32 = arith.constant 0 : i32
    %c0_i32_0 = arith.constant 0 : i32
    %c0_i32_1 = arith.constant 0 : i32
    return %c0_i32, %c0_i32_0 : i32, i32
  }
  func.func @transform_3(%arg0: i32, %arg1: i32) -> (i32, i32) {
    %c0_i32 = arith.constant 0 : i32
    %c0_i32_0 = arith.constant 0 : i32
    %c0_i32_1 = arith.constant 0 : i32
    return %c0_i32, %c0_i32_0 : i32, i32
  }
  func.func @transform_4(%arg0: i32, %arg1: i32) -> (i32, i32) {
    %c0_i32 = arith.constant 0 : i32
    %c0_i32_0 = arith.constant 0 : i32
    %c0_i32_1 = arith.constant 0 : i32
    return %c0_i32, %c0_i32_0 : i32, i32
  }
  func.func @transform_5(%arg0: i32, %arg1: i32) -> (i32, i32) {
    %c0_i32 = arith.constant 0 : i32
    %c0_i32_0 = arith.constant 0 : i32
    %c0_i32_1 = arith.constant 0 : i32
    return %c0_i32, %c0_i32_0 : i32, i32
  }
  func.func @transform_6(%arg0: i32, %arg1: i32) -> (i32, i32) {
    %c0_i32 = arith.constant 0 : i32
    %c0_i32_0 = arith.constant 0 : i32
    %c0_i32_1 = arith.constant 0 : i32
    return %c0_i32, %c0_i32_0 : i32, i32
  }
  func.func @transform_7(%arg0: i32, %arg1: i32) -> (i32, i32) {
    %c0_i32 = arith.constant 0 : i32
    %c0_i32_0 = arith.constant 0 : i32
    %c0_i32_1 = arith.constant 0 : i32
    return %c0_i32, %c0_i32_0 : i32, i32
  }
  func.func @transform_8(%arg0: i32, %arg1: i32) -> (i32, i32) {
    %c0_i32 = arith.constant 0 : i32
    %c0_i32_0 = arith.constant 0 : i32
    %c0_i32_1 = arith.constant 0 : i32
    return %c0_i32, %c0_i32_0 : i32, i32
  }
  func.func @transform_9(%arg0: i32, %arg1: i32) -> (i32, i32) {
    %c0_i32 = arith.constant 0 : i32
    %c0_i32_0 = arith.constant 0 : i32
    %c0_i32_1 = arith.constant 0 : i32
    return %c0_i32, %c0_i32_0 : i32, i32
  }
  func.func @transform_10(%arg0: i32, %arg1: i32) -> (i32, i32) {
    %c0_i32 = arith.constant 0 : i32
    %c0_i32_0 = arith.constant 0 : i32
    %c0_i32_1 = arith.constant 0 : i32
    return %c0_i32, %c0_i32_0 : i32, i32
  }
  func.func @transform_11(%arg0: i32, %arg1: i32) -> (i32, i32) {
    %c0_i32 = arith.constant 0 : i32
    %c0_i32_0 = arith.constant 0 : i32
    %c0_i32_1 = arith.constant 0 : i32
    return %c0_i32, %c0_i32_0 : i32, i32
  }
  func.func @transform_12(%arg0: i32, %arg1: i32) -> (i32, i32) {
    %c0_i32 = arith.constant 0 : i32
    %c0_i32_0 = arith.constant 0 : i32
    %c0_i32_1 = arith.constant 0 : i32
    return %c0_i32, %c0_i32_0 : i32, i32
  }
  func.func @transform_13(%arg0: i32, %arg1: i32) -> (i32, i32) {
    %c0_i32 = arith.constant 0 : i32
    %c0_i32_0 = arith.constant 0 : i32
    %c0_i32_1 = arith.constant 0 : i32
    return %c0_i32, %c0_i32_0 : i32, i32
  }
  func.func @transform_14(%arg0: i32, %arg1: i32) -> (i32, i32, i32) {
    %c0_i32 = arith.constant 0 : i32
    %c0_i32_0 = arith.constant 0 : i32
    return %arg0, %arg1, %c0_i32 : i32, i32, i32
  }
}

</mosaic_0001>

<llo_original>
// kernel: tpu_custom_call.1
$region0: #{tpu_custom_call.1}
  #allocation0 [shape = 'u32[]', space=smem, size = 0x4, offset = 0x4, fixed_abs, tag = 'smem constant byte address 0x4 - core index']
  #allocation1 [shape = 'u32[72,128]{1,0:T(1,128)}', space=vmem, size = 0x9000, scoped, tag = 'internal scratch']
  #allocation2 [shape = 'f32[8,32]{1,0:T(8,128)}', space=vmem, size = 0x1000, scoped, tag = 'scratch operand']
  %s0 = inlined_call_operand.vmem [shape: f32[2,8,32], index: 0, kind: input, shape index: {}]
  %s1 = inlined_call_operand.vmem [shape: f32[2,8,32], index: 1, kind: input, shape index: {}]
  %s2 = inlined_call_operand.vmem [shape: bf16[32,96], index: 2, kind: input, shape index: {}]
  %s3 = inlined_call_operand.vmem [shape: f32[1,96], index: 3, kind: input, shape index: {}]
  %s4 = inlined_call_operand.vmem [shape: bf16[32,32], index: 4, kind: input, shape index: {}]
  %s5 = inlined_call_operand.vmem [shape: f32[1,32], index: 5, kind: input, shape index: {}]
  %s6 = inlined_call_operand.vmem [shape: f32[1,32], index: 6, kind: input, shape index: {}]
  %s7 = inlined_call_operand.vmem [shape: f32[1,32], index: 7, kind: input, shape index: {}]
  %s8 = inlined_call_operand.vmem [shape: bf16[32,128], index: 8, kind: input, shape index: {}]
  %s9 = inlined_call_operand.vmem [shape: f32[1,128], index: 9, kind: input, shape index: {}]
  %s10 = inlined_call_operand.vmem [shape: bf16[128,32], index: 10, kind: input, shape index: {}]
  %s11 = inlined_call_operand.vmem [shape: f32[1,32], index: 11, kind: input, shape index: {}]
  %s12 = inlined_call_operand.vmem [shape: f32[1,32], index: 12, kind: input, shape index: {}]
  %s13 = inlined_call_operand.vmem [shape: f32[1,32], index: 13, kind: input, shape index: {}]
  %s14 = inlined_call_operand.hbm [shape: f32[2,8,32], index: 14, kind: output, shape index: {}]
  %s15 = sld [smem:[#allocation0]]
  $region89: #{tpu_custom_call.1} parent=0
    _
  %s17 = ssub.s32 1, %s15
  %s18 = scalar_select 0, %s17, %s15
  $region1: #{tpu_custom_call.1} parent=0
    #allocation3 [shape = 'u8[8192]{0}', space=vmem, size = 0x2000, scoped, tag = 'output window, operand 0']
    #allocation4 [shape = 's32[2]{0}', space=sflag, size = 0x8, scoped, tag = 'scoped memory for tpu_custom_call.1']
    %19 = vsyncpa [#allocation4], 0
    %s20 = scalar_lea.sflag [#allocation4], 1
    %21 = vsyncpa %s20, 0
    loop: start=0, step=1, limit=4
    $region2: #{tpu_custom_call.1} parent=1 // loop_pre_header
      _
    $region3: #{tpu_custom_call.1} parent=1 // loop_header
      %s23 = sphi 0, %s27
      %p24 = scmp.ge.s32.totalorder %s23, 4
      %s30 = sphi 0, %s42
      %s31 = sphi 0, %s38
      %s32 = sphi 0, %s30
      %s33 = sphi 0, %s31
      %s34 = sphi 0, %s32
      %s35 = sphi 0, %s33
      %s47 = sphi 0, %s49
      %s50 = sphi 0, %s47
      %s51 = sphi 0, %s50
      %s67 = sphi 0, %s51
      %s73 = sphi 0, %s75
      %s76 = sphi 0, %s73
      %s77 = sphi 0, %s76
      %s93 = sphi 0, %s77
      %s97 = sphi 0, %s97
      %s99 = sphi 0, %s97
      %s100 = sphi 0, %s99
      %s114 = sphi 0, %s100
      %s118 = sphi 0, %s118
      %s120 = sphi 0, %s118
      %s121 = sphi 0, %s120
      %s135 = sphi 0, %s121
      %s139 = sphi 0, %s139
      %s141 = sphi 0, %s139
      %s142 = sphi 0, %s141
      %s156 = sphi 0, %s142
      %s160 = sphi 0, %s160
      %s162 = sphi 0, %s160
      %s163 = sphi 0, %s162
      %s177 = sphi 0, %s163
      %s181 = sphi 0, %s181
      %s183 = sphi 0, %s181
      %s184 = sphi 0, %s183
      %s198 = sphi 0, %s184
      %s202 = sphi 0, %s202
      %s204 = sphi 0, %s202
      %s205 = sphi 0, %s204
      %s219 = sphi 0, %s205
      %s223 = sphi 0, %s223
      %s225 = sphi 0, %s223
      %s226 = sphi 0, %s225
      %s240 = sphi 0, %s226
      %s244 = sphi 0, %s244
      %s246 = sphi 0, %s244
      %s247 = sphi 0, %s246
      %s261 = sphi 0, %s247
      %s265 = sphi 0, %s265
      %s267 = sphi 0, %s265
      %s268 = sphi 0, %s267
      %s282 = sphi 0, %s268
      %s286 = sphi 0, %s286
      %s288 = sphi 0, %s286
      %s289 = sphi 0, %s288
      %s303 = sphi 0, %s289
      %s307 = sphi 0, %s307
      %s309 = sphi 0, %s307
      %s310 = sphi 0, %s309
      %s324 = sphi 0, %s310
      %s328 = sphi 0, %s328
      %s330 = sphi 0, %s328
      %s331 = sphi 0, %s330
      %s345 = sphi 0, %s331
      %s353 = sphi 0, %s355
      %s356 = sphi 0, %s353
      %s357 = sphi 0, %s356
      %s373 = sphi 0, %s357
    $region4: #{tpu_custom_call.1} parent=1 // loop_header_branch
      %26 = sbr.rel (%p24) target = $region8
    $region5: #{tpu_custom_call.1} parent=1 // loop_body
      %s28 = ssub.s32 %s23, 1
      %s29 = ssub.s32 %s23, 2
      %s36 = sadd.s32 1, %s31
      %p37 = scmp.ge.s32.totalorder %s36, 1
      %s38 = scalar_select %p37, 0, %s36
      %s39 = sadd.s32 1, %s30
      %s40 = scalar_select %p37, %s39, %s30
      %p41 = scmp.ge.s32.totalorder %s40, 2
      %s42 = scalar_select %p41, 0, %s40
      %s43 = ssub.s32 %s30, %s42
      %s44 = ssub.s32 %s31, %s38
      %s45 = sor.u32 %s43, %s44
      %p46 = scmp.eq.s32.totalorder %s45, 0
      %s48 = sadd.s32 %s47, 1
      %s49 = scalar_select %p46, %s47, %s48
      %p52 = pneg %p46
      %p53 = scmp.eq.s32.totalorder %s23, 1
      %p54 = por %p52, %p53
      %p55 = scmp.ne.s32.totalorder %s47, %s50
      %p56 = scmp.eq.s32.totalorder %s23, 0
      %p57 = por %p55, %p56
      %p58 = scmp.ne.s32.totalorder %s47, %s50
      %p59 = scmp.eq.s32.totalorder %s28, 1
      %p60 = por %p58, %p59
      %p61 = scmp.ne.s32.totalorder %s50, %s51
      %p62 = scmp.eq.s32.totalorder %s28, 0
      %p63 = por %p61, %p62
      %p64 = scmp.ne.s32.totalorder %s50, %s51
      %p65 = scmp.eq.s32.totalorder %s29, 1
      %p66 = por %p64, %p65
      %p68 = scmp.ne.s32.totalorder %s51, %s67
      %p69 = scmp.eq.s32.totalorder %s29, 0
      %p70 = por %p68, %p69
      %s71 = ssub.s32 %s30, %s42
      %p72 = scmp.eq.s32.totalorder %s71, 0
      %s74 = sadd.s32 %s73, 1
      %s75 = scalar_select %p72, %s73, %s74
      %p78 = pneg %p72
      %p79 = scmp.eq.s32.totalorder %s23, 1
      %p80 = por %p78, %p79
      %p81 = scmp.ne.s32.totalorder %s73, %s76
      %p82 = scmp.eq.s32.totalorder %s23, 0
      %p83 = por %p81, %p82
      %p84 = scmp.ne.s32.totalorder %s73, %s76
      %p85 = scmp.eq.s32.totalorder %s28, 1
      %p86 = por %p84, %p85
      %p87 = scmp.ne.s32.totalorder %s76, %s77
      %p88 = scmp.eq.s32.totalorder %s28, 0
      %p89 = por %p87, %p88
      %p90 = scmp.ne.s32.totalorder %s76, %s77
      %p91 = scmp.eq.s32.totalorder %s29, 1
      %p92 = por %p90, %p91
      %p94 = scmp.ne.s32.totalorder %s77, %s93
      %p95 = scmp.eq.s32.totalorder %s29, 0
      %p96 = por %p94, %p95
      %s98 = sadd.s32 %s97, 1
      %p101 = scmp.eq.s32.totalorder %s23, 1
      %p102 = scmp.ne.s32.totalorder %s97, %s99
      %p103 = scmp.eq.s32.totalorder %s23, 0
      %p104 = por %p102, %p103
      %p105 = scmp.ne.s32.totalorder %s97, %s99
      %p106 = scmp.eq.s32.totalorder %s28, 1
      %p107 = por %p105, %p106
      %p108 = scmp.ne.s32.totalorder %s99, %s100
      %p109 = scmp.eq.s32.totalorder %s28, 0
      %p110 = por %p108, %p109
      %p111 = scmp.ne.s32.totalorder %s99, %s100
      %p112 = scmp.eq.s32.totalorder %s29, 1
      %p113 = por %p111, %p112
      %p115 = scmp.ne.s32.totalorder %s100, %s114
      %p116 = scmp.eq.s32.totalorder %s29, 0
      %p117 = por %p115, %p116
      %s119 = sadd.s32 %s118, 1
      %p122 = scmp.eq.s32.totalorder %s23, 1
      %p123 = scmp.ne.s32.totalorder %s118, %s120
      %p124 = scmp.eq.s32.totalorder %s23, 0
      %p125 = por %p123, %p124
      %p126 = scmp.ne.s32.totalorder %s118, %s120
      %p127 = scmp.eq.s32.totalorder %s28, 1
      %p128 = por %p126, %p127
      %p129 = scmp.ne.s32.totalorder %s120, %s121
      %p130 = scmp.eq.s32.totalorder %s28, 0
      %p131 = por %p129, %p130
      %p132 = scmp.ne.s32.totalorder %s120, %s121
      %p133 = scmp.eq.s32.totalorder %s29, 1
      %p134 = por %p132, %p133
      %p136 = scmp.ne.s32.totalorder %s121, %s135
      %p137 = scmp.eq.s32.totalorder %s29, 0
      %p138 = por %p136, %p137
      %s140 = sadd.s32 %s139, 1
      %p143 = scmp.eq.s32.totalorder %s23, 1
      %p144 = scmp.ne.s32.totalorder %s139, %s141
      %p145 = scmp.eq.s32.totalorder %s23, 0
      %p146 = por %p144, %p145
      %p147 = scmp.ne.s32.totalorder %s139, %s141
      %p148 = scmp.eq.s32.totalorder %s28, 1
      %p149 = por %p147, %p148
      %p150 = scmp.ne.s32.totalorder %s141, %s142
      %p151 = scmp.eq.s32.totalorder %s28, 0
      %p152 = por %p150, %p151
      %p153 = scmp.ne.s32.totalorder %s141, %s142
      %p154 = scmp.eq.s32.totalorder %s29, 1
      %p155 = por %p153, %p154
      %p157 = scmp.ne.s32.totalorder %s142, %s156
      %p158 = scmp.eq.s32.totalorder %s29, 0
      %p159 = por %p157, %p158
      %s161 = sadd.s32 %s160, 1
      %p164 = scmp.eq.s32.totalorder %s23, 1
      %p165 = scmp.ne.s32.totalorder %s160, %s162
      %p166 = scmp.eq.s32.totalorder %s23, 0
      %p167 = por %p165, %p166
      %p168 = scmp.ne.s32.totalorder %s160, %s162
      %p169 = scmp.eq.s32.totalorder %s28, 1
      %p170 = por %p168, %p169
      %p171 = scmp.ne.s32.totalorder %s162, %s163
      %p172 = scmp.eq.s32.totalorder %s28, 0
      %p173 = por %p171, %p172
      %p174 = scmp.ne.s32.totalorder %s162, %s163
      %p175 = scmp.eq.s32.totalorder %s29, 1
      %p176 = por %p174, %p175
      %p178 = scmp.ne.s32.totalorder %s163, %s177
      %p179 = scmp.eq.s32.totalorder %s29, 0
      %p180 = por %p178, %p179
      %s182 = sadd.s32 %s181, 1
      %p185 = scmp.eq.s32.totalorder %s23, 1
      %p186 = scmp.ne.s32.totalorder %s181, %s183
      %p187 = scmp.eq.s32.totalorder %s23, 0
      %p188 = por %p186, %p187
      %p189 = scmp.ne.s32.totalorder %s181, %s183
      %p190 = scmp.eq.s32.totalorder %s28, 1
      %p191 = por %p189, %p190
      %p192 = scmp.ne.s32.totalorder %s183, %s184
      %p193 = scmp.eq.s32.totalorder %s28, 0
      %p194 = por %p192, %p193
      %p195 = scmp.ne.s32.totalorder %s183, %s184
      %p196 = scmp.eq.s32.totalorder %s29, 1
      %p197 = por %p195, %p196
      %p199 = scmp.ne.s32.totalorder %s184, %s198
      %p200 = scmp.eq.s32.totalorder %s29, 0
      %p201 = por %p199, %p200
      %s203 = sadd.s32 %s202, 1
      %p206 = scmp.eq.s32.totalorder %s23, 1
      %p207 = scmp.ne.s32.totalorder %s202, %s204
      %p208 = scmp.eq.s32.totalorder %s23, 0
      %p209 = por %p207, %p208
      %p210 = scmp.ne.s32.totalorder %s202, %s204
      %p211 = scmp.eq.s32.totalorder %s28, 1
      %p212 = por %p210, %p211
      %p213 = scmp.ne.s32.totalorder %s204, %s205
      %p214 = scmp.eq.s32.totalorder %s28, 0
      %p215 = por %p213, %p214
      %p216 = scmp.ne.s32.totalorder %s204, %s205
      %p217 = scmp.eq.s32.totalorder %s29, 1
      %p218 = por %p216, %p217
      %p220 = scmp.ne.s32.totalorder %s205, %s219
      %p221 = scmp.eq.s32.totalorder %s29, 0
      %p222 = por %p220, %p221
      %s224 = sadd.s32 %s223, 1
      %p227 = scmp.eq.s32.totalorder %s23, 1
      %p228 = scmp.ne.s32.totalorder %s223, %s225
      %p229 = scmp.eq.s32.totalorder %s23, 0
      %p230 = por %p228, %p229
      %p231 = scmp.ne.s32.totalorder %s223, %s225
      %p232 = scmp.eq.s32.totalorder %s28, 1
      %p233 = por %p231, %p232
      %p234 = scmp.ne.s32.totalorder %s225, %s226
      %p235 = scmp.eq.s32.totalorder %s28, 0
      %p236 = por %p234, %p235
      %p237 = scmp.ne.s32.totalorder %s225, %s226
      %p238 = scmp.eq.s32.totalorder %s29, 1
      %p239 = por %p237, %p238
      %p241 = scmp.ne.s32.totalorder %s226, %s240
      %p242 = scmp.eq.s32.totalorder %s29, 0
      %p243 = por %p241, %p242
      %s245 = sadd.s32 %s244, 1
      %p248 = scmp.eq.s32.totalorder %s23, 1
      %p249 = scmp.ne.s32.totalorder %s244, %s246
      %p250 = scmp.eq.s32.totalorder %s23, 0
      %p251 = por %p249, %p250
      %p252 = scmp.ne.s32.totalorder %s244, %s246
      %p253 = scmp.eq.s32.totalorder %s28, 1
      %p254 = por %p252, %p253
      %p255 = scmp.ne.s32.totalorder %s246, %s247
      %p256 = scmp.eq.s32.totalorder %s28, 0
      %p257 = por %p255, %p256
      %p258 = scmp.ne.s32.totalorder %s246, %s247
      %p259 = scmp.eq.s32.totalorder %s29, 1
      %p260 = por %p258, %p259
      %p262 = scmp.ne.s32.totalorder %s247, %s261
      %p263 = scmp.eq.s32.totalorder %s29, 0
      %p264 = por %p262, %p263
      %s266 = sadd.s32 %s265, 1
      %p269 = scmp.eq.s32.totalorder %s23, 1
      %p270 = scmp.ne.s32.totalorder %s265, %s267
      %p271 = scmp.eq.s32.totalorder %s23, 0
      %p272 = por %p270, %p271
      %p273 = scmp.ne.s32.totalorder %s265, %s267
      %p274 = scmp.eq.s32.totalorder %s28, 1
      %p275 = por %p273, %p274
      %p276 = scmp.ne.s32.totalorder %s267, %s268
      %p277 = scmp.eq.s32.totalorder %s28, 0
      %p278 = por %p276, %p277
      %p279 = scmp.ne.s32.totalorder %s267, %s268
      %p280 = scmp.eq.s32.totalorder %s29, 1
      %p281 = por %p279, %p280
      %p283 = scmp.ne.s32.totalorder %s268, %s282
      %p284 = scmp.eq.s32.totalorder %s29, 0
      %p285 = por %p283, %p284
      %s287 = sadd.s32 %s286, 1
      %p290 = scmp.eq.s32.totalorder %s23, 1
      %p291 = scmp.ne.s32.totalorder %s286, %s288
      %p292 = scmp.eq.s32.totalorder %s23, 0
      %p293 = por %p291, %p292
      %p294 = scmp.ne.s32.totalorder %s286, %s288
      %p295 = scmp.eq.s32.totalorder %s28, 1
      %p296 = por %p294, %p295
      %p297 = scmp.ne.s32.totalorder %s288, %s289
      %p298 = scmp.eq.s32.totalorder %s28, 0
      %p299 = por %p297, %p298
      %p300 = scmp.ne.s32.totalorder %s288, %s289
      %p301 = scmp.eq.s32.totalorder %s29, 1
      %p302 = por %p300, %p301
      %p304 = scmp.ne.s32.totalorder %s289, %s303
      %p305 = scmp.eq.s32.totalorder %s29, 0
      %p306 = por %p304, %p305
      %s308 = sadd.s32 %s307, 1
      %p311 = scmp.eq.s32.totalorder %s23, 1
      %p312 = scmp.ne.s32.totalorder %s307, %s309
      %p313 = scmp.eq.s32.totalorder %s23, 0
      %p314 = por %p312, %p313
      %p315 = scmp.ne.s32.totalorder %s307, %s309
      %p316 = scmp.eq.s32.totalorder %s28, 1
      %p317 = por %p315, %p316
      %p318 = scmp.ne.s32.totalorder %s309, %s310
      %p319 = scmp.eq.s32.totalorder %s28, 0
      %p320 = por %p318, %p319
      %p321 = scmp.ne.s32.totalorder %s309, %s310
      %p322 = scmp.eq.s32.totalorder %s29, 1
      %p323 = por %p321, %p322
      %p325 = scmp.ne.s32.totalorder %s310, %s324
      %p326 = scmp.eq.s32.totalorder %s29, 0
      %p327 = por %p325, %p326
      %s329 = sadd.s32 %s328, 1
      %p332 = scmp.eq.s32.totalorder %s23, 1
      %p333 = scmp.ne.s32.totalorder %s328, %s330
      %p334 = scmp.eq.s32.totalorder %s23, 0
      %p335 = por %p333, %p334
      %p336 = scmp.ne.s32.totalorder %s328, %s330
      %p337 = scmp.eq.s32.totalorder %s28, 1
      %p338 = por %p336, %p337
      %p339 = scmp.ne.s32.totalorder %s330, %s331
      %p340 = scmp.eq.s32.totalorder %s28, 0
      %p341 = por %p339, %p340
      %p342 = scmp.ne.s32.totalorder %s330, %s331
      %p343 = scmp.eq.s32.totalorder %s29, 1
      %p344 = por %p342, %p343
      %p346 = scmp.ne.s32.totalorder %s331, %s345
      %p347 = scmp.eq.s32.totalorder %s29, 0
      %p348 = por %p346, %p347
      %s349 = ssub.s32 %s30, %s42
      %s350 = ssub.s32 %s31, %s38
      %s351 = sor.u32 %s349, %s350
      %p352 = scmp.eq.s32.totalorder %s351, 0
      %s354 = sadd.s32 %s353, 1
      %s355 = scalar_select %p352, %s353, %s354
      %p358 = pneg %p352
      %p359 = scmp.eq.s32.totalorder %s23, 1
      %p360 = por %p358, %p359
      %p361 = scmp.ne.s32.totalorder %s353, %s356
      %p362 = scmp.eq.s32.totalorder %s23, 0
      %p363 = por %p361, %p362
      %p364 = scmp.ne.s32.totalorder %s353, %s356
      %p365 = scmp.eq.s32.totalorder %s28, 1
      %p366 = por %p364, %p365
      %p367 = scmp.ne.s32.totalorder %s356, %s357
      %p368 = scmp.eq.s32.totalorder %s28, 0
      %p369 = por %p367, %p368
      %p370 = scmp.ne.s32.totalorder %s356, %s357
      %p371 = scmp.eq.s32.totalorder %s29, 1
      %p372 = por %p370, %p371
      %p374 = scmp.ne.s32.totalorder %s357, %s373
      %p375 = scmp.eq.s32.totalorder %s29, 0
      %p376 = por %p374, %p375
      %p377 = scmp.le.s32.totalorder 1, %s23
      %p378 = scmp.lt.s32.totalorder %s23, 3
      %p379 = pnand %p377, %p378
      %p380 = pneg %p379
      // Predicated region
      $region9: #{tpu_custom_call.1} parent=5 // pred_check
        _
      $region10: #{tpu_custom_call.1} parent=5 // pred_check_branch
        %382 = sbr.rel (%p379) target = $region12
      $region11: #{tpu_custom_call.1} parent=5 // pred_region
        %s383 = ssub.s32 %s23, 1
        // Predicated region
        $region13: #{tpu_custom_call.1} parent=11 // pred_check
          %p384 = pneg %p110
        $region14: #{tpu_custom_call.1} parent=11 // pred_check_branch
          %386 = sbr.rel (%p384) target = $region16
        $region15: #{tpu_custom_call.1} parent=11 // pred_region
          _
        $region16: #{tpu_custom_call.1} parent=11 // pred_fallthru
          _
        // Predicated region
        $region17: #{tpu_custom_call.1} parent=11 // pred_check
          %p387 = pneg %p131
        $region18: #{tpu_custom_call.1} parent=11 // pred_check_branch
          %389 = sbr.rel (%p387) target = $region20
        $region19: #{tpu_custom_call.1} parent=11 // pred_region
          _
        $region20: #{tpu_custom_call.1} parent=11 // pred_fallthru
          _
        // Predicated region
        $region21: #{tpu_custom_call.1} parent=11 // pred_check
          %p390 = pneg %p152
        $region22: #{tpu_custom_call.1} parent=11 // pred_check_branch
          %392 = sbr.rel (%p390) target = $region24
        $region23: #{tpu_custom_call.1} parent=11 // pred_region
          _
        $region24: #{tpu_custom_call.1} parent=11 // pred_fallthru
          _
        // Predicated region
        $region25: #{tpu_custom_call.1} parent=11 // pred_check
          %p393 = pneg %p173
        $region26: #{tpu_custom_call.1} parent=11 // pred_check_branch
          %395 = sbr.rel (%p393) target = $region28
        $region27: #{tpu_custom_call.1} parent=11 // pred_region
          _
        $region28: #{tpu_custom_call.1} parent=11 // pred_fallthru
          _
        // Predicated region
        $region29: #{tpu_custom_call.1} parent=11 // pred_check
          %p396 = pneg %p194
        $region30: #{tpu_custom_call.1} parent=11 // pred_check_branch
          %398 = sbr.rel (%p396) target = $region32
        $region31: #{tpu_custom_call.1} parent=11 // pred_region
          _
        $region32: #{tpu_custom_call.1} parent=11 // pred_fallthru
          _
        // Predicated region
        $region33: #{tpu_custom_call.1} parent=11 // pred_check
          %p399 = pneg %p215
        $region34: #{tpu_custom_call.1} parent=11 // pred_check_branch
          %401 = sbr.rel (%p399) target = $region36
        $region35: #{tpu_custom_call.1} parent=11 // pred_region
          _
        $region36: #{tpu_custom_call.1} parent=11 // pred_fallthru
          _
        // Predicated region
        $region37: #{tpu_custom_call.1} parent=11 // pred_check
          %p402 = pneg %p236
        $region38: #{tpu_custom_call.1} parent=11 // pred_check_branch
          %404 = sbr.rel (%p402) target = $region40
        $region39: #{tpu_custom_call.1} parent=11 // pred_region
          _
        $region40: #{tpu_custom_call.1} parent=11 // pred_fallthru
          _
        // Predicated region
        $region41: #{tpu_custom_call.1} parent=11 // pred_check
          %p405 = pneg %p257
        $region42: #{tpu_custom_call.1} parent=11 // pred_check_branch
          %407 = sbr.rel (%p405) target = $region44
        $region43: #{tpu_custom_call.1} parent=11 // pred_region
          _
        $region44: #{tpu_custom_call.1} parent=11 // pred_fallthru
          _
        // Predicated region
        $region45: #{tpu_custom_call.1} parent=11 // pred_check
          %p408 = pneg %p278
        $region46: #{tpu_custom_call.1} parent=11 // pred_check_branch
          %410 = sbr.rel (%p408) target = $region48
        $region47: #{tpu_custom_call.1} parent=11 // pred_region
          _
        $region48: #{tpu_custom_call.1} parent=11 // pred_fallthru
          _
        // Predicated region
        $region49: #{tpu_custom_call.1} parent=11 // pred_check
          %p411 = pneg %p299
        $region50: #{tpu_custom_call.1} parent=11 // pred_check_branch
          %413 = sbr.rel (%p411) target = $region52
        $region51: #{tpu_custom_call.1} parent=11 // pred_region
          _
        $region52: #{tpu_custom_call.1} parent=11 // pred_fallthru
          _
        // Predicated region
        $region53: #{tpu_custom_call.1} parent=11 // pred_check
          %p414 = pneg %p320
        $region54: #{tpu_custom_call.1} parent=11 // pred_check_branch
          %416 = sbr.rel (%p414) target = $region56
        $region55: #{tpu_custom_call.1} parent=11 // pred_region
          _
        $region56: #{tpu_custom_call.1} parent=11 // pred_fallthru
          _
        // Predicated region
        $region57: #{tpu_custom_call.1} parent=11 // pred_check
          %p417 = pneg %p341
        $region58: #{tpu_custom_call.1} parent=11 // pred_check_branch
          %419 = sbr.rel (%p417) target = $region60
        $region59: #{tpu_custom_call.1} parent=11 // pred_region
          _
        $region60: #{tpu_custom_call.1} parent=11 // pred_fallthru
          _
      $region12: #{tpu_custom_call.1} parent=5 // pred_fallthru
        _
      %p420 = scmp.lt.s32.totalorder %s23, 2
      // Predicated region
      $region61: #{tpu_custom_call.1} parent=5 // pred_check
        %p421 = pneg %p420
      $region62: #{tpu_custom_call.1} parent=5 // pred_check_branch
        %423 = sbr.rel (%p421) target = $region64
      $region63: #{tpu_custom_call.1} parent=5 // pred_region
        // Predicated region
        $region65: #{tpu_custom_call.1} parent=63 // pred_check
          %p424 = pneg %p57
        $region66: #{tpu_custom_call.1} parent=63 // pred_check_branch
          %426 = sbr.rel (%p424) target = $region68
        $region67: #{tpu_custom_call.1} parent=63 // pred_region
          %p427 = scmp.lt.s32.totalorder %s30, 1
          %s428 = scalar_select %p427, %s30, 1
          %p429 = scmp.lt.s32.totalorder %s31, 0
          %s430 = scalar_select %p429, %s31, 0
          %s431 = sadd.s32 %s430, %s428
          %s432 = smul.addr %s431, 8
          %s433 = scalar_lea.vmem %s0, %s432
        $region68: #{tpu_custom_call.1} parent=63 // pred_fallthru
          _
        // Predicated region
        $region69: #{tpu_custom_call.1} parent=63 // pred_check
          %p434 = pneg %p83
        $region70: #{tpu_custom_call.1} parent=63 // pred_check_branch
          %436 = sbr.rel (%p434) target = $region72
        $region71: #{tpu_custom_call.1} parent=63 // pred_region
          %p437 = scmp.lt.s32.totalorder %s30, 1
          %s438 = scalar_select %p437, %s30, 1
          %s439 = smul.addr %s438, 8
          %s440 = scalar_lea.vmem %s1, %s439
        $region72: #{tpu_custom_call.1} parent=63 // pred_fallthru
          _
      $region64: #{tpu_custom_call.1} parent=5 // pred_fallthru
        _
      %p441 = scmp.le.s32.totalorder 1, %s23
      %p442 = scmp.lt.s32.totalorder %s23, 3
      %p443 = pnand %p441, %p442
      %p444 = pneg %p443
      // Predicated region
      $region73: #{tpu_custom_call.1} parent=5 // pred_check
        _
      $region74: #{tpu_custom_call.1} parent=5 // pred_check_branch
        %446 = sbr.rel (%p443) target = $region76
      $region75: #{tpu_custom_call.1} parent=5 // pred_region
        %s447 = ssub.s32 %s23, 1
        %p448 = scmp.lt.s32.totalorder %s32, 1
        %s449 = scalar_select %p448, %s32, 1
        %p450 = scmp.lt.s32.totalorder %s33, 0
        %s451 = scalar_select %p450, %s33, 0
        %s452 = sadd.s32 %s451, %s449
        %s453 = smul.addr %s452, 8
        %s454 = scalar_lea.vmem %s0, %s453
        %p455 = pneg %p63
        %p456 = pneg %p60
        %p457 = scmp.lt.s32.totalorder %s32, 1
        %s458 = scalar_select %p457, %s32, 1
        %s459 = smul.addr %s458, 8
        %s460 = scalar_lea.vmem %s1, %s459
        %p461 = pneg %p89
        %p462 = pneg %p86
        %p463 = pneg %p110
        %p464 = pneg %p107
        %p465 = pneg %p131
        %p466 = pneg %p128
        %p467 = pneg %p152
        %p468 = pneg %p149
        %p469 = pneg %p173
        %p470 = pneg %p170
        %p471 = pneg %p194
        %p472 = pneg %p191
        %p473 = pneg %p215
        %p474 = pneg %p212
        %p475 = pneg %p236
        %p476 = pneg %p233
        %p477 = pneg %p257
        %p478 = pneg %p254
        %p479 = pneg %p278
        %p480 = pneg %p275
        %p481 = pneg %p299
        %p482 = pneg %p296
        %p483 = pneg %p320
        %p484 = pneg %p317
        %p485 = pneg %p341
        %p486 = pneg %p338
        %p487 = pneg %p369
        %p488 = pneg %p366
        %s489 = sand.u32 %s356, 1
        %s490 = scalar_lea.sflag [#allocation4], %s489
        %s491 = sand.u32 %s356, 1
        %s492 = smul.addr %s491, 8
        %s493 = scalar_lea.vmem [#allocation3], %s492
        %p494 = scmp.lt.s32.totalorder %s32, 1
        %s495 = scalar_select %p494, %s32, 1
        %p496 = scmp.lt.s32.totalorder %s33, 0
        %s497 = scalar_select %p496, %s33, 0
        %s498 = sadd.s32 %s497, %s495
        %s499 = smul.addr %s498, 8
        %s500 = scalar_lea.vmem %s0, %s499
        %p501 = scmp.lt.s32.totalorder %s32, 1
        %s502 = scalar_select %p501, %s32, 1
        %s503 = smul.addr %s502, 8
        %s504 = scalar_lea.vmem %s1, %s503
        %v506 = vld [vmem:[%s500] sm:$0xff]
        %v507 = vld [vmem:[%s504] sm:$0xff]
        %v508 = vpack.c.bf16 %v506, %v506
        %v509 = vpack.c.bf16 %v507, %v507
        %v510 = vld [vmem:[%s2] sm:$0xf]
        %v511 = vld [vmem:[%s2 + $0x4] sm:$0xf]
        %v512 = vld [vmem:[%s2 + $0x8] sm:$0xf]
        %v513 = vld [vmem:[%s2 + $0xc] sm:$0xf]
        %v514 = vld [vmem:[%s3] sm:$0x1]
        %v516 = vperm.slane %v514, 0
        %v522 = vunpack.c.l.b16 %v510
        %v523 = vunpack.c.l.b16 %v511
        %v524 = vunpack.c.l.b16 %v512
        %v525 = vunpack.c.l.b16 %v513
        %v526 = vpack.c.b16 %v523, %v522
        %v527 = vpack.c.b16 %v525, %v524
        %vm530 = vcmask 261120
        %v532 = vsel %vm530, %v508, 0
        %534 = vmatpush.bf16.msra.mxu0 0
        %535 = vmatpush.bf16.msra.mxu0 0
        %536 = vmatpush.bf16.msra.mxu0 0
        %537 = vmatpush.bf16.msra.mxu0 0
        %538 = vmatpush.bf16.msra.mxu0 0
        %539 = vmatpush.bf16.msra.mxu0 0
        %540 = vmatpush.bf16.msra.mxu0 %v527
        %541 = vmatpush.bf16.msra.mxu0 %v526
        %542 = vmatmul.bf16.gmra.mxu0 %v532
        %v543 = vpop.f32.mrf.mxu0
        %v544 = vadd.f32 %v516, %v543
        %v545 = vpop.f32.mrf.mxu0
        %546 = vdwg.mxu0
        %v547 = vpack.c.bf16 %v544, %v544
        %548 = vrot.lane.b32.xlu0 %v526, 96
        %v549 = vpop.permute.xlu0 %548
        %550 = vrot.lane.b32.xlu0 %v527, 96
        %v551 = vpop.permute.xlu0 %550
        %554 = vrot.lane.b32.xlu0 %v516, 96
        %v555 = vpop.permute.xlu0 %554
        %v558 = vsel %vm530, %v509, 0
        %560 = vmatpush.bf16.msra.mxu0 0
        %561 = vmatpush.bf16.msra.mxu0 0
        %562 = vmatpush.bf16.msra.mxu0 0
        %563 = vmatpush.bf16.msra.mxu0 0
        %564 = vmatpush.bf16.msra.mxu0 0
        %565 = vmatpush.bf16.msra.mxu0 0
        %566 = vmatpush.bf16.msra.mxu0 %v551
        %567 = vmatpush.bf16.msra.mxu0 %v549
        %568 = vmatmul.bf16.gmra.mxu0 %v558
        %v569 = vpop.f32.mrf.mxu0
        %v570 = vadd.f32 %v555, %v569
        %v571 = vpop.f32.mrf.mxu0
        %572 = vdwg.mxu0
        %v573 = vpack.c.bf16 %v570, %v570
        %vm574 = vcmask 64512
        %v576 = vsel %vm574, %v547, 0
        %v579 = vsel %vm574, %v573, 0
        %581 = vmatpush.bf16.xpose.msra.mxu0 0
        %582 = vmatpush.bf16.xpose.msra.mxu0 0
        %583 = vmatpush.bf16.xpose.msra.mxu0 0
        %584 = vmatpush.bf16.xpose.msra.mxu0 0
        %585 = vmatpush.bf16.xpose.msra.mxu0 0
        %586 = vmatpush.bf16.xpose.msra.mxu0 0
        %587 = vmatpush.bf16.xpose.msra.mxu0 0
        %588 = vmatpush.bf16.xpose.msra.mxu0 %v579
        %589 = vmatmul.bf16.gmra.mxu0 %v576
        %v590 = vpop.f32.mrf.mxu0
        %v591 = vadd.f32 0.0, %v590
        %v592 = vpop.f32.mrf.mxu0
        %593 = vdwg.mxu0
        %v594 = vsel %vm574, %v591, -inf
        %595 = vmax.xlane.f32.xlu0 %v594
        %v596 = vpop.xlane.xlu0 %595
        %v597 = vsub.f32 %v591, %v596
        %v598 = vmul.f32 %v597, 1.442695
        %v599 = vpow.pop %v598
        %v600 = vsel %vm574, %v599, 0.0
        %601 = vadd.xlane.f32.xlu0 %v600
        %v602 = vpop.xlane.xlu0 %601
        %v603 = vrcp.pop %v602
        %v604 = vpack.c.bf16 %v599, %v599
        %v606 = vunpack.c.l.b16 %v573
        %v607 = vpack.c.b16 %v606, %v606
        %608 = vrot.lane.b32.xlu0 %v607, 96
        %v609 = vpop.permute.xlu0 %608
        %v611 = vsel %vm574, %v604, 0
        %vm613 = vcmask 1043456
        %v615 = vsel %vm613, %v609, 0
        %617 = vmatpush.bf16.msra.mxu0 0
        %618 = vmatpush.bf16.msra.mxu0 0
        %619 = vmatpush.bf16.msra.mxu0 0
        %620 = vmatpush.bf16.msra.mxu0 0
        %621 = vmatpush.bf16.msra.mxu0 0
        %622 = vmatpush.bf16.msra.mxu0 0
        %623 = vmatpush.bf16.msra.mxu0 0
        %624 = vmatpush.bf16.msra.mxu0 %v615
        %625 = vmatmul.bf16.gmra.mxu0 %v611
        %v626 = vpop.f32.mrf.mxu0
        %v627 = vadd.f32 0.0, %v626
        %v628 = vpop.f32.mrf.mxu0
        %629 = vdwg.mxu0
        %v630 = vmul.f32 %v627, %v603
        %631 = vst.msk [vmem:[#allocation2] sm:$0xff] %vm574, %v630
        %v633 = vunpack.c.l.b16 %v547
        %v634 = vpack.c.b16 %v633, %v633
        %635 = vrot.lane.b32.xlu0 %v634, 120
        %v636 = vpop.permute.xlu0 %635
        %637 = vrot.lane.b32.xlu0 %v607, 120
        %v638 = vpop.permute.xlu0 %637
        %v640 = vsel %vm574, %v636, 0
        %v643 = vsel %vm574, %v638, 0
        %645 = vmatpush.bf16.xpose.msra.mxu0 0
        %646 = vmatpush.bf16.xpose.msra.mxu0 0
        %647 = vmatpush.bf16.xpose.msra.mxu0 0
        %648 = vmatpush.bf16.xpose.msra.mxu0 0
        %649 = vmatpush.bf16.xpose.msra.mxu0 0
        %650 = vmatpush.bf16.xpose.msra.mxu0 0
        %651 = vmatpush.bf16.xpose.msra.mxu0 0
        %652 = vmatpush.bf16.xpose.msra.mxu0 %v643
        %653 = vmatmul.bf16.gmra.mxu0 %v640
        %v654 = vpop.f32.mrf.mxu0
        %v655 = vadd.f32 0.0, %v654
        %v656 = vpop.f32.mrf.mxu0
        %657 = vdwg.mxu0
        %v658 = vsel %vm574, %v655, -inf
        %659 = vmax.xlane.f32.xlu0 %v658
        %v660 = vpop.xlane.xlu0 %659
        %v661 = vsub.f32 %v655, %v660
        %v662 = vmul.f32 %v661, 1.442695
        %v663 = vpow.pop %v662
        %v664 = vsel %vm574, %v663, 0.0
        %665 = vadd.xlane.f32.xlu0 %v664
        %v666 = vpop.xlane.xlu0 %665
        %v667 = vrcp.pop %v666
        %v668 = vpack.c.bf16 %v663, %v663
        %669 = vrot.lane.b32.xlu0 %v607, 88
        %v670 = vpop.permute.xlu0 %669
        %v672 = vsel %vm574, %v668, 0
        %v675 = vsel %vm613, %v670, 0
        %677 = vmatpush.bf16.msra.mxu0 0
        %678 = vmatpush.bf16.msra.mxu0 0
        %679 = vmatpush.bf16.msra.mxu0 0
        %680 = vmatpush.bf16.msra.mxu0 0
        %681 = vmatpush.bf16.msra.mxu0 0
        %682 = vmatpush.bf16.msra.mxu0 0
        %683 = vmatpush.bf16.msra.mxu0 0
        %684 = vmatpush.bf16.msra.mxu0 %v675
        %685 = vmatmul.bf16.gmra.mxu0 %v672
        %v686 = vpop.f32.mrf.mxu0
        %v687 = vadd.f32 0.0, %v686
        %v688 = vpop.f32.mrf.mxu0
        %689 = vdwg.mxu0
        %v690 = vmul.f32 %v687, %v667
        %692 = vrot.lane.b32.xlu0 %v690, 8
        %v693 = vpop.permute.xlu0 %692
        %vm695 = vcmask 130112
        %696 = vst.msk [vmem:[#allocation2] sm:$0xff] %vm695, %v693
        %697 = vrot.lane.b32.xlu0 %v634, 112
        %v698 = vpop.permute.xlu0 %697
        %699 = vrot.lane.b32.xlu0 %v607, 112
        %v700 = vpop.permute.xlu0 %699
        %v702 = vsel %vm574, %v698, 0
        %v705 = vsel %vm574, %v700, 0
        %707 = vmatpush.bf16.xpose.msra.mxu0 0
        %708 = vmatpush.bf16.xpose.msra.mxu0 0
        %709 = vmatpush.bf16.xpose.msra.mxu0 0
        %710 = vmatpush.bf16.xpose.msra.mxu0 0
        %711 = vmatpush.bf16.xpose.msra.mxu0 0
        %712 = vmatpush.bf16.xpose.msra.mxu0 0
        %713 = vmatpush.bf16.xpose.msra.mxu0 0
        %714 = vmatpush.bf16.xpose.msra.mxu0 %v705
        %715 = vmatmul.bf16.gmra.mxu0 %v702
        %v716 = vpop.f32.mrf.mxu0
        %v717 = vadd.f32 0.0, %v716
        %v718 = vpop.f32.mrf.mxu0
        %719 = vdwg.mxu0
        %v720 = vsel %vm574, %v717, -inf
        %721 = vmax.xlane.f32.xlu0 %v720
        %v722 = vpop.xlane.xlu0 %721
        %v723 = vsub.f32 %v717, %v722
        %v724 = vmul.f32 %v723, 1.442695
        %v725 = vpow.pop %v724
        %v726 = vsel %vm574, %v725, 0.0
        %727 = vadd.xlane.f32.xlu0 %v726
        %v728 = vpop.xlane.xlu0 %727
        %v729 = vrcp.pop %v728
        %v730 = vpack.c.bf16 %v725, %v725
        %731 = vrot.lane.b32.xlu0 %v607, 80
        %v732 = vpop.permute.xlu0 %731
        %v734 = vsel %vm574, %v730, 0
        %v737 = vsel %vm613, %v732, 0
        %739 = vmatpush.bf16.msra.mxu0 0
        %740 = vmatpush.bf16.msra.mxu0 0
        %741 = vmatpush.bf16.msra.mxu0 0
        %742 = vmatpush.bf16.msra.mxu0 0
        %743 = vmatpush.bf16.msra.mxu0 0
        %744 = vmatpush.bf16.msra.mxu0 0
        %745 = vmatpush.bf16.msra.mxu0 0
        %746 = vmatpush.bf16.msra.mxu0 %v737
        %747 = vmatmul.bf16.gmra.mxu0 %v734
        %v748 = vpop.f32.mrf.mxu0
        %v749 = vadd.f32 0.0, %v748
        %v750 = vpop.f32.mrf.mxu0
        %751 = vdwg.mxu0
        %v752 = vmul.f32 %v749, %v729
        %754 = vrot.lane.b32.xlu0 %v752, 16
        %v755 = vpop.permute.xlu0 %754
        %vm757 = vcmask 195712
        %758 = vst.msk [vmem:[#allocation2] sm:$0xff] %vm757, %v755
        %759 = vrot.lane.b32.xlu0 %v634, 104
        %v760 = vpop.permute.xlu0 %759
        %761 = vrot.lane.b32.xlu0 %v607, 104
        %v762 = vpop.permute.xlu0 %761
        %v764 = vsel %vm574, %v760, 0
        %v767 = vsel %vm574, %v762, 0
        %769 = vmatpush.bf16.xpose.msra.mxu0 0
        %770 = vmatpush.bf16.xpose.msra.mxu0 0
        %771 = vmatpush.bf16.xpose.msra.mxu0 0
        %772 = vmatpush.bf16.xpose.msra.mxu0 0
        %773 = vmatpush.bf16.xpose.msra.mxu0 0
        %774 = vmatpush.bf16.xpose.msra.mxu0 0
        %775 = vmatpush.bf16.xpose.msra.mxu0 0
        %776 = vmatpush.bf16.xpose.msra.mxu0 %v767
        %777 = vmatmul.bf16.gmra.mxu0 %v764
        %v778 = vpop.f32.mrf.mxu0
        %v779 = vadd.f32 0.0, %v778
        %v780 = vpop.f32.mrf.mxu0
        %781 = vdwg.mxu0
        %v782 = vsel %vm574, %v779, -inf
        %783 = vmax.xlane.f32.xlu0 %v782
        %v784 = vpop.xlane.xlu0 %783
        %v785 = vsub.f32 %v779, %v784
        %v786 = vmul.f32 %v785, 1.442695
        %v787 = vpow.pop %v786
        %v788 = vsel %vm574, %v787, 0.0
        %789 = vadd.xlane.f32.xlu0 %v788
        %v790 = vpop.xlane.xlu0 %789
        %v791 = vrcp.pop %v790
        %v792 = vpack.c.bf16 %v787, %v787
        %793 = vrot.lane.b32.xlu0 %v607, 72
        %v794 = vpop.permute.xlu0 %793
        %v796 = vsel %vm574, %v792, 0
        %v799 = vsel %vm613, %v794, 0
        %801 = vmatpush.bf16.msra.mxu0 0
        %802 = vmatpush.bf16.msra.mxu0 0
        %803 = vmatpush.bf16.msra.mxu0 0
        %804 = vmatpush.bf16.msra.mxu0 0
        %805 = vmatpush.bf16.msra.mxu0 0
        %806 = vmatpush.bf16.msra.mxu0 0
        %807 = vmatpush.bf16.msra.mxu0 0
        %808 = vmatpush.bf16.msra.mxu0 %v799
        %809 = vmatmul.bf16.gmra.mxu0 %v796
        %v810 = vpop.f32.mrf.mxu0
        %v811 = vadd.f32 0.0, %v810
        %v812 = vpop.f32.mrf.mxu0
        %813 = vdwg.mxu0
        %v814 = vmul.f32 %v811, %v791
        %816 = vrot.lane.b32.xlu0 %v814, 24
        %v817 = vpop.permute.xlu0 %816
        %vm819 = vcmask 261312
        %820 = vst.msk [vmem:[#allocation2] sm:$0xff] %vm819, %v817
        %v821 = vld [vmem:[#allocation2] sm:$0xff]
        %v822 = vpack.c.bf16 %v821, %v821
        %v823 = vld [vmem:[%s4] sm:$0xf]
        %v824 = vld [vmem:[%s4 + $0x4] sm:$0xf]
        %v825 = vld [vmem:[%s4 + $0x8] sm:$0xf]
        %v826 = vld [vmem:[%s4 + $0xc] sm:$0xf]
        %v827 = vld [vmem:[%s5] sm:$0x1]
        %v829 = vperm.slane %v827, 0
        %v835 = vunpack.c.l.b16 %v823
        %v836 = vunpack.c.l.b16 %v824
        %v837 = vunpack.c.l.b16 %v825
        %v838 = vunpack.c.l.b16 %v826
        %v839 = vpack.c.b16 %v836, %v835
        %v840 = vpack.c.b16 %v838, %v837
        %v844 = vsel %vm530, %v822, 0
        %846 = vmatpush.bf16.msra.mxu0 0
        %847 = vmatpush.bf16.msra.mxu0 0
        %848 = vmatpush.bf16.msra.mxu0 0
        %849 = vmatpush.bf16.msra.mxu0 0
        %850 = vmatpush.bf16.msra.mxu0 0
        %851 = vmatpush.bf16.msra.mxu0 0
        %852 = vmatpush.bf16.msra.mxu0 %v840
        %853 = vmatpush.bf16.msra.mxu0 %v839
        %854 = vmatmul.bf16.gmra.mxu0 %v844
        %v855 = vpop.f32.mrf.mxu0
        %v856 = vadd.f32 %v829, %v855
        %v857 = vpop.f32.mrf.mxu0
        %858 = vdwg.mxu0
        %v859 = vadd.f32 %v506, %v856
        %v860 = vld [vmem:[%s6] sm:$0x1]
        %v861 = vld [vmem:[%s7] sm:$0x1]
        %v862 = vsel %vm530, %v859, 0.0
        %863 = vadd.xlane.f32.xlu0 %v862
        %v864 = vpop.xlane.xlu0 %863
        %v865 = vrcp.pop 32.0
        %v866 = vmul.f32 32.0, %v865
        %v867 = vsub.f32 1.0, %v866
        %v868 = vmul.f32 %v865, %v867
        %v869 = vadd.f32 %v865, %v868
        %vm870 = vweird.f32 %v865
        %v871 = vsel %vm870, %v865, %v869
        %v872 = vmul.f32 %v864, %v871
        %v873 = vsub.f32 %v859, %v872
        %v874 = vmul.f32 %v873, %v873
        %v875 = vsel %vm530, %v874, 0.0
        %876 = vadd.xlane.f32.xlu0 %v875
        %v877 = vpop.xlane.xlu0 %876
        %v878 = vmul.f32 %v877, %v871
        %v879 = vadd.f32 %v878, 1e-05
        %v880 = vrsqrt.pop %v879
        %v881 = vmul.f32 %v880, %v879
        %v882 = vmul.f32 %v881, %v880
        %v883 = vmul.f32 0.5, %v882
        %v884 = vsub.f32 1.5, %v883
        %v885 = vmul.f32 %v880, %v884
        %vm886 = vweird.f32 %v879
        %vm887 = vweird.f32 %v880
        %vm888 = vmor %vm886, %vm887
        %v889 = vsel %vm888, %v880, %v885
        %v890 = vmul.f32 %v873, %v889
        %v892 = vperm.slane %v860, 0
        %v894 = vmul.f32 %v890, %v892
        %v896 = vperm.slane %v861, 0
        %v898 = vadd.f32 %v894, %v896
        %v899 = vpack.c.bf16 %v898, %v898
        %v900 = vld [vmem:[%s8] sm:$0xf]
        %v901 = vld [vmem:[%s8 + $0x4] sm:$0xf]
        %v902 = vld [vmem:[%s8 + $0x8] sm:$0xf]
        %v903 = vld [vmem:[%s8 + $0xc] sm:$0xf]
        %v904 = vld [vmem:[%s9] sm:$0x1]
        %v906 = vperm.slane %v904, 0
        %v912 = vunpack.c.l.b16 %v900
        %v913 = vunpack.c.l.b16 %v901
        %v914 = vunpack.c.l.b16 %v902
        %v915 = vunpack.c.l.b16 %v903
        %v916 = vpack.c.b16 %v913, %v912
        %v917 = vpack.c.b16 %v915, %v914
        %v921 = vsel %vm530, %v899, 0
        %923 = vmatpush.bf16.msra.mxu0 0
        %924 = vmatpush.bf16.msra.mxu0 0
        %925 = vmatpush.bf16.msra.mxu0 0
        %926 = vmatpush.bf16.msra.mxu0 0
        %927 = vmatpush.bf16.msra.mxu0 0
        %928 = vmatpush.bf16.msra.mxu0 0
        %929 = vmatpush.bf16.msra.mxu0 %v917
        %930 = vmatpush.bf16.msra.mxu0 %v916
        %931 = vmatmul.bf16.gmra.mxu0 %v921
        %v932 = vpop.f32.mrf.mxu0
        %v933 = vadd.f32 %v906, %v932
        %v934 = vpop.f32.mrf.mxu0
        %935 = vdwg.mxu0
        %v936 = vmul.f32 %v933, 0.5
        %v937 = vmul.f32 %v933, 0.044715
        %v938 = vmul.f32 %v937, %v933
        %v939 = vmul.f32 %v938, %v933
        %v940 = vadd.f32 %v933, %v939
        %v941 = vmul.f32 %v940, 0.7978846
        %v942 = vtanh.pop %v941
        %v943 = vadd.f32 %v942, 1.0
        %v944 = vmul.f32 %v936, %v943
        %v945 = vpack.c.bf16 %v944, %v944
        %v946 = vld [vmem:[%s10] sm:$0xf]
        %v947 = vld [vmem:[%s10 + $0x4] sm:$0xf]
        %v948 = vld [vmem:[%s10 + $0x8] sm:$0xf]
        %v949 = vld [vmem:[%s10 + $0xc] sm:$0xf]
        %v950 = vld [vmem:[%s10 + $0x10] sm:$0xf]
        %v951 = vld [vmem:[%s10 + $0x14] sm:$0xf]
        %v952 = vld [vmem:[%s10 + $0x18] sm:$0xf]
        %v953 = vld [vmem:[%s10 + $0x1c] sm:$0xf]
        %v954 = vld [vmem:[%s10 + $0x20] sm:$0xf]
        %v955 = vld [vmem:[%s10 + $0x24] sm:$0xf]
        %v956 = vld [vmem:[%s10 + $0x28] sm:$0xf]
        %v957 = vld [vmem:[%s10 + $0x2c] sm:$0xf]
        %v958 = vld [vmem:[%s10 + $0x30] sm:$0xf]
        %v959 = vld [vmem:[%s10 + $0x34] sm:$0xf]
        %v960 = vld [vmem:[%s10 + $0x38] sm:$0xf]
        %v961 = vld [vmem:[%s10 + $0x3c] sm:$0xf]
        %v962 = vld [vmem:[%s11] sm:$0x1]
        %v964 = vperm.slane %v962, 0
        %v982 = vunpack.c.l.b16 %v946
        %v983 = vunpack.c.l.b16 %v947
        %v984 = vunpack.c.l.b16 %v948
        %v985 = vunpack.c.l.b16 %v949
        %v986 = vunpack.c.l.b16 %v950
        %v987 = vunpack.c.l.b16 %v951
        %v988 = vunpack.c.l.b16 %v952
        %v989 = vunpack.c.l.b16 %v953
        %v990 = vunpack.c.l.b16 %v954
        %v991 = vunpack.c.l.b16 %v955
        %v992 = vunpack.c.l.b16 %v956
        %v993 = vunpack.c.l.b16 %v957
        %v994 = vunpack.c.l.b16 %v958
        %v995 = vunpack.c.l.b16 %v959
        %v996 = vunpack.c.l.b16 %v960
        %v997 = vunpack.c.l.b16 %v961
        %v998 = vpack.c.b16 %v983, %v982
        %v999 = vpack.c.b16 %v985, %v984
        %v1000 = vpack.c.b16 %v987, %v986
        %v1001 = vpack.c.b16 %v989, %v988
        %v1002 = vpack.c.b16 %v991, %v990
        %v1003 = vpack.c.b16 %v993, %v992
        %v1004 = vpack.c.b16 %v995, %v994
        %v1005 = vpack.c.b16 %v997, %v996
        %1014 = vmatpush.bf16.msra.mxu0 %v1005
        %1015 = vmatpush.bf16.msra.mxu0 %v1004
        %1016 = vmatpush.bf16.msra.mxu0 %v1003
        %1017 = vmatpush.bf16.msra.mxu0 %v1002
        %1018 = vmatpush.bf16.msra.mxu0 %v1001
        %1019 = vmatpush.bf16.msra.mxu0 %v1000
        %1020 = vmatpush.bf16.msra.mxu0 %v999
        %1021 = vmatpush.bf16.msra.mxu0 %v998
        %1022 = vmatmul.bf16.gmra.mxu0 %v945
        %v1023 = vpop.f32.mrf.mxu0
        %v1024 = vadd.f32 %v964, %v1023
        %v1025 = vpop.f32.mrf.mxu0
        %1026 = vdwg.mxu0
        %v1027 = vadd.f32 %v898, %v1024
        %v1028 = vld [vmem:[%s12] sm:$0x1]
        %v1029 = vld [vmem:[%s13] sm:$0x1]
        %v1030 = vsel %vm530, %v1027, 0.0
        %1031 = vadd.xlane.f32.xlu0 %v1030
        %v1032 = vpop.xlane.xlu0 %1031
        %v1033 = vmul.f32 %v1032, %v871
        %v1034 = vsub.f32 %v1027, %v1033
        %v1035 = vmul.f32 %v1034, %v1034
        %v1036 = vsel %vm530, %v1035, 0.0
        %1037 = vadd.xlane.f32.xlu0 %v1036
        %v1038 = vpop.xlane.xlu0 %1037
        %v1039 = vmul.f32 %v1038, %v871
        %v1040 = vadd.f32 %v1039, 1e-05
        %v1041 = vrsqrt.pop %v1040
        %v1042 = vmul.f32 %v1041, %v1040
        %v1043 = vmul.f32 %v1042, %v1041
        %v1044 = vmul.f32 0.5, %v1043
        %v1045 = vsub.f32 1.5, %v1044
        %v1046 = vmul.f32 %v1041, %v1045
        %vm1047 = vweird.f32 %v1040
        %vm1048 = vweird.f32 %v1041
        %vm1049 = vmor %vm1047, %vm1048
        %v1050 = vsel %vm1049, %v1041, %v1046
        %v1051 = vmul.f32 %v1034, %v1050
        %v1053 = vperm.slane %v1028, 0
        %v1055 = vmul.f32 %v1051, %v1053
        %v1057 = vperm.slane %v1029, 0
        %v1059 = vadd.f32 %v1055, %v1057
        %1060 = vst.msk [vmem:[%s493] sm:$0xff] %vm530, %v1059
        %s1061 = sand.u32 %s356, 1
        %s1062 = scalar_lea.sflag [#allocation4], %s1061
        %s1063 = sand.u32 %s356, 1
        %s1064 = smul.addr %s1063, 8
        %s1065 = scalar_lea.vmem [#allocation3], %s1064
        // Predicated region
        $region77: #{tpu_custom_call.1} parent=75 // pred_check
          %p1066 = pneg %p366
        $region78: #{tpu_custom_call.1} parent=75 // pred_check_branch
          %1068 = sbr.rel (%p1066) target = $region80
        $region79: #{tpu_custom_call.1} parent=75 // pred_region
          %1070 = vsyncadd %s1062, 0
          %s1071 = sadd.s32 %s33, %s32
          %s1072 = smul.addr %s1071, 8
          %s1073 = scalar_lea.hbm %s14, %s1072
          %s1075 = sshll.u32 %s1065, 4
          %s1076 = int_to_ptr.vmem [resolvable:$true] %s1075
          %s1077 = sshll.u32 %s1073, 4
          %s1078 = int_to_ptr.hbm [resolvable:$true] %s1077
          %1080 = dma.vmem_to_hbm [thread:$0]  %s1076, 128, %s1078, %s1062
        $region80: #{tpu_custom_call.1} parent=75 // pred_fallthru
          _
      $region76: #{tpu_custom_call.1} parent=5 // pred_fallthru
        _
      %p1081 = scmp.le.s32.totalorder 2, %s23
      // Predicated region
      $region81: #{tpu_custom_call.1} parent=5 // pred_check
        %p1082 = pneg %p1081
      $region82: #{tpu_custom_call.1} parent=5 // pred_check_branch
        %1084 = sbr.rel (%p1082) target = $region84
      $region83: #{tpu_custom_call.1} parent=5 // pred_region
        %s1085 = ssub.s32 %s23, 2
        // Predicated region
        $region85: #{tpu_custom_call.1} parent=83 // pred_check
          %p1086 = pneg %p372
        $region86: #{tpu_custom_call.1} parent=83 // pred_check_branch
          %1088 = sbr.rel (%p1086) target = $region88
        $region87: #{tpu_custom_call.1} parent=83 // pred_region
          %s1089 = sand.u32 %s357, 1
          %s1090 = scalar_lea.sflag [#allocation4], %s1089
          %s1091 = sand.u32 %s357, 1
          %s1092 = smul.addr %s1091, 8
          %s1093 = scalar_lea.vmem [#allocation3], %s1092
          %1095 = dma.done %s1090, 128
        $region88: #{tpu_custom_call.1} parent=83 // pred_fallthru
          _
      $region84: #{tpu_custom_call.1} parent=5 // pred_fallthru
        _
    $region6: #{tpu_custom_call.1} parent=1 // loop_footer
      %s27 = sadd.s32 1, %s23
    $region7: #{tpu_custom_call.1} parent=1 // loop_footer_branch
      %22 = sbr.rel target = $region3
    $region8: #{tpu_custom_call.1} parent=1 // loop_exit
      _
    %1096 = vsyncpa [#allocation4], 1
    %s1097 = scalar_lea.sflag [#allocation4], 1
    %1098 = vsyncpa %s1097, 1

// kernel: tpu_custom_call.1
$region0: #{tpu_custom_call.1}
  #allocation0 [shape = 'u32[]', space=smem, size = 0x4, offset = 0x4, fixed_abs, tag = 'smem constant byte address 0x4 - core index']
  #allocation1 [shape = 'u32[72,128]{1,0:T(1,128)}', space=vmem, size = 0x9000, scoped, tag = 'internal scratch']
  #allocation2 [shape = 'f32[8,32]{1,0:T(8,128)}', space=vmem, size = 0x1000, scoped, tag = 'scratch operand']
  %s0 = inlined_call_operand.vmem [shape: f32[2,8,32], index: 0, kind: input, shape index: {}]
  %s1 = inlined_call_operand.vmem [shape: f32[2,8,32], index: 1, kind: input, shape index: {}]
  %s2 = inlined_call_operand.vmem [shape: bf16[32,96], index: 2, kind: input, shape index: {}]
  %s3 = inlined_call_operand.vmem [shape: f32[1,96], index: 3, kind: input, shape index: {}]
  %s4 = inlined_call_operand.vmem [shape: bf16[32,32], index: 4, kind: input, shape index: {}]
  %s5 = inlined_call_operand.vmem [shape: f32[1,32], index: 5, kind: input, shape index: {}]
  %s6 = inlined_call_operand.vmem [shape: f32[1,32], index: 6, kind: input, shape index: {}]
  %s7 = inlined_call_operand.vmem [shape: f32[1,32], index: 7, kind: input, shape index: {}]
  %s8 = inlined_call_operand.vmem [shape: bf16[32,128], index: 8, kind: input, shape index: {}]
  %s9 = inlined_call_operand.vmem [shape: f32[1,128], index: 9, kind: input, shape index: {}]
  %s10 = inlined_call_operand.vmem [shape: bf16[128,32], index: 10, kind: input, shape index: {}]
  %s11 = inlined_call_operand.vmem [shape: f32[1,32], index: 11, kind: input, shape index: {}]
  %s12 = inlined_call_operand.vmem [shape: f32[1,32], index: 12, kind: input, shape index: {}]
  %s13 = inlined_call_operand.vmem [shape: f32[1,32], index: 13, kind: input, shape index: {}]
  %s14 = inlined_call_operand.hbm [shape: f32[2,8,32], index: 14, kind: output, shape index: {}]
  %s15 = sld [smem:[#allocation0]]
  $region89: #{tpu_custom_call.1} parent=0
    _
  %s17 = ssub.s32 1, %s15
  %s18 = scalar_select 0, %s17, %s15
  $region1: #{tpu_custom_call.1} parent=0
    #allocation3 [shape = 'u8[8192]{0}', space=vmem, size = 0x2000, scoped, tag = 'output window, operand 0']
    #allocation4 [shape = 's32[2]{0}', space=sflag, size = 0x8, scoped, tag = 'scoped memory for tpu_custom_call.1']
    %19 = vsyncpa [#allocation4], 0
    %s20 = scalar_lea.sflag [#allocation4], 1
    %21 = vsyncpa %s20, 0
    loop: start=0, step=1, limit=4
    $region2: #{tpu_custom_call.1} parent=1 // loop_pre_header
      _
    $region3: #{tpu_custom_call.1} parent=1 // loop_header
      %s23 = sphi 0, %s27
      %p24 = scmp.ge.s32.totalorder %s23, 4
      %s30 = sphi 0, %s42
      %s31 = sphi 0, %s38
      %s32 = sphi 0, %s30
      %s33 = sphi 0, %s31
      %s34 = sphi 0, %s32
      %s35 = sphi 0, %s33
      %s47 = sphi 0, %s49
      %s50 = sphi 0, %s47
      %s51 = sphi 0, %s50
      %s67 = sphi 0, %s51
      %s73 = sphi 0, %s75
      %s76 = sphi 0, %s73
      %s77 = sphi 0, %s76
      %s93 = sphi 0, %s77
      %s97 = sphi 0, %s97
      %s99 = sphi 0, %s97
      %s100 = sphi 0, %s99
      %s114 = sphi 0, %s100
      %s118 = sphi 0, %s118
      %s120 = sphi 0, %s118
      %s121 = sphi 0, %s120
      %s135 = sphi 0, %s121
      %s139 = sphi 0, %s139
      %s141 = sphi 0, %s139
      %s142 = sphi 0, %s141
      %s156 = sphi 0, %s142
      %s160 = sphi 0, %s160
      %s162 = sphi 0, %s160
      %s163 = sphi 0, %s162
      %s177 = sphi 0, %s163
      %s181 = sphi 0, %s181
      %s183 = sphi 0, %s181
      %s184 = sphi 0, %s183
      %s198 = sphi 0, %s184
      %s202 = sphi 0, %s202
      %s204 = sphi 0, %s202
      %s205 = sphi 0, %s204
      %s219 = sphi 0, %s205
      %s223 = sphi 0, %s223
      %s225 = sphi 0, %s223
      %s226 = sphi 0, %s225
      %s240 = sphi 0, %s226
      %s244 = sphi 0, %s244
      %s246 = sphi 0, %s244
      %s247 = sphi 0, %s246
      %s261 = sphi 0, %s247
      %s265 = sphi 0, %s265
      %s267 = sphi 0, %s265
      %s268 = sphi 0, %s267
      %s282 = sphi 0, %s268
      %s286 = sphi 0, %s286
      %s288 = sphi 0, %s286
      %s289 = sphi 0, %s288
      %s303 = sphi 0, %s289
      %s307 = sphi 0, %s307
      %s309 = sphi 0, %s307
      %s310 = sphi 0, %s309
      %s324 = sphi 0, %s310
      %s328 = sphi 0, %s328
      %s330 = sphi 0, %s328
      %s331 = sphi 0, %s330
      %s345 = sphi 0, %s331
      %s353 = sphi 0, %s355
      %s356 = sphi 0, %s353
      %s357 = sphi 0, %s356
      %s373 = sphi 0, %s357
    $region4: #{tpu_custom_call.1} parent=1 // loop_header_branch
      %26 = sbr.rel (%p24) target = $region8
    $region5: #{tpu_custom_call.1} parent=1 // loop_body
      %s28 = ssub.s32 %s23, 1
      %s29 = ssub.s32 %s23, 2
      %s36 = sadd.s32 1, %s31
      %p37 = scmp.ge.s32.totalorder %s36, 1
      %s38 = scalar_select %p37, 0, %s36
      %s39 = sadd.s32 1, %s30
      %s40 = scalar_select %p37, %s39, %s30
      %p41 = scmp.ge.s32.totalorder %s40, 2
      %s42 = scalar_select %p41, 0, %s40
      %s43 = ssub.s32 %s30, %s42
      %s44 = ssub.s32 %s31, %s38
      %s45 = sor.u32 %s43, %s44
      %p46 = scmp.eq.s32.totalorder %s45, 0
      %s48 = sadd.s32 %s47, 1
      %s49 = scalar_select %p46, %s47, %s48
      %p52 = pneg %p46
      %p53 = scmp.eq.s32.totalorder %s23, 1
      %p54 = por %p52, %p53
      %p55 = scmp.ne.s32.totalorder %s47, %s50
      %p56 = scmp.eq.s32.totalorder %s23, 0
      %p57 = por %p55, %p56
      %p58 = scmp.ne.s32.totalorder %s47, %s50
      %p59 = scmp.eq.s32.totalorder %s28, 1
      %p60 = por %p58, %p59
      %p61 = scmp.ne.s32.totalorder %s50, %s51
      %p62 = scmp.eq.s32.totalorder %s28, 0
      %p63 = por %p61, %p62
      %p64 = scmp.ne.s32.totalorder %s50, %s51
      %p65 = scmp.eq.s32.totalorder %s29, 1
      %p66 = por %p64, %p65
      %p68 = scmp.ne.s32.totalorder %s51, %s67
      %p69 = scmp.eq.s32.totalorder %s29, 0
      %p70 = por %p68, %p69
      %s71 = ssub.s32 %s30, %s42
      %p72 = scmp.eq.s32.totalorder %s71, 0
      %s74 = sadd.s32 %s73, 1
      %s75 = scalar_select %p72, %s73, %s74
      %p78 = pneg %p72
      %p79 = scmp.eq.s32.totalorder %s23, 1
      %p80 = por %p78, %p79
      %p81 = scmp.ne.s32.totalorder %s73, %s76
      %p82 = scmp.eq.s32.totalorder %s23, 0
      %p83 = por %p81, %p82
      %p84 = scmp.ne.s32.totalorder %s73, %s76
      %p85 = scmp.eq.s32.totalorder %s28, 1
      %p86 = por %p84, %p85
      %p87 = scmp.ne.s32.totalorder %s76, %s77
      %p88 = scmp.eq.s32.totalorder %s28, 0
      %p89 = por %p87, %p88
      %p90 = scmp.ne.s32.totalorder %s76, %s77
      %p91 = scmp.eq.s32.totalorder %s29, 1
      %p92 = por %p90, %p91
      %p94 = scmp.ne.s32.totalorder %s77, %s93
      %p95 = scmp.eq.s32.totalorder %s29, 0
      %p96 = por %p94, %p95
      %s98 = sadd.s32 %s97, 1
      %p101 = scmp.eq.s32.totalorder %s23, 1
      %p102 = scmp.ne.s32.totalorder %s97, %s99
      %p103 = scmp.eq.s32.totalorder %s23, 0
      %p104 = por %p102, %p103
      %p105 = scmp.ne.s32.totalorder %s97, %s99
      %p106 = scmp.eq.s32.totalorder %s28, 1
      %p107 = por %p105, %p106
      %p108 = scmp.ne.s32.totalorder %s99, %s100
      %p109 = scmp.eq.s32.totalorder %s28, 0
      %p110 = por %p108, %p109
      %p111 = scmp.ne.s32.totalorder %s99, %s100
      %p112 = scmp.eq.s32.totalorder %s29, 1
      %p113 = por %p111, %p112
      %p115 = scmp.ne.s32.totalorder %s100, %s114
      %p116 = scmp.eq.s32.totalorder %s29, 0
      %p117 = por %p115, %p116
      %s119 = sadd.s32 %s118, 1
      %p122 = scmp.eq.s32.totalorder %s23, 1
      %p123 = scmp.ne.s32.totalorder %s118, %s120
      %p124 = scmp.eq.s32.totalorder %s23, 0
      %p125 = por %p123, %p124
      %p126 = scmp.ne.s32.totalorder %s118, %s120
      %p127 = scmp.eq.s32.totalorder %s28, 1
      %p128 = por %p126, %p127
      %p129 = scmp.ne.s32.totalorder %s120, %s121
      %p130 = scmp.eq.s32.totalorder %s28, 0
      %p131 = por %p129, %p130
      %p132 = scmp.ne.s32.totalorder %s120, %s121
      %p133 = scmp.eq.s32.totalorder %s29, 1
      %p134 = por %p132, %p133
      %p136 = scmp.ne.s32.totalorder %s121, %s135
      %p137 = scmp.eq.s32.totalorder %s29, 0
      %p138 = por %p136, %p137
      %s140 = sadd.s32 %s139, 1
      %p143 = scmp.eq.s32.totalorder %s23, 1
      %p144 = scmp.ne.s32.totalorder %s139, %s141
      %p145 = scmp.eq.s32.totalorder %s23, 0
      %p146 = por %p144, %p145
      %p147 = scmp.ne.s32.totalorder %s139, %s141
      %p148 = scmp.eq.s32.totalorder %s28, 1
      %p149 = por %p147, %p148
      %p150 = scmp.ne.s32.totalorder %s141, %s142
      %p151 = scmp.eq.s32.totalorder %s28, 0
      %p152 = por %p150, %p151
      %p153 = scmp.ne.s32.totalorder %s141, %s142
      %p154 = scmp.eq.s32.totalorder %s29, 1
      %p155 = por %p153, %p154
      %p157 = scmp.ne.s32.totalorder %s142, %s156
      %p158 = scmp.eq.s32.totalorder %s29, 0
      %p159 = por %p157, %p158
      %s161 = sadd.s32 %s160, 1
      %p164 = scmp.eq.s32.totalorder %s23, 1
      %p165 = scmp.ne.s32.totalorder %s160, %s162
      %p166 = scmp.eq.s32.totalorder %s23, 0
      %p167 = por %p165, %p166
      %p168 = scmp.ne.s32.totalorder %s160, %s162
      %p169 = scmp.eq.s32.totalorder %s28, 1
      %p170 = por %p168, %p169
      %p171 = scmp.ne.s32.totalorder %s162, %s163
      %p172 = scmp.eq.s32.totalorder %s28, 0
      %p173 = por %p171, %p172
      %p174 = scmp.ne.s32.totalorder %s162, %s163
      %p175 = scmp.eq.s32.totalorder %s29, 1
      %p176 = por %p174, %p175
      %p178 = scmp.ne.s32.totalorder %s163, %s177
      %p179 = scmp.eq.s32.totalorder %s29, 0
      %p180 = por %p178, %p179
      %s182 = sadd.s32 %s181, 1
      %p185 = scmp.eq.s32.totalorder %s23, 1
      %p186 = scmp.ne.s32.totalorder %s181, %s183
      %p187 = scmp.eq.s32.totalorder %s23, 0
      %p188 = por %p186, %p187
      %p189 = scmp.ne.s32.totalorder %s181, %s183
      %p190 = scmp.eq.s32.totalorder %s28, 1
      %p191 = por %p189, %p190
      %p192 = scmp.ne.s32.totalorder %s183, %s184
      %p193 = scmp.eq.s32.totalorder %s28, 0
      %p194 = por %p192, %p193
      %p195 = scmp.ne.s32.totalorder %s183, %s184
      %p196 = scmp.eq.s32.totalorder %s29, 1
      %p197 = por %p195, %p196
      %p199 = scmp.ne.s32.totalorder %s184, %s198
      %p200 = scmp.eq.s32.totalorder %s29, 0
      %p201 = por %p199, %p200
      %s203 = sadd.s32 %s202, 1
      %p206 = scmp.eq.s32.totalorder %s23, 1
      %p207 = scmp.ne.s32.totalorder %s202, %s204
      %p208 = scmp.eq.s32.totalorder %s23, 0
      %p209 = por %p207, %p208
      %p210 = scmp.ne.s32.totalorder %s202, %s204
      %p211 = scmp.eq.s32.totalorder %s28, 1
      %p212 = por %p210, %p211
      %p213 = scmp.ne.s32.totalorder %s204, %s205
      %p214 = scmp.eq.s32.totalorder %s28, 0
      %p215 = por %p213, %p214
      %p216 = scmp.ne.s32.totalorder %s204, %s205
      %p217 = scmp.eq.s32.totalorder %s29, 1
      %p218 = por %p216, %p217
      %p220 = scmp.ne.s32.totalorder %s205, %s219
      %p221 = scmp.eq.s32.totalorder %s29, 0
      %p222 = por %p220, %p221
      %s224 = sadd.s32 %s223, 1
      %p227 = scmp.eq.s32.totalorder %s23, 1
      %p228 = scmp.ne.s32.totalorder %s223, %s225
      %p229 = scmp.eq.s32.totalorder %s23, 0
      %p230 = por %p228, %p229
      %p231 = scmp.ne.s32.totalorder %s223, %s225
      %p232 = scmp.eq.s32.totalorder %s28, 1
      %p233 = por %p231, %p232
      %p234 = scmp.ne.s32.totalorder %s225, %s226
      %p235 = scmp.eq.s32.totalorder %s28, 0
      %p236 = por %p234, %p235
      %p237 = scmp.ne.s32.totalorder %s225, %s226
      %p238 = scmp.eq.s32.totalorder %s29, 1
      %p239 = por %p237, %p238
      %p241 = scmp.ne.s32.totalorder %s226, %s240
      %p242 = scmp.eq.s32.totalorder %s29, 0
      %p243 = por %p241, %p242
      %s245 = sadd.s32 %s244, 1
      %p248 = scmp.eq.s32.totalorder %s23, 1
      %p249 = scmp.ne.s32.totalorder %s244, %s246
      %p250 = scmp.eq.s32.totalorder %s23, 0
      %p251 = por %p249, %p250
      %p252 = scmp.ne.s32.totalorder %s244, %s246
      %p253 = scmp.eq.s32.totalorder %s28, 1
      %p254 = por %p252, %p253
      %p255 = scmp.ne.s32.totalorder %s246, %s247
      %p256 = scmp.eq.s32.totalorder %s28, 0
      %p257 = por %p255, %p256
      %p258 = scmp.ne.s32.totalorder %s246, %s247
      %p259 = scmp.eq.s32.totalorder %s29, 1
      %p260 = por %p258, %p259
      %p262 = scmp.ne.s32.totalorder %s247, %s261
      %p263 = scmp.eq.s32.totalorder %s29, 0
      %p264 = por %p262, %p263
      %s266 = sadd.s32 %s265, 1
      %p269 = scmp.eq.s32.totalorder %s23, 1
      %p270 = scmp.ne.s32.totalorder %s265, %s267
      %p271 = scmp.eq.s32.totalorder %s23, 0
      %p272 = por %p270, %p271
      %p273 = scmp.ne.s32.totalorder %s265, %s267
      %p274 = scmp.eq.s32.totalorder %s28, 1
      %p275 = por %p273, %p274
      %p276 = scmp.ne.s32.totalorder %s267, %s268
      %p277 = scmp.eq.s32.totalorder %s28, 0
      %p278 = por %p276, %p277
      %p279 = scmp.ne.s32.totalorder %s267, %s268
      %p280 = scmp.eq.s32.totalorder %s29, 1
      %p281 = por %p279, %p280
      %p283 = scmp.ne.s32.totalorder %s268, %s282
      %p284 = scmp.eq.s32.totalorder %s29, 0
      %p285 = por %p283, %p284
      %s287 = sadd.s32 %s286, 1
      %p290 = scmp.eq.s32.totalorder %s23, 1
      %p291 = scmp.ne.s32.totalorder %s286, %s288
      %p292 = scmp.eq.s32.totalorder %s23, 0
      %p293 = por %p291, %p292
      %p294 = scmp.ne.s32.totalorder %s286, %s288
      %p295 = scmp.eq.s32.totalorder %s28, 1
      %p296 = por %p294, %p295
      %p297 = scmp.ne.s32.totalorder %s288, %s289
      %p298 = scmp.eq.s32.totalorder %s28, 0
      %p299 = por %p297, %p298
      %p300 = scmp.ne.s32.totalorder %s288, %s289
      %p301 = scmp.eq.s32.totalorder %s29, 1
      %p302 = por %p300, %p301
      %p304 = scmp.ne.s32.totalorder %s289, %s303
      %p305 = scmp.eq.s32.totalorder %s29, 0
      %p306 = por %p304, %p305
      %s308 = sadd.s32 %s307, 1
      %p311 = scmp.eq.s32.totalorder %s23, 1
      %p312 = scmp.ne.s32.totalorder %s307, %s309
      %p313 = scmp.eq.s32.totalorder %s23, 0
      %p314 = por %p312, %p313
      %p315 = scmp.ne.s32.totalorder %s307, %s309
      %p316 = scmp.eq.s32.totalorder %s28, 1
      %p317 = por %p315, %p316
      %p318 = scmp.ne.s32.totalorder %s309, %s310
      %p319 = scmp.eq.s32.totalorder %s28, 0
      %p320 = por %p318, %p319
      %p321 = scmp.ne.s32.totalorder %s309, %s310
      %p322 = scmp.eq.s32.totalorder %s29, 1
      %p323 = por %p321, %p322
      %p325 = scmp.ne.s32.totalorder %s310, %s324
      %p326 = scmp.eq.s32.totalorder %s29, 0
      %p327 = por %p325, %p326
      %s329 = sadd.s32 %s328, 1
      %p332 = scmp.eq.s32.totalorder %s23, 1
      %p333 = scmp.ne.s32.totalorder %s328, %s330
      %p334 = scmp.eq.s32.totalorder %s23, 0
      %p335 = por %p333, %p334
      %p336 = scmp.ne.s32.totalorder %s328, %s330
      %p337 = scmp.eq.s32.totalorder %s28, 1
      %p338 = por %p336, %p337
      %p339 = scmp.ne.s32.totalorder %s330, %s331
      %p340 = scmp.eq.s32.totalorder %s28, 0
      %p341 = por %p339, %p340
      %p342 = scmp.ne.s32.totalorder %s330, %s331
      %p343 = scmp.eq.s32.totalorder %s29, 1
      %p344 = por %p342, %p343
      %p346 = scmp.ne.s32.totalorder %s331, %s345
      %p347 = scmp.eq.s32.totalorder %s29, 0
      %p348 = por %p346, %p347
      %s349 = ssub.s32 %s30, %s42
      %s350 = ssub.s32 %s31, %s38
      %s351 = sor.u32 %s349, %s350
      %p352 = scmp.eq.s32.totalorder %s351, 0
      %s354 = sadd.s32 %s353, 1
      %s355 = scalar_select %p352, %s353, %s354
      %p358 = pneg %p352
      %p359 = scmp.eq.s32.totalorder %s23, 1
      %p360 = por %p358, %p359
      %p361 = scmp.ne.s32.totalorder %s353, %s356
      %p362 = scmp.eq.s32.totalorder %s23, 0
      %p363 = por %p361, %p362
      %p364 = scmp.ne.s32.totalorder %s353, %s356
      %p365 = scmp.eq.s32.totalorder %s28, 1
      %p366 = por %p364, %p365
      %p367 = scmp.ne.s32.totalorder %s356, %s357
      %p368 = scmp.eq.s32.totalorder %s28, 0
      %p369 = por %p367, %p368
      %p370 = scmp.ne.s32.totalorder %s356, %s357
      %p371 = scmp.eq.s32.totalorder %s29, 1
      %p372 = por %p370, %p371
      %p374 = scmp.ne.s32.totalorder %s357, %s373
      %p375 = scmp.eq.s32.totalorder %s29, 0
      %p376 = por %p374, %p375
      %p377 = scmp.le.s32.totalorder 1, %s23
      %p378 = scmp.lt.s32.totalorder %s23, 3
      %p379 = pnand %p377, %p378
      %p380 = pneg %p379
      // Predicated region
      $region9: #{tpu_custom_call.1} parent=5 // pred_check
        _
      $region10: #{tpu_custom_call.1} parent=5 // pred_check_branch
        %382 = sbr.rel (%p379) target = $region12
      $region11: #{tpu_custom_call.1} parent=5 // pred_region
        %s383 = ssub.s32 %s23, 1
        // Predicated region
        $region13: #{tpu_custom_call.1} parent=11 // pred_check
          %p384 = pneg %p110
        $region14: #{tpu_custom_call.1} parent=11 // pred_check_branch
          %386 = sbr.rel (%p384) target = $region16
        $region15: #{tpu_custom_call.1} parent=11 // pred_region
          _
        $region16: #{tpu_custom_call.1} parent=11 // pred_fallthru
          _
        // Predicated region
        $region17: #{tpu_custom_call.1} parent=11 // pred_check
          %p387 = pneg %p131
        $region18: #{tpu_custom_call.1} parent=11 // pred_check_branch
          %389 = sbr.rel (%p387) target = $region20
        $region19: #{tpu_custom_call.1} parent=11 // pred_region
          _
        $region20: #{tpu_custom_call.1} parent=11 // pred_fallthru
          _
        // Predicated region
        $region21: #{tpu_custom_call.1} parent=11 // pred_check
          %p390 = pneg %p152
        $region22: #{tpu_custom_call.1} parent=11 // pred_check_branch
          %392 = sbr.rel (%p390) target = $region24
        $region23: #{tpu_custom_call.1} parent=11 // pred_region
          _
        $region24: #{tpu_custom_call.1} parent=11 // pred_fallthru
          _
        // Predicated region
        $region25: #{tpu_custom_call.1} parent=11 // pred_check
          %p393 = pneg %p173
        $region26: #{tpu_custom_call.1} parent=11 // pred_check_branch
          %395 = sbr.rel (%p393) target = $region28
        $region27: #{tpu_custom_call.1} parent=11 // pred_region
          _
        $region28: #{tpu_custom_call.1} parent=11 // pred_fallthru
          _
        // Predicated region
        $region29: #{tpu_custom_call.1} parent=11 // pred_check
          %p396 = pneg %p194
        $region30: #{tpu_custom_call.1} parent=11 // pred_check_branch
          %398 = sbr.rel (%p396) target = $region32
        $region31: #{tpu_custom_call.1} parent=11 // pred_region
          _
        $region32: #{tpu_custom_call.1} parent=11 // pred_fallthru
          _
        // Predicated region
        $region33: #{tpu_custom_call.1} parent=11 // pred_check
          %p399 = pneg %p215
        $region34: #{tpu_custom_call.1} parent=11 // pred_check_branch
          %401 = sbr.rel (%p399) target = $region36
        $region35: #{tpu_custom_call.1} parent=11 // pred_region
          _
        $region36: #{tpu_custom_call.1} parent=11 // pred_fallthru
          _
        // Predicated region
        $region37: #{tpu_custom_call.1} parent=11 // pred_check
          %p402 = pneg %p236
        $region38: #{tpu_custom_call.1} parent=11 // pred_check_branch
          %404 = sbr.rel (%p402) target = $region40
        $region39: #{tpu_custom_call.1} parent=11 // pred_region
          _
        $region40: #{tpu_custom_call.1} parent=11 // pred_fallthru
          _
        // Predicated region
        $region41: #{tpu_custom_call.1} parent=11 // pred_check
          %p405 = pneg %p257
        $region42: #{tpu_custom_call.1} parent=11 // pred_check_branch
          %407 = sbr.rel (%p405) target = $region44
        $region43: #{tpu_custom_call.1} parent=11 // pred_region
          _
        $region44: #{tpu_custom_call.1} parent=11 // pred_fallthru
          _
        // Predicated region
        $region45: #{tpu_custom_call.1} parent=11 // pred_check
          %p408 = pneg %p278
        $region46: #{tpu_custom_call.1} parent=11 // pred_check_branch
          %410 = sbr.rel (%p408) target = $region48
        $region47: #{tpu_custom_call.1} parent=11 // pred_region
          _
        $region48: #{tpu_custom_call.1} parent=11 // pred_fallthru
          _
        // Predicated region
        $region49: #{tpu_custom_call.1} parent=11 // pred_check
          %p411 = pneg %p299
        $region50: #{tpu_custom_call.1} parent=11 // pred_check_branch
          %413 = sbr.rel (%p411) target = $region52
        $region51: #{tpu_custom_call.1} parent=11 // pred_region
          _
        $region52: #{tpu_custom_call.1} parent=11 // pred_fallthru
          _
        // Predicated region
        $region53: #{tpu_custom_call.1} parent=11 // pred_check
          %p414 = pneg %p320
        $region54: #{tpu_custom_call.1} parent=11 // pred_check_branch
          %416 = sbr.rel (%p414) target = $region56
        $region55: #{tpu_custom_call.1} parent=11 // pred_region
          _
        $region56: #{tpu_custom_call.1} parent=11 // pred_fallthru
          _
        // Predicated region
        $region57: #{tpu_custom_call.1} parent=11 // pred_check
          %p417 = pneg %p341
        $region58: #{tpu_custom_call.1} parent=11 // pred_check_branch
          %419 = sbr.rel (%p417) target = $region60
        $region59: #{tpu_custom_call.1} parent=11 // pred_region
          _
        $region60: #{tpu_custom_call.1} parent=11 // pred_fallthru
          _
      $region12: #{tpu_custom_call.1} parent=5 // pred_fallthru
        _
      %p420 = scmp.lt.s32.totalorder %s23, 2
      // Predicated region
      $region61: #{tpu_custom_call.1} parent=5 // pred_check
        %p421 = pneg %p420
      $region62: #{tpu_custom_call.1} parent=5 // pred_check_branch
        %423 = sbr.rel (%p421) target = $region64
      $region63: #{tpu_custom_call.1} parent=5 // pred_region
        // Predicated region
        $region65: #{tpu_custom_call.1} parent=63 // pred_check
          %p424 = pneg %p57
        $region66: #{tpu_custom_call.1} parent=63 // pred_check_branch
          %426 = sbr.rel (%p424) target = $region68
        $region67: #{tpu_custom_call.1} parent=63 // pred_region
          %p427 = scmp.lt.s32.totalorder %s30, 1
          %s428 = scalar_select %p427, %s30, 1
          %p429 = scmp.lt.s32.totalorder %s31, 0
          %s430 = scalar_select %p429, %s31, 0
          %s431 = sadd.s32 %s430, %s428
          %s432 = smul.addr %s431, 8
          %s433 = scalar_lea.vmem %s0, %s432
        $region68: #{tpu_custom_call.1} parent=63 // pred_fallthru
          _
        // Predicated region
        $region69: #{tpu_custom_call.1} parent=63 // pred_check
          %p434 = pneg %p83
        $region70: #{tpu_custom_call.1} parent=63 // pred_check_branch
          %436 = sbr.rel (%p434) target = $region72
        $region71: #{tpu_custom_call.1} parent=63 // pred_region
          %p437 = scmp.lt.s32.totalorder %s30, 1
          %s438 = scalar_select %p437, %s30, 1
          %s439 = smul.addr %s438, 8
          %s440 = scalar_lea.vmem %s1, %s439
        $region72: #{tpu_custom_call.1} parent=63 // pred_fallthru
          _
      $region64: #{tpu_custom_call.1} parent=5 // pred_fallthru
        _
      %p441 = scmp.le.s32.totalorder 1, %s23
      %p442 = scmp.lt.s32.totalorder %s23, 3
      %p443 = pnand %p441, %p442
      %p444 = pneg %p443
      // Predicated region
      $region73: #{tpu_custom_call.1} parent=5 // pred_check
        _
      $region74: #{tpu_custom_call.1} parent=5 // pred_check_branch
        %446 = sbr.rel (%p443) target = $region76
      $region75: #{tpu_custom_call.1} parent=5 // pred_region
        %s447 = ssub.s32 %s23, 1
        %p448 = scmp.lt.s32.totalorder %s32, 1
        %s449 = scalar_select %p448, %s32, 1
        %p450 = scmp.lt.s32.totalorder %s33, 0
        %s451 = scalar_select %p450, %s33, 0
        %s452 = sadd.s32 %s451, %s449
        %s453 = smul.addr %s452, 8
        %s454 = scalar_lea.vmem %s0, %s453
        %p455 = pneg %p63
        %p456 = pneg %p60
        %p457 = scmp.lt.s32.totalorder %s32, 1
        %s458 = scalar_select %p457, %s32, 1
        %s459 = smul.addr %s458, 8
        %s460 = scalar_lea.vmem %s1, %s459
        %p461 = pneg %p89
        %p462 = pneg %p86
        %p463 = pneg %p110
        %p464 = pneg %p107
        %p465 = pneg %p131
        %p466 = pneg %p128
        %p467 = pneg %p152
        %p468 = pneg %p149
        %p469 = pneg %p173
        %p470 = pneg %p170
        %p471 = pneg %p194
        %p472 = pneg %p191
        %p473 = pneg %p215
        %p474 = pneg %p212
        %p475 = pneg %p236
        %p476 = pneg %p233
        %p477 = pneg %p257
        %p478 = pneg %p254
        %p479 = pneg %p278
        %p480 = pneg %p275
        %p481 = pneg %p299
        %p482 = pneg %p296
        %p483 = pneg %p320
        %p484 = pneg %p317
        %p485 = pneg %p341
        %p486 = pneg %p338
        %p487 = pneg %p369
        %p488 = pneg %p366
        %s489 = sand.u32 %s356, 1
        %s490 = scalar_lea.sflag [#allocation4], %s489
        %s491 = sand.u32 %s356, 1
        %s492 = smul.addr %s491, 8
        %s493 = scalar_lea.vmem [#allocation3], %s492
        %p494 = scmp.lt.s32.totalorder %s32, 1
        %s495 = scalar_select %p494, %s32, 1
        %p496 = scmp.lt.s32.totalorder %s33, 0
        %s497 = scalar_select %p496, %s33, 0
        %s498 = sadd.s32 %s497, %s495
        %s499 = smul.addr %s498, 8
        %s500 = scalar_lea.vmem %s0, %s499
        %p501 = scmp.lt.s32.totalorder %s32, 1
        %s502 = scalar_select %p501, %s32, 1
        %s503 = smul.addr %s502, 8
        %s504 = scalar_lea.vmem %s1, %s503
        %v506 = vld [vmem:[%s500] sm:$0xff]
        %v507 = vld [vmem:[%s504] sm:$0xff]
        %v508 = vpack.c.bf16 %v506, %v506
        %v509 = vpack.c.bf16 %v507, %v507
        %v510 = vld [vmem:[%s2] sm:$0xf]
        %v511 = vld [vmem:[%s2 + $0x4] sm:$0xf]
        %v512 = vld [vmem:[%s2 + $0x8] sm:$0xf]
        %v513 = vld [vmem:[%s2 + $0xc] sm:$0xf]
        %v514 = vld [vmem:[%s3] sm:$0x1]
        %v516 = vperm.slane %v514, 0
        %v522 = vunpack.c.l.b16 %v510
        %v523 = vunpack.c.l.b16 %v511
        %v524 = vunpack.c.l.b16 %v512
        %v525 = vunpack.c.l.b16 %v513
        %v526 = vpack.c.b16 %v523, %v522
        %v527 = vpack.c.b16 %v525, %v524
        %vm530 = vcmask 261120
        %v532 = vsel %vm530, %v508, 0
        %534 = vmatpush.bf16.msra.mxu0 0
        %535 = vmatpush.bf16.msra.mxu0 0
        %536 = vmatpush.bf16.msra.mxu0 0
        %537 = vmatpush.bf16.msra.mxu0 0
        %538 = vmatpush.bf16.msra.mxu0 0
        %539 = vmatpush.bf16.msra.mxu0 0
        %540 = vmatpush.bf16.msra.mxu0 %v527
        %541 = vmatpush.bf16.msra.mxu0 %v526
        %542 = vmatmul.bf16.gmra.mxu0 %v532
        %v543 = vpop.f32.mrf.mxu0
        %v544 = vadd.f32 %v516, %v543
        %v545 = vpop.f32.mrf.mxu0
        %546 = vdwg.mxu0
        %v547 = vpack.c.bf16 %v544, %v544
        %548 = vrot.lane.b32.xlu0 %v526, 96
        %v549 = vpop.permute.xlu0 %548
        %550 = vrot.lane.b32.xlu0 %v527, 96
        %v551 = vpop.permute.xlu0 %550
        %554 = vrot.lane.b32.xlu0 %v516, 96
        %v555 = vpop.permute.xlu0 %554
        %v558 = vsel %vm530, %v509, 0
        %560 = vmatpush.bf16.msra.mxu0 0
        %561 = vmatpush.bf16.msra.mxu0 0
        %562 = vmatpush.bf16.msra.mxu0 0
        %563 = vmatpush.bf16.msra.mxu0 0
        %564 = vmatpush.bf16.msra.mxu0 0
        %565 = vmatpush.bf16.msra.mxu0 0
        %566 = vmatpush.bf16.msra.mxu0 %v551
        %567 = vmatpush.bf16.msra.mxu0 %v549
        %568 = vmatmul.bf16.gmra.mxu0 %v558
        %v569 = vpop.f32.mrf.mxu0
        %v570 = vadd.f32 %v555, %v569
        %v571 = vpop.f32.mrf.mxu0
        %572 = vdwg.mxu0
        %v573 = vpack.c.bf16 %v570, %v570
        %vm574 = vcmask 64512
        %v576 = vsel %vm574, %v547, 0
        %v579 = vsel %vm574, %v573, 0
        %581 = vmatpush.bf16.xpose.msra.mxu0 0
        %582 = vmatpush.bf16.xpose.msra.mxu0 0
        %583 = vmatpush.bf16.xpose.msra.mxu0 0
        %584 = vmatpush.bf16.xpose.msra.mxu0 0
        %585 = vmatpush.bf16.xpose.msra.mxu0 0
        %586 = vmatpush.bf16.xpose.msra.mxu0 0
        %587 = vmatpush.bf16.xpose.msra.mxu0 0
        %588 = vmatpush.bf16.xpose.msra.mxu0 %v579
        %589 = vmatmul.bf16.gmra.mxu0 %v576
        %v590 = vpop.f32.mrf.mxu0
        %v591 = vadd.f32 0.0, %v590
        %v592 = vpop.f32.mrf.mxu0
        %593 = vdwg.mxu0
        %v594 = vsel %vm574, %v591, -inf
        %595 = vmax.xlane.f32.xlu0 %v594
        %v596 = vpop.xlane.xlu0 %595
        %v597 = vsub.f32 %v591, %v596
        %v598 = vmul.f32 %v597, 1.442695
        %v599 = vpow.pop %v598
        %v600 = vsel %vm574, %v599, 0.0
        %601 = vadd.xlane.f32.xlu0 %v600
        %v602 = vpop.xlane.xlu0 %601
        %v603 = vrcp.pop %v602
        %v604 = vpack.c.bf16 %v599, %v599
        %v606 = vunpack.c.l.b16 %v573
        %v607 = vpack.c.b16 %v606, %v606
        %608 = vrot.lane.b32.xlu0 %v607, 96
        %v609 = vpop.permute.xlu0 %608
        %v611 = vsel %vm574, %v604, 0
        %vm613 = vcmask 1043456
        %v615 = vsel %vm613, %v609, 0
        %617 = vmatpush.bf16.msra.mxu0 0
        %618 = vmatpush.bf16.msra.mxu0 0
        %619 = vmatpush.bf16.msra.mxu0 0
        %620 = vmatpush.bf16.msra.mxu0 0
        %621 = vmatpush.bf16.msra.mxu0 0
        %622 = vmatpush.bf16.msra.mxu0 0
        %623 = vmatpush.bf16.msra.mxu0 0
        %624 = vmatpush.bf16.msra.mxu0 %v615
        %625 = vmatmul.bf16.gmra.mxu0 %v611
        %v626 = vpop.f32.mrf.mxu0
        %v627 = vadd.f32 0.0, %v626
        %v628 = vpop.f32.mrf.mxu0
        %629 = vdwg.mxu0
        %v630 = vmul.f32 %v627, %v603
        %631 = vst.msk [vmem:[#allocation2] sm:$0xff] %vm574, %v630
        %v633 = vunpack.c.l.b16 %v547
        %v634 = vpack.c.b16 %v633, %v633
        %635 = vrot.lane.b32.xlu0 %v634, 120
        %v636 = vpop.permute.xlu0 %635
        %637 = vrot.lane.b32.xlu0 %v607, 120
        %v638 = vpop.permute.xlu0 %637
        %v640 = vsel %vm574, %v636, 0
        %v643 = vsel %vm574, %v638, 0
        %645 = vmatpush.bf16.xpose.msra.mxu0 0
        %646 = vmatpush.bf16.xpose.msra.mxu0 0
        %647 = vmatpush.bf16.xpose.msra.mxu0 0
        %648 = vmatpush.bf16.xpose.msra.mxu0 0
        %649 = vmatpush.bf16.xpose.msra.mxu0 0
        %650 = vmatpush.bf16.xpose.msra.mxu0 0
        %651 = vmatpush.bf16.xpose.msra.mxu0 0
        %652 = vmatpush.bf16.xpose.msra.mxu0 %v643
        %653 = vmatmul.bf16.gmra.mxu0 %v640
        %v654 = vpop.f32.mrf.mxu0
        %v655 = vadd.f32 0.0, %v654
        %v656 = vpop.f32.mrf.mxu0
        %657 = vdwg.mxu0
        %v658 = vsel %vm574, %v655, -inf
        %659 = vmax.xlane.f32.xlu0 %v658
        %v660 = vpop.xlane.xlu0 %659
        %v661 = vsub.f32 %v655, %v660
        %v662 = vmul.f32 %v661, 1.442695
        %v663 = vpow.pop %v662
        %v664 = vsel %vm574, %v663, 0.0
        %665 = vadd.xlane.f32.xlu0 %v664
        %v666 = vpop.xlane.xlu0 %665
        %v667 = vrcp.pop %v666
        %v668 = vpack.c.bf16 %v663, %v663
        %669 = vrot.lane.b32.xlu0 %v607, 88
        %v670 = vpop.permute.xlu0 %669
        %v672 = vsel %vm574, %v668, 0
        %v675 = vsel %vm613, %v670, 0
        %677 = vmatpush.bf16.msra.mxu0 0
        %678 = vmatpush.bf16.msra.mxu0 0
        %679 = vmatpush.bf16.msra.mxu0 0
        %680 = vmatpush.bf16.msra.mxu0 0
        %681 = vmatpush.bf16.msra.mxu0 0
        %682 = vmatpush.bf16.msra.mxu0 0
        %683 = vmatpush.bf16.msra.mxu0 0
        %684 = vmatpush.bf16.msra.mxu0 %v675
        %685 = vmatmul.bf16.gmra.mxu0 %v672
        %v686 = vpop.f32.mrf.mxu0
        %v687 = vadd.f32 0.0, %v686
        %v688 = vpop.f32.mrf.mxu0
        %689 = vdwg.mxu0
        %v690 = vmul.f32 %v687, %v667
        %692 = vrot.lane.b32.xlu0 %v690, 8
        %v693 = vpop.permute.xlu0 %692
        %vm695 = vcmask 130112
        %696 = vst.msk [vmem:[#allocation2] sm:$0xff] %vm695, %v693
        %697 = vrot.lane.b32.xlu0 %v634, 112
        %v698 = vpop.permute.xlu0 %697
        %699 = vrot.lane.b32.xlu0 %v607, 112
        %v700 = vpop.permute.xlu0 %699
        %v702 = vsel %vm574, %v698, 0
        %v705 = vsel %vm574, %v700, 0
        %707 = vmatpush.bf16.xpose.msra.mxu0 0
        %708 = vmatpush.bf16.xpose.msra.mxu0 0
        %709 = vmatpush.bf16.xpose.msra.mxu0 0
        %710 = vmatpush.bf16.xpose.msra.mxu0 0
        %711 = vmatpush.bf16.xpose.msra.mxu0 0
        %712 = vmatpush.bf16.xpose.msra.mxu0 0
        %713 = vmatpush.bf16.xpose.msra.mxu0 0
        %714 = vmatpush.bf16.xpose.msra.mxu0 %v705
        %715 = vmatmul.bf16.gmra.mxu0 %v702
        %v716 = vpop.f32.mrf.mxu0
        %v717 = vadd.f32 0.0, %v716
        %v718 = vpop.f32.mrf.mxu0
        %719 = vdwg.mxu0
        %v720 = vsel %vm574, %v717, -inf
        %721 = vmax.xlane.f32.xlu0 %v720
        %v722 = vpop.xlane.xlu0 %721
        %v723 = vsub.f32 %v717, %v722
        %v724 = vmul.f32 %v723, 1.442695
        %v725 = vpow.pop %v724
        %v726 = vsel %vm574, %v725, 0.0
        %727 = vadd.xlane.f32.xlu0 %v726
        %v728 = vpop.xlane.xlu0 %727
        %v729 = vrcp.pop %v728
        %v730 = vpack.c.bf16 %v725, %v725
        %731 = vrot.lane.b32.xlu0 %v607, 80
        %v732 = vpop.permute.xlu0 %731
        %v734 = vsel %vm574, %v730, 0
        %v737 = vsel %vm613, %v732, 0
        %739 = vmatpush.bf16.msra.mxu0 0
        %740 = vmatpush.bf16.msra.mxu0 0
        %741 = vmatpush.bf16.msra.mxu0 0
        %742 = vmatpush.bf16.msra.mxu0 0
        %743 = vmatpush.bf16.msra.mxu0 0
        %744 = vmatpush.bf16.msra.mxu0 0
        %745 = vmatpush.bf16.msra.mxu0 0
        %746 = vmatpush.bf16.msra.mxu0 %v737
        %747 = vmatmul.bf16.gmra.mxu0 %v734
        %v748 = vpop.f32.mrf.mxu0
        %v749 = vadd.f32 0.0, %v748
        %v750 = vpop.f32.mrf.mxu0
        %751 = vdwg.mxu0
        %v752 = vmul.f32 %v749, %v729
        %754 = vrot.lane.b32.xlu0 %v752, 16
        %v755 = vpop.permute.xlu0 %754
        %vm757 = vcmask 195712
        %758 = vst.msk [vmem:[#allocation2] sm:$0xff] %vm757, %v755
        %759 = vrot.lane.b32.xlu0 %v634, 104
        %v760 = vpop.permute.xlu0 %759
        %761 = vrot.lane.b32.xlu0 %v607, 104
        %v762 = vpop.permute.xlu0 %761
        %v764 = vsel %vm574, %v760, 0
        %v767 = vsel %vm574, %v762, 0
        %769 = vmatpush.bf16.xpose.msra.mxu0 0
        %770 = vmatpush.bf16.xpose.msra.mxu0 0
        %771 = vmatpush.bf16.xpose.msra.mxu0 0
        %772 = vmatpush.bf16.xpose.msra.mxu0 0
        %773 = vmatpush.bf16.xpose.msra.mxu0 0
        %774 = vmatpush.bf16.xpose.msra.mxu0 0
        %775 = vmatpush.bf16.xpose.msra.mxu0 0
        %776 = vmatpush.bf16.xpose.msra.mxu0 %v767
        %777 = vmatmul.bf16.gmra.mxu0 %v764
        %v778 = vpop.f32.mrf.mxu0
        %v779 = vadd.f32 0.0, %v778
        %v780 = vpop.f32.mrf.mxu0
        %781 = vdwg.mxu0
        %v782 = vsel %vm574, %v779, -inf
        %783 = vmax.xlane.f32.xlu0 %v782
        %v784 = vpop.xlane.xlu0 %783
        %v785 = vsub.f32 %v779, %v784
        %v786 = vmul.f32 %v785, 1.442695
        %v787 = vpow.pop %v786
        %v788 = vsel %vm574, %v787, 0.0
        %789 = vadd.xlane.f32.xlu0 %v788
        %v790 = vpop.xlane.xlu0 %789
        %v791 = vrcp.pop %v790
        %v792 = vpack.c.bf16 %v787, %v787
        %793 = vrot.lane.b32.xlu0 %v607, 72
        %v794 = vpop.permute.xlu0 %793
        %v796 = vsel %vm574, %v792, 0
        %v799 = vsel %vm613, %v794, 0
        %801 = vmatpush.bf16.msra.mxu0 0
        %802 = vmatpush.bf16.msra.mxu0 0
        %803 = vmatpush.bf16.msra.mxu0 0
        %804 = vmatpush.bf16.msra.mxu0 0
        %805 = vmatpush.bf16.msra.mxu0 0
        %806 = vmatpush.bf16.msra.mxu0 0
        %807 = vmatpush.bf16.msra.mxu0 0
        %808 = vmatpush.bf16.msra.mxu0 %v799
        %809 = vmatmul.bf16.gmra.mxu0 %v796
        %v810 = vpop.f32.mrf.mxu0
        %v811 = vadd.f32 0.0, %v810
        %v812 = vpop.f32.mrf.mxu0
        %813 = vdwg.mxu0
        %v814 = vmul.f32 %v811, %v791
        %816 = vrot.lane.b32.xlu0 %v814, 24
        %v817 = vpop.permute.xlu0 %816
        %vm819 = vcmask 261312
        %820 = vst.msk [vmem:[#allocation2] sm:$0xff] %vm819, %v817
        %v821 = vld [vmem:[#allocation2] sm:$0xff]
        %v822 = vpack.c.bf16 %v821, %v821
        %v823 = vld [vmem:[%s4] sm:$0xf]
        %v824 = vld [vmem:[%s4 + $0x4] sm:$0xf]
        %v825 = vld [vmem:[%s4 + $0x8] sm:$0xf]
        %v826 = vld [vmem:[%s4 + $0xc] sm:$0xf]
        %v827 = vld [vmem:[%s5] sm:$0x1]
        %v829 = vperm.slane %v827, 0
        %v835 = vunpack.c.l.b16 %v823
        %v836 = vunpack.c.l.b16 %v824
        %v837 = vunpack.c.l.b16 %v825
        %v838 = vunpack.c.l.b16 %v826
        %v839 = vpack.c.b16 %v836, %v835
        %v840 = vpack.c.b16 %v838, %v837
        %v844 = vsel %vm530, %v822, 0
        %846 = vmatpush.bf16.msra.mxu0 0
        %847 = vmatpush.bf16.msra.mxu0 0
        %848 = vmatpush.bf16.msra.mxu0 0
        %849 = vmatpush.bf16.msra.mxu0 0
        %850 = vmatpush.bf16.msra.mxu0 0
        %851 = vmatpush.bf16.msra.mxu0 0
        %852 = vmatpush.bf16.msra.mxu0 %v840
        %853 = vmatpush.bf16.msra.mxu0 %v839
        %854 = vmatmul.bf16.gmra.mxu0 %v844
        %v855 = vpop.f32.mrf.mxu0
        %v856 = vadd.f32 %v829, %v855
        %v857 = vpop.f32.mrf.mxu0
        %858 = vdwg.mxu0
        %v859 = vadd.f32 %v506, %v856
        %v860 = vld [vmem:[%s6] sm:$0x1]
        %v861 = vld [vmem:[%s7] sm:$0x1]
        %v862 = vsel %vm530, %v859, 0.0
        %863 = vadd.xlane.f32.xlu0 %v862
        %v864 = vpop.xlane.xlu0 %863
        %v865 = vrcp.pop 32.0
        %v866 = vmul.f32 32.0, %v865
        %v867 = vsub.f32 1.0, %v866
        %v868 = vmul.f32 %v865, %v867
        %v869 = vadd.f32 %v865, %v868
        %vm870 = vweird.f32 %v865
        %v871 = vsel %vm870, %v865, %v869
        %v872 = vmul.f32 %v864, %v871
        %v873 = vsub.f32 %v859, %v872
        %v874 = vmul.f32 %v873, %v873
        %v875 = vsel %vm530, %v874, 0.0
        %876 = vadd.xlane.f32.xlu0 %v875
        %v877 = vpop.xlane.xlu0 %876
        %v878 = vmul.f32 %v877, %v871
        %v879 = vadd.f32 %v878, 1e-05
        %v880 = vrsqrt.pop %v879
        %v881 = vmul.f32 %v880, %v879
        %v882 = vmul.f32 %v881, %v880
        %v883 = vmul.f32 0.5, %v882
        %v884 = vsub.f32 1.5, %v883
        %v885 = vmul.f32 %v880, %v884
        %vm886 = vweird.f32 %v879
        %vm887 = vweird.f32 %v880
        %vm888 = vmor %vm886, %vm887
        %v889 = vsel %vm888, %v880, %v885
        %v890 = vmul.f32 %v873, %v889
        %v892 = vperm.slane %v860, 0
        %v894 = vmul.f32 %v890, %v892
        %v896 = vperm.slane %v861, 0
        %v898 = vadd.f32 %v894, %v896
        %v899 = vpack.c.bf16 %v898, %v898
        %v900 = vld [vmem:[%s8] sm:$0xf]
        %v901 = vld [vmem:[%s8 + $0x4] sm:$0xf]
        %v902 = vld [vmem:[%s8 + $0x8] sm:$0xf]
        %v903 = vld [vmem:[%s8 + $0xc] sm:$0xf]
        %v904 = vld [vmem:[%s9] sm:$0x1]
        %v906 = vperm.slane %v904, 0
        %v912 = vunpack.c.l.b16 %v900
        %v913 = vunpack.c.l.b16 %v901
        %v914 = vunpack.c.l.b16 %v902
        %v915 = vunpack.c.l.b16 %v903
        %v916 = vpack.c.b16 %v913, %v912
        %v917 = vpack.c.b16 %v915, %v914
        %v921 = vsel %vm530, %v899, 0
        %923 = vmatpush.bf16.msra.mxu0 0
        %924 = vmatpush.bf16.msra.mxu0 0
        %925 = vmatpush.bf16.msra.mxu0 0
        %926 = vmatpush.bf16.msra.mxu0 0
        %927 = vmatpush.bf16.msra.mxu0 0
        %928 = vmatpush.bf16.msra.mxu0 0
        %929 = vmatpush.bf16.msra.mxu0 %v917
        %930 = vmatpush.bf16.msra.mxu0 %v916
        %931 = vmatmul.bf16.gmra.mxu0 %v921
        %v932 = vpop.f32.mrf.mxu0
        %v933 = vadd.f32 %v906, %v932
        %v934 = vpop.f32.mrf.mxu0
        %935 = vdwg.mxu0
        %v936 = vmul.f32 %v933, 0.5
        %v937 = vmul.f32 %v933, 0.044715
        %v938 = vmul.f32 %v937, %v933
        %v939 = vmul.f32 %v938, %v933
        %v940 = vadd.f32 %v933, %v939
        %v941 = vmul.f32 %v940, 0.7978846
        %v942 = vtanh.pop %v941
        %v943 = vadd.f32 %v942, 1.0
        %v944 = vmul.f32 %v936, %v943
        %v945 = vpack.c.bf16 %v944, %v944
        %v946 = vld [vmem:[%s10] sm:$0xf]
        %v947 = vld [vmem:[%s10 + $0x4] sm:$0xf]
        %v948 = vld [vmem:[%s10 + $0x8] sm:$0xf]
        %v949 = vld [vmem:[%s10 + $0xc] sm:$0xf]
        %v950 = vld [vmem:[%s10 + $0x10] sm:$0xf]
        %v951 = vld [vmem:[%s10 + $0x14] sm:$0xf]
        %v952 = vld [vmem:[%s10 + $0x18] sm:$0xf]
        %v953 = vld [vmem:[%s10 + $0x1c] sm:$0xf]
        %v954 = vld [vmem:[%s10 + $0x20] sm:$0xf]
        %v955 = vld [vmem:[%s10 + $0x24] sm:$0xf]
        %v956 = vld [vmem:[%s10 + $0x28] sm:$0xf]
        %v957 = vld [vmem:[%s10 + $0x2c] sm:$0xf]
        %v958 = vld [vmem:[%s10 + $0x30] sm:$0xf]
        %v959 = vld [vmem:[%s10 + $0x34] sm:$0xf]
        %v960 = vld [vmem:[%s10 + $0x38] sm:$0xf]
        %v961 = vld [vmem:[%s10 + $0x3c] sm:$0xf]
        %v962 = vld [vmem:[%s11] sm:$0x1]
        %v964 = vperm.slane %v962, 0
        %v982 = vunpack.c.l.b16 %v946
        %v983 = vunpack.c.l.b16 %v947
        %v984 = vunpack.c.l.b16 %v948
        %v985 = vunpack.c.l.b16 %v949
        %v986 = vunpack.c.l.b16 %v950
        %v987 = vunpack.c.l.b16 %v951
        %v988 = vunpack.c.l.b16 %v952
        %v989 = vunpack.c.l.b16 %v953
        %v990 = vunpack.c.l.b16 %v954
        %v991 = vunpack.c.l.b16 %v955
        %v992 = vunpack.c.l.b16 %v956
        %v993 = vunpack.c.l.b16 %v957
        %v994 = vunpack.c.l.b16 %v958
        %v995 = vunpack.c.l.b16 %v959
        %v996 = vunpack.c.l.b16 %v960
        %v997 = vunpack.c.l.b16 %v961
        %v998 = vpack.c.b16 %v983, %v982
        %v999 = vpack.c.b16 %v985, %v984
        %v1000 = vpack.c.b16 %v987, %v986
        %v1001 = vpack.c.b16 %v989, %v988
        %v1002 = vpack.c.b16 %v991, %v990
        %v1003 = vpack.c.b16 %v993, %v992
        %v1004 = vpack.c.b16 %v995, %v994
        %v1005 = vpack.c.b16 %v997, %v996
        %1014 = vmatpush.bf16.msra.mxu0 %v1005
        %1015 = vmatpush.bf16.msra.mxu0 %v1004
        %1016 = vmatpush.bf16.msra.mxu0 %v1003
        %1017 = vmatpush.bf16.msra.mxu0 %v1002
        %1018 = vmatpush.bf16.msra.mxu0 %v1001
        %1019 = vmatpush.bf16.msra.mxu0 %v1000
        %1020 = vmatpush.bf16.msra.mxu0 %v999
        %1021 = vmatpush.bf16.msra.mxu0 %v998
        %1022 = vmatmul.bf16.gmra.mxu0 %v945
        %v1023 = vpop.f32.mrf.mxu0
        %v1024 = vadd.f32 %v964, %v1023
        %v1025 = vpop.f32.mrf.mxu0
        %1026 = vdwg.mxu0
        %v1027 = vadd.f32 %v898, %v1024
        %v1028 = vld [vmem:[%s12] sm:$0x1]
        %v1029 = vld [vmem:[%s13] sm:$0x1]
        %v1030 = vsel %vm530, %v1027, 0.0
        %1031 = vadd.xlane.f32.xlu0 %v1030
        %v1032 = vpop.xlane.xlu0 %1031
        %v1033 = vmul.f32 %v1032, %v871
        %v1034 = vsub.f32 %v1027, %v1033
        %v1035 = vmul.f32 %v1034, %v1034
        %v1036 = vsel %vm530, %v1035, 0.0
        %1037 = vadd.xlane.f32.xlu0 %v1036
        %v1038 = vpop.xlane.xlu0 %1037
        %v1039 = vmul.f32 %v1038, %v871
        %v1040 = vadd.f32 %v1039, 1e-05
        %v1041 = vrsqrt.pop %v1040
        %v1042 = vmul.f32 %v1041, %v1040
        %v1043 = vmul.f32 %v1042, %v1041
        %v1044 = vmul.f32 0.5, %v1043
        %v1045 = vsub.f32 1.5, %v1044
        %v1046 = vmul.f32 %v1041, %v1045
        %vm1047 = vweird.f32 %v1040
        %vm1048 = vweird.f32 %v1041
        %vm1049 = vmor %vm1047, %vm1048
        %v1050 = vsel %vm1049, %v1041, %v1046
        %v1051 = vmul.f32 %v1034, %v1050
        %v1053 = vperm.slane %v1028, 0
        %v1055 = vmul.f32 %v1051, %v1053
        %v1057 = vperm.slane %v1029, 0
        %v1059 = vadd.f32 %v1055, %v1057
        %1060 = vst.msk [vmem:[%s493] sm:$0xff] %vm530, %v1059
        %s1061 = sand.u32 %s356, 1
        %s1062 = scalar_lea.sflag [#allocation4], %s1061
        %s1063 = sand.u32 %s356, 1
        %s1064 = smul.addr %s1063, 8
        %s1065 = scalar_lea.vmem [#allocation3], %s1064
        // Predicated region
        $region77: #{tpu_custom_call.1} parent=75 // pred_check
          %p1066 = pneg %p366
        $region78: #{tpu_custom_call.1} parent=75 // pred_check_branch
          %1068 = sbr.rel (%p1066) target = $region80
        $region79: #{tpu_custom_call.1} parent=75 // pred_region
          %1070 = vsyncadd %s1062, 0
          %s1071 = sadd.s32 %s33, %s32
          %s1072 = smul.addr %s1071, 8
          %s1073 = scalar_lea.hbm %s14, %s1072
          %s1075 = sshll.u32 %s1065, 4
          %s1076 = int_to_ptr.vmem [resolvable:$true] %s1075
          %s1077 = sshll.u32 %s1073, 4
          %s1078 = int_to_ptr.hbm [resolvable:$true] %s1077
          %1080 = dma.vmem_to_hbm [thread:$0]  %s1076, 128, %s1078, %s1062
        $region80: #{tpu_custom_call.1} parent=75 // pred_fallthru
          _
      $region76: #{tpu_custom_call.1} parent=5 // pred_fallthru
        _
      %p1081 = scmp.le.s32.totalorder 2, %s23
      // Predicated region
      $region81: #{tpu_custom_call.1} parent=5 // pred_check
        %p1082 = pneg %p1081
      $region82: #{tpu_custom_call.1} parent=5 // pred_check_branch
        %1084 = sbr.rel (%p1082) target = $region84
      $region83: #{tpu_custom_call.1} parent=5 // pred_region
        %s1085 = ssub.s32 %s23, 2
        // Predicated region
        $region85: #{tpu_custom_call.1} parent=83 // pred_check
          %p1086 = pneg %p372
        $region86: #{tpu_custom_call.1} parent=83 // pred_check_branch
          %1088 = sbr.rel (%p1086) target = $region88
        $region87: #{tpu_custom_call.1} parent=83 // pred_region
          %s1089 = sand.u32 %s357, 1
          %s1090 = scalar_lea.sflag [#allocation4], %s1089
          %s1091 = sand.u32 %s357, 1
          %s1092 = smul.addr %s1091, 8
          %s1093 = scalar_lea.vmem [#allocation3], %s1092
          %1095 = dma.done %s1090, 128
        $region88: #{tpu_custom_call.1} parent=83 // pred_fallthru
          _
      $region84: #{tpu_custom_call.1} parent=5 // pred_fallthru
        _
    $region6: #{tpu_custom_call.1} parent=1 // loop_footer
      %s27 = sadd.s32 1, %s23
    $region7: #{tpu_custom_call.1} parent=1 // loop_footer_branch
      %22 = sbr.rel target = $region3
    $region8: #{tpu_custom_call.1} parent=1 // loop_exit
      _
    %1096 = vsyncpa [#allocation4], 1
    %s1097 = scalar_lea.sflag [#allocation4], 1
    %1098 = vsyncpa %s1097, 1

</llo_original>
